<compile_context>
chip_gen: v7x
topology: tpu7x:2x2x1
jax: 0.10.0
libtpu: 0.0.40
codegen_flags: <defaults>
</compile_context>

<pallas_src>
import math
import numpy as np
import jax
import jax.numpy as jnp
from jax import lax
from jax.experimental import pallas as pl
from jax.experimental.pallas import tpu as pltpu

WINDOW_SIZE = 11
SIGMA = 1.5


def _gaussian_1d(window_size: int, sigma: float) -> np.ndarray:
    # matches torch: exp in python float, normalized in float32
    g = np.array(
        [math.exp(-((i - window_size // 2) ** 2) / (2.0 * sigma ** 2))
         for i in range(window_size)],
        dtype=np.float32,
    )
    return g / g.sum()


def _round_up(x: int, m: int) -> int:
    return -(-x // m) * m


def _make_ssim_kernel(H, W, win, B, Hp_al, Wp, Wl, L):
    """Kernel over a block of B groups; each group packs L padded planes
    side-by-side along lanes.  Block shape: (B, Hp_al, Wl)."""
    assert win % 2 == 1, "window_size must be odd"
    pad = win // 2
    g = tuple(float(v) for v in _gaussian_1d(win, SIGMA))
    R = B * Hp_al

    def conv_w_same(a2):
        # "same" Gaussian conv along lanes on (R, Wl).  Symmetric taps are
        # paired (g[k] == g[win-1-k]).  Roll wrap-around garbage only lands in
        # pad / alignment columns which the validity mask discards later.
        acc = g[pad] * a2
        for k in range(pad):
            s = (pltpu.roll(a2, pad - k, axis=1)
                 + pltpu.roll(a2, (Wl - (pad - k)) % Wl, axis=1))
            acc = acc + g[k] * s
        return acc

    def conv_h_valid(a3):
        # "valid" Gaussian conv along sublanes inside each group:
        # (B, Hp_al, Wl) -> (B, H, Wl); rows [0, H) are exactly the plane's
        # valid output rows (plane rows carry their own zero pad).
        acc = g[pad] * a3[:, pad:pad + H, :]
        for k in range(pad):
            s = a3[:, k:k + H, :] + a3[:, 2 * pad - k:2 * pad - k + H, :]
            acc = acc + g[k] * s
        return acc

    def gconv(a3):
        th = conv_w_same(a3.reshape(R, Wl)).reshape(B, Hp_al, Wl)
        return conv_h_valid(th)

    def kernel(c_ref, x_ref, y_ref, o_ref):
        x = x_ref[...]          # (B, Hp_al, Wl)
        y = y_ref[...]

        mu1 = gconv(x)
        mu2 = gconv(y)
        e11 = gconv(x * x)
        e22 = gconv(y * y)
        e12 = gconv(x * y)

        c1 = c_ref[0]
        c2 = c_ref[1]

        mu1_sq = mu1 * mu1
        mu2_sq = mu2 * mu2
        mu1_mu2 = mu1 * mu2
        sigma1_sq = e11 - mu1_sq
        sigma2_sq = e22 - mu2_sq
        sigma12 = e12 - mu1_mu2

        v1 = 2.0 * sigma12 + c2
        v2 = sigma1_sq + sigma2_sq + c2
        ssim_map = (2.0 * mu1_mu2 + c1) * v1 / ((mu1_sq + mu2_sq + c1) * v2)

        # lane-validity mask: only the true W columns of each packed plane.
        ci = lax.broadcasted_iota(jnp.int32, (B, H, Wl), 2)
        col_ok = (ci >= pad) & (ci < pad + W)
        for l in range(1, L):
            lo = l * Wp + pad
            col_ok = col_ok | ((ci >= lo) & (ci < lo + W))
        masked = jnp.where(col_ok, ssim_map, 0.0)

        # one lane-dense partial-sum row per block (no serial accumulator).
        psum = jnp.sum(jnp.sum(masked, axis=0), axis=0)       # (Wl,)
        ri = lax.broadcasted_iota(jnp.int32, (8, Wl), 0)
        slab = jnp.where(ri == 0,
                         jnp.broadcast_to(psum.reshape(1, Wl), (8, Wl)),
                         0.0)
        o_ref[...] = slab.reshape(1, 8, Wl)

    return kernel


def ssim_loss(img1, img2, window_size=WINDOW_SIZE):
    """Equivalent of SSIM().forward(img1, img2) with size_average=True,
    val_range=None.  Returns a scalar (1 - mean SSIM)."""
    img1 = img1.astype(jnp.float32)
    img2 = img2.astype(jnp.float32)
    N, C, H, W = img1.shape
    pad = window_size // 2
    Hp, Wp = H + 2 * pad, W + 2 * pad
    Hp_al = _round_up(Hp, 8)
    P = N * C

    # lane-pack factor and aligned lane width
    L = max(1, min(128 // Wp, P)) if Wp <= 128 else 1
    Wl = _round_up(L * Wp, 128)
    G = -(-P // L)                                   # number of lane-groups

    # groups per grid step, sized against a conservative VMEM budget
    slab_bytes = Hp_al * Wl * 4
    B = int(max(1, min(G, (4 * 1024 * 1024) // (16 * slab_bytes))))
    nblk = -(-G // B)
    n_zero = nblk * B * L - P                        # appended all-zero planes

    # dynamic-range logic from ssim() (val_range is None)
    max_val = jnp.where(jnp.max(img1) > 128.0, 255.0, 1.0)
    min_val = jnp.where(jnp.min(img1) < -0.5, -1.0, 0.0)
    dr = max_val - min_val
    cvec = jnp.stack([(0.01 * dr) ** 2, (0.03 * dr) ** 2]).astype(jnp.float32)

    def pack(a):
        p = a.reshape(P, H, W)
        # conv pad + sublane-alignment pad + zero planes to fill the grid
        p = jnp.pad(p, ((0, n_zero), (pad, pad + (Hp_al - Hp)), (pad, pad)))
        # pack L planes side-by-side along lanes, then lane-align to Wl
        p = p.reshape(nblk * B, L, Hp_al, Wp).transpose(0, 2, 1, 3)
        p = p.reshape(nblk * B, Hp_al, L * Wp)
        return jnp.pad(p, ((0, 0), (0, 0), (0, Wl - L * Wp)))

    xp = pack(img1)
    yp = pack(img2)

    kernel = _make_ssim_kernel(H, W, window_size, B, Hp_al, Wp, Wl, L)

    out = pl.pallas_call(
        kernel,
        out_shape=jax.ShapeDtypeStruct((nblk, 8, Wl), jnp.float32),
        grid_spec=pltpu.PrefetchScalarGridSpec(
            num_scalar_prefetch=0,
            grid=(nblk,),
            in_specs=[
                pl.BlockSpec(memory_space=pltpu.MemorySpace.SMEM),  # (c1, c2)
                pl.BlockSpec((B, Hp_al, Wl), lambda b: (b, 0, 0)),
                pl.BlockSpec((B, Hp_al, Wl), lambda b: (b, 0, 0)),
            ],
            out_specs=pl.BlockSpec((1, 8, Wl), lambda b: (b, 0, 0)),
        ),
        compiler_params=pltpu.CompilerParams(
            dimension_semantics=("parallel",)),
    )(cvec, xp, yp)

    # appended all-zero planes contribute exactly SSIM=1 per valid pixel.
    total = jnp.sum(out) - jnp.float32(n_zero * H * W)
    return 1.0 - total / jnp.float32(N * C * H * W)


def ssim_loss_ref(img1, img2, window_size=WINDOW_SIZE):
    """Pure-JAX reference (depthwise conv2d), mirrors the PyTorch code."""
    img1 = img1.astype(jnp.float32)
    img2 = img2.astype(jnp.float32)
    N, C, H, W = img1.shape
    g = jnp.asarray(_gaussian_1d(window_size, SIGMA))
    w2d = jnp.outer(g, g)
    win = jnp.broadcast_to(w2d, (C, 1, window_size, window_size))
    pad = window_size // 2

    def conv(x):
        return jax.lax.conv_general_dilated(
            x, win, window_strides=(1, 1),
            padding=[(pad, pad), (pad, pad)],
            dimension_numbers=("NCHW", "OIHW", "NCHW"),
            feature_group_count=C)

    max_val = jnp.where(jnp.max(img1) > 128.0, 255.0, 1.0)
    min_val = jnp.where(jnp.min(img1) < -0.5, -1.0, 0.0)
    dr = max_val - min_val
    c1 = (0.01 * dr) ** 2
    c2 = (0.03 * dr) ** 2

    mu1 = conv(img1)
    mu2 = conv(img2)
    mu1_sq = mu1 * mu1
    mu2_sq = mu2 * mu2
    mu1_mu2 = mu1 * mu2
    s1 = conv(img1 * img1) - mu1_sq
    s2 = conv(img2 * img2) - mu2_sq
    s12 = conv(img1 * img2) - mu1_mu2
    v1 = 2.0 * s12 + c2
    v2 = s1 + s2 + c2
    ssim_map = (2 * mu1_mu2 + c1) * v1 / ((mu1_sq + mu2_sq + c1) * v2)
    return 1.0 - jnp.mean(ssim_map)


if __name__ == "__main__":
    key = jax.random.PRNGKey(0)
    k1, k2 = jax.random.split(key)
    img1 = jax.random.normal(k1, (2, 4, 16, 16), dtype=jnp.float32)
    img2 = jax.random.normal(k2, (2, 4, 16, 16), dtype=jnp.float32)

    loss = jax.jit(ssim_loss)(img1, img2)
    loss = jax.block_until_ready(loss)

    ref = jax.block_until_ready(ssim_loss_ref(img1, img2))
    assert np.allclose(np.asarray(loss), np.asarray(ref),
                       rtol=1e-4, atol=1e-5), (float(loss), float(ref))
    print("KERNEL_OK")
</pallas_src>

<mosaic_0001>
module attributes {stable_mosaic.version = 11 : i64} {
  func.func @kernel(%arg0: i32, %arg1: memref<2xf32, #tpu.memory_space<smem>>, %arg2: memref<2x32x128xf32, #tpu.memory_space<vmem>>, %arg3: memref<2x32x128xf32, #tpu.memory_space<vmem>>, %arg4: memref<1x8x128xf32, #tpu.memory_space<vmem>>) attributes {dimension_semantics = [#tpu.dimension_semantics<parallel>], iteration_bounds = array<i64: 1>, scalar_prefetch = 0 : i64, scratch_operands = 0 : i64, tpu.core_type = #tpu.core_type<tc>, window_params = [{transform_indices = @transform_0, window_bounds = array<i64: 2>}, {transform_indices = @transform_1, window_bounds = array<i64: 2, 32, 128>}, {transform_indices = @transform_2, window_bounds = array<i64: 2, 32, 128>}, {transform_indices = @transform_3, window_bounds = array<i64: 1, 8, 128>}]} {
    %c0 = arith.constant 0 : index
    %c0_0 = arith.constant 0 : index
    %c0_1 = arith.constant 0 : index
    %0 = vector.load %arg2[%c0, %c0_0, %c0_1] : memref<2x32x128xf32, #tpu.memory_space<vmem>>, vector<2x32x128xf32>
    %c0_2 = arith.constant 0 : index
    %c0_3 = arith.constant 0 : index
    %c0_4 = arith.constant 0 : index
    %1 = vector.load %arg3[%c0_2, %c0_3, %c0_4] : memref<2x32x128xf32, #tpu.memory_space<vmem>>, vector<2x32x128xf32>
    %2 = vector.shape_cast %0 : vector<2x32x128xf32> to vector<64x128xf32>
    %cst = arith.constant 0.266011745 : f32
    %3 = vector.broadcast %cst : f32 to vector<64x128xf32>
    %4 = arith.mulf %3, %2 : vector<64x128xf32>
    %c5_i32 = arith.constant 5 : i32
    %5 = tpu.dynamic_rotate %2 by %c5_i32 dim 1 : vector<64x128xf32>, i32 -> vector<64x128xf32>
    %c123_i32 = arith.constant 123 : i32
    %6 = tpu.dynamic_rotate %2 by %c123_i32 dim 1 : vector<64x128xf32>, i32 -> vector<64x128xf32>
    %7 = arith.addf %5, %6 : vector<64x128xf32>
    %cst_5 = arith.constant 0.00102838024 : f32
    %8 = vector.broadcast %cst_5 : f32 to vector<64x128xf32>
    %9 = arith.mulf %8, %7 : vector<64x128xf32>
    %10 = arith.addf %4, %9 : vector<64x128xf32>
    %c4_i32 = arith.constant 4 : i32
    %11 = tpu.dynamic_rotate %2 by %c4_i32 dim 1 : vector<64x128xf32>, i32 -> vector<64x128xf32>
    %c124_i32 = arith.constant 124 : i32
    %12 = tpu.dynamic_rotate %2 by %c124_i32 dim 1 : vector<64x128xf32>, i32 -> vector<64x128xf32>
    %13 = arith.addf %11, %12 : vector<64x128xf32>
    %cst_6 = arith.constant 0.00759875868 : f32
    %14 = vector.broadcast %cst_6 : f32 to vector<64x128xf32>
    %15 = arith.mulf %14, %13 : vector<64x128xf32>
    %16 = arith.addf %10, %15 : vector<64x128xf32>
    %c3_i32 = arith.constant 3 : i32
    %17 = tpu.dynamic_rotate %2 by %c3_i32 dim 1 : vector<64x128xf32>, i32 -> vector<64x128xf32>
    %c125_i32 = arith.constant 125 : i32
    %18 = tpu.dynamic_rotate %2 by %c125_i32 dim 1 : vector<64x128xf32>, i32 -> vector<64x128xf32>
    %19 = arith.addf %17, %18 : vector<64x128xf32>
    %cst_7 = arith.constant 0.0360007733 : f32
    %20 = vector.broadcast %cst_7 : f32 to vector<64x128xf32>
    %21 = arith.mulf %20, %19 : vector<64x128xf32>
    %22 = arith.addf %16, %21 : vector<64x128xf32>
    %c2_i32 = arith.constant 2 : i32
    %23 = tpu.dynamic_rotate %2 by %c2_i32 dim 1 : vector<64x128xf32>, i32 -> vector<64x128xf32>
    %c126_i32 = arith.constant 126 : i32
    %24 = tpu.dynamic_rotate %2 by %c126_i32 dim 1 : vector<64x128xf32>, i32 -> vector<64x128xf32>
    %25 = arith.addf %23, %24 : vector<64x128xf32>
    %cst_8 = arith.constant 0.109360695 : f32
    %26 = vector.broadcast %cst_8 : f32 to vector<64x128xf32>
    %27 = arith.mulf %26, %25 : vector<64x128xf32>
    %28 = arith.addf %22, %27 : vector<64x128xf32>
    %c1_i32 = arith.constant 1 : i32
    %29 = tpu.dynamic_rotate %2 by %c1_i32 dim 1 : vector<64x128xf32>, i32 -> vector<64x128xf32>
    %c127_i32 = arith.constant 127 : i32
    %30 = tpu.dynamic_rotate %2 by %c127_i32 dim 1 : vector<64x128xf32>, i32 -> vector<64x128xf32>
    %31 = arith.addf %29, %30 : vector<64x128xf32>
    %cst_9 = arith.constant 0.213005543 : f32
    %32 = vector.broadcast %cst_9 : f32 to vector<64x128xf32>
    %33 = arith.mulf %32, %31 : vector<64x128xf32>
    %34 = arith.addf %28, %33 : vector<64x128xf32>
    %35 = vector.shape_cast %34 : vector<64x128xf32> to vector<2x32x128xf32>
    %36 = vector.extract_strided_slice %35 {offsets = [0, 5, 0], sizes = [2, 16, 128], strides = [1, 1, 1]} : vector<2x32x128xf32> to vector<2x16x128xf32>
    %cst_10 = arith.constant 0.266011745 : f32
    %37 = vector.broadcast %cst_10 : f32 to vector<2x16x128xf32>
    %38 = arith.mulf %37, %36 : vector<2x16x128xf32>
    %39 = vector.extract_strided_slice %35 {offsets = [0, 0, 0], sizes = [2, 16, 128], strides = [1, 1, 1]} : vector<2x32x128xf32> to vector<2x16x128xf32>
    %40 = vector.extract_strided_slice %35 {offsets = [0, 10, 0], sizes = [2, 16, 128], strides = [1, 1, 1]} : vector<2x32x128xf32> to vector<2x16x128xf32>
    %41 = arith.addf %39, %40 : vector<2x16x128xf32>
    %cst_11 = arith.constant 0.00102838024 : f32
    %42 = vector.broadcast %cst_11 : f32 to vector<2x16x128xf32>
    %43 = arith.mulf %42, %41 : vector<2x16x128xf32>
    %44 = arith.addf %38, %43 : vector<2x16x128xf32>
    %45 = vector.extract_strided_slice %35 {offsets = [0, 1, 0], sizes = [2, 16, 128], strides = [1, 1, 1]} : vector<2x32x128xf32> to vector<2x16x128xf32>
    %46 = vector.extract_strided_slice %35 {offsets = [0, 9, 0], sizes = [2, 16, 128], strides = [1, 1, 1]} : vector<2x32x128xf32> to vector<2x16x128xf32>
    %47 = arith.addf %45, %46 : vector<2x16x128xf32>
    %cst_12 = arith.constant 0.00759875868 : f32
    %48 = vector.broadcast %cst_12 : f32 to vector<2x16x128xf32>
    %49 = arith.mulf %48, %47 : vector<2x16x128xf32>
    %50 = arith.addf %44, %49 : vector<2x16x128xf32>
    %51 = vector.extract_strided_slice %35 {offsets = [0, 2, 0], sizes = [2, 16, 128], strides = [1, 1, 1]} : vector<2x32x128xf32> to vector<2x16x128xf32>
    %52 = vector.extract_strided_slice %35 {offsets = [0, 8, 0], sizes = [2, 16, 128], strides = [1, 1, 1]} : vector<2x32x128xf32> to vector<2x16x128xf32>
    %53 = arith.addf %51, %52 : vector<2x16x128xf32>
    %cst_13 = arith.constant 0.0360007733 : f32
    %54 = vector.broadcast %cst_13 : f32 to vector<2x16x128xf32>
    %55 = arith.mulf %54, %53 : vector<2x16x128xf32>
    %56 = arith.addf %50, %55 : vector<2x16x128xf32>
    %57 = vector.extract_strided_slice %35 {offsets = [0, 3, 0], sizes = [2, 16, 128], strides = [1, 1, 1]} : vector<2x32x128xf32> to vector<2x16x128xf32>
    %58 = vector.extract_strided_slice %35 {offsets = [0, 7, 0], sizes = [2, 16, 128], strides = [1, 1, 1]} : vector<2x32x128xf32> to vector<2x16x128xf32>
    %59 = arith.addf %57, %58 : vector<2x16x128xf32>
    %cst_14 = arith.constant 0.109360695 : f32
    %60 = vector.broadcast %cst_14 : f32 to vector<2x16x128xf32>
    %61 = arith.mulf %60, %59 : vector<2x16x128xf32>
    %62 = arith.addf %56, %61 : vector<2x16x128xf32>
    %63 = vector.extract_strided_slice %35 {offsets = [0, 4, 0], sizes = [2, 16, 128], strides = [1, 1, 1]} : vector<2x32x128xf32> to vector<2x16x128xf32>
    %64 = vector.extract_strided_slice %35 {offsets = [0, 6, 0], sizes = [2, 16, 128], strides = [1, 1, 1]} : vector<2x32x128xf32> to vector<2x16x128xf32>
    %65 = arith.addf %63, %64 : vector<2x16x128xf32>
    %cst_15 = arith.constant 0.213005543 : f32
    %66 = vector.broadcast %cst_15 : f32 to vector<2x16x128xf32>
    %67 = arith.mulf %66, %65 : vector<2x16x128xf32>
    %68 = arith.addf %62, %67 : vector<2x16x128xf32>
    %69 = vector.shape_cast %1 : vector<2x32x128xf32> to vector<64x128xf32>
    %cst_16 = arith.constant 0.266011745 : f32
    %70 = vector.broadcast %cst_16 : f32 to vector<64x128xf32>
    %71 = arith.mulf %70, %69 : vector<64x128xf32>
    %c5_i32_17 = arith.constant 5 : i32
    %72 = tpu.dynamic_rotate %69 by %c5_i32_17 dim 1 : vector<64x128xf32>, i32 -> vector<64x128xf32>
    %c123_i32_18 = arith.constant 123 : i32
    %73 = tpu.dynamic_rotate %69 by %c123_i32_18 dim 1 : vector<64x128xf32>, i32 -> vector<64x128xf32>
    %74 = arith.addf %72, %73 : vector<64x128xf32>
    %cst_19 = arith.constant 0.00102838024 : f32
    %75 = vector.broadcast %cst_19 : f32 to vector<64x128xf32>
    %76 = arith.mulf %75, %74 : vector<64x128xf32>
    %77 = arith.addf %71, %76 : vector<64x128xf32>
    %c4_i32_20 = arith.constant 4 : i32
    %78 = tpu.dynamic_rotate %69 by %c4_i32_20 dim 1 : vector<64x128xf32>, i32 -> vector<64x128xf32>
    %c124_i32_21 = arith.constant 124 : i32
    %79 = tpu.dynamic_rotate %69 by %c124_i32_21 dim 1 : vector<64x128xf32>, i32 -> vector<64x128xf32>
    %80 = arith.addf %78, %79 : vector<64x128xf32>
    %cst_22 = arith.constant 0.00759875868 : f32
    %81 = vector.broadcast %cst_22 : f32 to vector<64x128xf32>
    %82 = arith.mulf %81, %80 : vector<64x128xf32>
    %83 = arith.addf %77, %82 : vector<64x128xf32>
    %c3_i32_23 = arith.constant 3 : i32
    %84 = tpu.dynamic_rotate %69 by %c3_i32_23 dim 1 : vector<64x128xf32>, i32 -> vector<64x128xf32>
    %c125_i32_24 = arith.constant 125 : i32
    %85 = tpu.dynamic_rotate %69 by %c125_i32_24 dim 1 : vector<64x128xf32>, i32 -> vector<64x128xf32>
    %86 = arith.addf %84, %85 : vector<64x128xf32>
    %cst_25 = arith.constant 0.0360007733 : f32
    %87 = vector.broadcast %cst_25 : f32 to vector<64x128xf32>
    %88 = arith.mulf %87, %86 : vector<64x128xf32>
    %89 = arith.addf %83, %88 : vector<64x128xf32>
    %c2_i32_26 = arith.constant 2 : i32
    %90 = tpu.dynamic_rotate %69 by %c2_i32_26 dim 1 : vector<64x128xf32>, i32 -> vector<64x128xf32>
    %c126_i32_27 = arith.constant 126 : i32
    %91 = tpu.dynamic_rotate %69 by %c126_i32_27 dim 1 : vector<64x128xf32>, i32 -> vector<64x128xf32>
    %92 = arith.addf %90, %91 : vector<64x128xf32>
    %cst_28 = arith.constant 0.109360695 : f32
    %93 = vector.broadcast %cst_28 : f32 to vector<64x128xf32>
    %94 = arith.mulf %93, %92 : vector<64x128xf32>
    %95 = arith.addf %89, %94 : vector<64x128xf32>
    %c1_i32_29 = arith.constant 1 : i32
    %96 = tpu.dynamic_rotate %69 by %c1_i32_29 dim 1 : vector<64x128xf32>, i32 -> vector<64x128xf32>
    %c127_i32_30 = arith.constant 127 : i32
    %97 = tpu.dynamic_rotate %69 by %c127_i32_30 dim 1 : vector<64x128xf32>, i32 -> vector<64x128xf32>
    %98 = arith.addf %96, %97 : vector<64x128xf32>
    %cst_31 = arith.constant 0.213005543 : f32
    %99 = vector.broadcast %cst_31 : f32 to vector<64x128xf32>
    %100 = arith.mulf %99, %98 : vector<64x128xf32>
    %101 = arith.addf %95, %100 : vector<64x128xf32>
    %102 = vector.shape_cast %101 : vector<64x128xf32> to vector<2x32x128xf32>
    %103 = vector.extract_strided_slice %102 {offsets = [0, 5, 0], sizes = [2, 16, 128], strides = [1, 1, 1]} : vector<2x32x128xf32> to vector<2x16x128xf32>
    %cst_32 = arith.constant 0.266011745 : f32
    %104 = vector.broadcast %cst_32 : f32 to vector<2x16x128xf32>
    %105 = arith.mulf %104, %103 : vector<2x16x128xf32>
    %106 = vector.extract_strided_slice %102 {offsets = [0, 0, 0], sizes = [2, 16, 128], strides = [1, 1, 1]} : vector<2x32x128xf32> to vector<2x16x128xf32>
    %107 = vector.extract_strided_slice %102 {offsets = [0, 10, 0], sizes = [2, 16, 128], strides = [1, 1, 1]} : vector<2x32x128xf32> to vector<2x16x128xf32>
    %108 = arith.addf %106, %107 : vector<2x16x128xf32>
    %cst_33 = arith.constant 0.00102838024 : f32
    %109 = vector.broadcast %cst_33 : f32 to vector<2x16x128xf32>
    %110 = arith.mulf %109, %108 : vector<2x16x128xf32>
    %111 = arith.addf %105, %110 : vector<2x16x128xf32>
    %112 = vector.extract_strided_slice %102 {offsets = [0, 1, 0], sizes = [2, 16, 128], strides = [1, 1, 1]} : vector<2x32x128xf32> to vector<2x16x128xf32>
    %113 = vector.extract_strided_slice %102 {offsets = [0, 9, 0], sizes = [2, 16, 128], strides = [1, 1, 1]} : vector<2x32x128xf32> to vector<2x16x128xf32>
    %114 = arith.addf %112, %113 : vector<2x16x128xf32>
    %cst_34 = arith.constant 0.00759875868 : f32
    %115 = vector.broadcast %cst_34 : f32 to vector<2x16x128xf32>
    %116 = arith.mulf %115, %114 : vector<2x16x128xf32>
    %117 = arith.addf %111, %116 : vector<2x16x128xf32>
    %118 = vector.extract_strided_slice %102 {offsets = [0, 2, 0], sizes = [2, 16, 128], strides = [1, 1, 1]} : vector<2x32x128xf32> to vector<2x16x128xf32>
    %119 = vector.extract_strided_slice %102 {offsets = [0, 8, 0], sizes = [2, 16, 128], strides = [1, 1, 1]} : vector<2x32x128xf32> to vector<2x16x128xf32>
    %120 = arith.addf %118, %119 : vector<2x16x128xf32>
    %cst_35 = arith.constant 0.0360007733 : f32
    %121 = vector.broadcast %cst_35 : f32 to vector<2x16x128xf32>
    %122 = arith.mulf %121, %120 : vector<2x16x128xf32>
    %123 = arith.addf %117, %122 : vector<2x16x128xf32>
    %124 = vector.extract_strided_slice %102 {offsets = [0, 3, 0], sizes = [2, 16, 128], strides = [1, 1, 1]} : vector<2x32x128xf32> to vector<2x16x128xf32>
    %125 = vector.extract_strided_slice %102 {offsets = [0, 7, 0], sizes = [2, 16, 128], strides = [1, 1, 1]} : vector<2x32x128xf32> to vector<2x16x128xf32>
    %126 = arith.addf %124, %125 : vector<2x16x128xf32>
    %cst_36 = arith.constant 0.109360695 : f32
    %127 = vector.broadcast %cst_36 : f32 to vector<2x16x128xf32>
    %128 = arith.mulf %127, %126 : vector<2x16x128xf32>
    %129 = arith.addf %123, %128 : vector<2x16x128xf32>
    %130 = vector.extract_strided_slice %102 {offsets = [0, 4, 0], sizes = [2, 16, 128], strides = [1, 1, 1]} : vector<2x32x128xf32> to vector<2x16x128xf32>
    %131 = vector.extract_strided_slice %102 {offsets = [0, 6, 0], sizes = [2, 16, 128], strides = [1, 1, 1]} : vector<2x32x128xf32> to vector<2x16x128xf32>
    %132 = arith.addf %130, %131 : vector<2x16x128xf32>
    %cst_37 = arith.constant 0.213005543 : f32
    %133 = vector.broadcast %cst_37 : f32 to vector<2x16x128xf32>
    %134 = arith.mulf %133, %132 : vector<2x16x128xf32>
    %135 = arith.addf %129, %134 : vector<2x16x128xf32>
    %136 = arith.mulf %0, %0 : vector<2x32x128xf32>
    %137 = vector.shape_cast %136 : vector<2x32x128xf32> to vector<64x128xf32>
    %cst_38 = arith.constant 0.266011745 : f32
    %138 = vector.broadcast %cst_38 : f32 to vector<64x128xf32>
    %139 = arith.mulf %138, %137 : vector<64x128xf32>
    %c5_i32_39 = arith.constant 5 : i32
    %140 = tpu.dynamic_rotate %137 by %c5_i32_39 dim 1 : vector<64x128xf32>, i32 -> vector<64x128xf32>
    %c123_i32_40 = arith.constant 123 : i32
    %141 = tpu.dynamic_rotate %137 by %c123_i32_40 dim 1 : vector<64x128xf32>, i32 -> vector<64x128xf32>
    %142 = arith.addf %140, %141 : vector<64x128xf32>
    %cst_41 = arith.constant 0.00102838024 : f32
    %143 = vector.broadcast %cst_41 : f32 to vector<64x128xf32>
    %144 = arith.mulf %143, %142 : vector<64x128xf32>
    %145 = arith.addf %139, %144 : vector<64x128xf32>
    %c4_i32_42 = arith.constant 4 : i32
    %146 = tpu.dynamic_rotate %137 by %c4_i32_42 dim 1 : vector<64x128xf32>, i32 -> vector<64x128xf32>
    %c124_i32_43 = arith.constant 124 : i32
    %147 = tpu.dynamic_rotate %137 by %c124_i32_43 dim 1 : vector<64x128xf32>, i32 -> vector<64x128xf32>
    %148 = arith.addf %146, %147 : vector<64x128xf32>
    %cst_44 = arith.constant 0.00759875868 : f32
    %149 = vector.broadcast %cst_44 : f32 to vector<64x128xf32>
    %150 = arith.mulf %149, %148 : vector<64x128xf32>
    %151 = arith.addf %145, %150 : vector<64x128xf32>
    %c3_i32_45 = arith.constant 3 : i32
    %152 = tpu.dynamic_rotate %137 by %c3_i32_45 dim 1 : vector<64x128xf32>, i32 -> vector<64x128xf32>
    %c125_i32_46 = arith.constant 125 : i32
    %153 = tpu.dynamic_rotate %137 by %c125_i32_46 dim 1 : vector<64x128xf32>, i32 -> vector<64x128xf32>
    %154 = arith.addf %152, %153 : vector<64x128xf32>
    %cst_47 = arith.constant 0.0360007733 : f32
    %155 = vector.broadcast %cst_47 : f32 to vector<64x128xf32>
    %156 = arith.mulf %155, %154 : vector<64x128xf32>
    %157 = arith.addf %151, %156 : vector<64x128xf32>
    %c2_i32_48 = arith.constant 2 : i32
    %158 = tpu.dynamic_rotate %137 by %c2_i32_48 dim 1 : vector<64x128xf32>, i32 -> vector<64x128xf32>
    %c126_i32_49 = arith.constant 126 : i32
    %159 = tpu.dynamic_rotate %137 by %c126_i32_49 dim 1 : vector<64x128xf32>, i32 -> vector<64x128xf32>
    %160 = arith.addf %158, %159 : vector<64x128xf32>
    %cst_50 = arith.constant 0.109360695 : f32
    %161 = vector.broadcast %cst_50 : f32 to vector<64x128xf32>
    %162 = arith.mulf %161, %160 : vector<64x128xf32>
    %163 = arith.addf %157, %162 : vector<64x128xf32>
    %c1_i32_51 = arith.constant 1 : i32
    %164 = tpu.dynamic_rotate %137 by %c1_i32_51 dim 1 : vector<64x128xf32>, i32 -> vector<64x128xf32>
    %c127_i32_52 = arith.constant 127 : i32
    %165 = tpu.dynamic_rotate %137 by %c127_i32_52 dim 1 : vector<64x128xf32>, i32 -> vector<64x128xf32>
    %166 = arith.addf %164, %165 : vector<64x128xf32>
    %cst_53 = arith.constant 0.213005543 : f32
    %167 = vector.broadcast %cst_53 : f32 to vector<64x128xf32>
    %168 = arith.mulf %167, %166 : vector<64x128xf32>
    %169 = arith.addf %163, %168 : vector<64x128xf32>
    %170 = vector.shape_cast %169 : vector<64x128xf32> to vector<2x32x128xf32>
    %171 = vector.extract_strided_slice %170 {offsets = [0, 5, 0], sizes = [2, 16, 128], strides = [1, 1, 1]} : vector<2x32x128xf32> to vector<2x16x128xf32>
    %cst_54 = arith.constant 0.266011745 : f32
    %172 = vector.broadcast %cst_54 : f32 to vector<2x16x128xf32>
    %173 = arith.mulf %172, %171 : vector<2x16x128xf32>
    %174 = vector.extract_strided_slice %170 {offsets = [0, 0, 0], sizes = [2, 16, 128], strides = [1, 1, 1]} : vector<2x32x128xf32> to vector<2x16x128xf32>
    %175 = vector.extract_strided_slice %170 {offsets = [0, 10, 0], sizes = [2, 16, 128], strides = [1, 1, 1]} : vector<2x32x128xf32> to vector<2x16x128xf32>
    %176 = arith.addf %174, %175 : vector<2x16x128xf32>
    %cst_55 = arith.constant 0.00102838024 : f32
    %177 = vector.broadcast %cst_55 : f32 to vector<2x16x128xf32>
    %178 = arith.mulf %177, %176 : vector<2x16x128xf32>
    %179 = arith.addf %173, %178 : vector<2x16x128xf32>
    %180 = vector.extract_strided_slice %170 {offsets = [0, 1, 0], sizes = [2, 16, 128], strides = [1, 1, 1]} : vector<2x32x128xf32> to vector<2x16x128xf32>
    %181 = vector.extract_strided_slice %170 {offsets = [0, 9, 0], sizes = [2, 16, 128], strides = [1, 1, 1]} : vector<2x32x128xf32> to vector<2x16x128xf32>
    %182 = arith.addf %180, %181 : vector<2x16x128xf32>
    %cst_56 = arith.constant 0.00759875868 : f32
    %183 = vector.broadcast %cst_56 : f32 to vector<2x16x128xf32>
    %184 = arith.mulf %183, %182 : vector<2x16x128xf32>
    %185 = arith.addf %179, %184 : vector<2x16x128xf32>
    %186 = vector.extract_strided_slice %170 {offsets = [0, 2, 0], sizes = [2, 16, 128], strides = [1, 1, 1]} : vector<2x32x128xf32> to vector<2x16x128xf32>
    %187 = vector.extract_strided_slice %170 {offsets = [0, 8, 0], sizes = [2, 16, 128], strides = [1, 1, 1]} : vector<2x32x128xf32> to vector<2x16x128xf32>
    %188 = arith.addf %186, %187 : vector<2x16x128xf32>
    %cst_57 = arith.constant 0.0360007733 : f32
    %189 = vector.broadcast %cst_57 : f32 to vector<2x16x128xf32>
    %190 = arith.mulf %189, %188 : vector<2x16x128xf32>
    %191 = arith.addf %185, %190 : vector<2x16x128xf32>
    %192 = vector.extract_strided_slice %170 {offsets = [0, 3, 0], sizes = [2, 16, 128], strides = [1, 1, 1]} : vector<2x32x128xf32> to vector<2x16x128xf32>
    %193 = vector.extract_strided_slice %170 {offsets = [0, 7, 0], sizes = [2, 16, 128], strides = [1, 1, 1]} : vector<2x32x128xf32> to vector<2x16x128xf32>
    %194 = arith.addf %192, %193 : vector<2x16x128xf32>
    %cst_58 = arith.constant 0.109360695 : f32
    %195 = vector.broadcast %cst_58 : f32 to vector<2x16x128xf32>
    %196 = arith.mulf %195, %194 : vector<2x16x128xf32>
    %197 = arith.addf %191, %196 : vector<2x16x128xf32>
    %198 = vector.extract_strided_slice %170 {offsets = [0, 4, 0], sizes = [2, 16, 128], strides = [1, 1, 1]} : vector<2x32x128xf32> to vector<2x16x128xf32>
    %199 = vector.extract_strided_slice %170 {offsets = [0, 6, 0], sizes = [2, 16, 128], strides = [1, 1, 1]} : vector<2x32x128xf32> to vector<2x16x128xf32>
    %200 = arith.addf %198, %199 : vector<2x16x128xf32>
    %cst_59 = arith.constant 0.213005543 : f32
    %201 = vector.broadcast %cst_59 : f32 to vector<2x16x128xf32>
    %202 = arith.mulf %201, %200 : vector<2x16x128xf32>
    %203 = arith.addf %197, %202 : vector<2x16x128xf32>
    %204 = arith.mulf %1, %1 : vector<2x32x128xf32>
    %205 = vector.shape_cast %204 : vector<2x32x128xf32> to vector<64x128xf32>
    %cst_60 = arith.constant 0.266011745 : f32
    %206 = vector.broadcast %cst_60 : f32 to vector<64x128xf32>
    %207 = arith.mulf %206, %205 : vector<64x128xf32>
    %c5_i32_61 = arith.constant 5 : i32
    %208 = tpu.dynamic_rotate %205 by %c5_i32_61 dim 1 : vector<64x128xf32>, i32 -> vector<64x128xf32>
    %c123_i32_62 = arith.constant 123 : i32
    %209 = tpu.dynamic_rotate %205 by %c123_i32_62 dim 1 : vector<64x128xf32>, i32 -> vector<64x128xf32>
    %210 = arith.addf %208, %209 : vector<64x128xf32>
    %cst_63 = arith.constant 0.00102838024 : f32
    %211 = vector.broadcast %cst_63 : f32 to vector<64x128xf32>
    %212 = arith.mulf %211, %210 : vector<64x128xf32>
    %213 = arith.addf %207, %212 : vector<64x128xf32>
    %c4_i32_64 = arith.constant 4 : i32
    %214 = tpu.dynamic_rotate %205 by %c4_i32_64 dim 1 : vector<64x128xf32>, i32 -> vector<64x128xf32>
    %c124_i32_65 = arith.constant 124 : i32
    %215 = tpu.dynamic_rotate %205 by %c124_i32_65 dim 1 : vector<64x128xf32>, i32 -> vector<64x128xf32>
    %216 = arith.addf %214, %215 : vector<64x128xf32>
    %cst_66 = arith.constant 0.00759875868 : f32
    %217 = vector.broadcast %cst_66 : f32 to vector<64x128xf32>
    %218 = arith.mulf %217, %216 : vector<64x128xf32>
    %219 = arith.addf %213, %218 : vector<64x128xf32>
    %c3_i32_67 = arith.constant 3 : i32
    %220 = tpu.dynamic_rotate %205 by %c3_i32_67 dim 1 : vector<64x128xf32>, i32 -> vector<64x128xf32>
    %c125_i32_68 = arith.constant 125 : i32
    %221 = tpu.dynamic_rotate %205 by %c125_i32_68 dim 1 : vector<64x128xf32>, i32 -> vector<64x128xf32>
    %222 = arith.addf %220, %221 : vector<64x128xf32>
    %cst_69 = arith.constant 0.0360007733 : f32
    %223 = vector.broadcast %cst_69 : f32 to vector<64x128xf32>
    %224 = arith.mulf %223, %222 : vector<64x128xf32>
    %225 = arith.addf %219, %224 : vector<64x128xf32>
    %c2_i32_70 = arith.constant 2 : i32
    %226 = tpu.dynamic_rotate %205 by %c2_i32_70 dim 1 : vector<64x128xf32>, i32 -> vector<64x128xf32>
    %c126_i32_71 = arith.constant 126 : i32
    %227 = tpu.dynamic_rotate %205 by %c126_i32_71 dim 1 : vector<64x128xf32>, i32 -> vector<64x128xf32>
    %228 = arith.addf %226, %227 : vector<64x128xf32>
    %cst_72 = arith.constant 0.109360695 : f32
    %229 = vector.broadcast %cst_72 : f32 to vector<64x128xf32>
    %230 = arith.mulf %229, %228 : vector<64x128xf32>
    %231 = arith.addf %225, %230 : vector<64x128xf32>
    %c1_i32_73 = arith.constant 1 : i32
    %232 = tpu.dynamic_rotate %205 by %c1_i32_73 dim 1 : vector<64x128xf32>, i32 -> vector<64x128xf32>
    %c127_i32_74 = arith.constant 127 : i32
    %233 = tpu.dynamic_rotate %205 by %c127_i32_74 dim 1 : vector<64x128xf32>, i32 -> vector<64x128xf32>
    %234 = arith.addf %232, %233 : vector<64x128xf32>
    %cst_75 = arith.constant 0.213005543 : f32
    %235 = vector.broadcast %cst_75 : f32 to vector<64x128xf32>
    %236 = arith.mulf %235, %234 : vector<64x128xf32>
    %237 = arith.addf %231, %236 : vector<64x128xf32>
    %238 = vector.shape_cast %237 : vector<64x128xf32> to vector<2x32x128xf32>
    %239 = vector.extract_strided_slice %238 {offsets = [0, 5, 0], sizes = [2, 16, 128], strides = [1, 1, 1]} : vector<2x32x128xf32> to vector<2x16x128xf32>
    %cst_76 = arith.constant 0.266011745 : f32
    %240 = vector.broadcast %cst_76 : f32 to vector<2x16x128xf32>
    %241 = arith.mulf %240, %239 : vector<2x16x128xf32>
    %242 = vector.extract_strided_slice %238 {offsets = [0, 0, 0], sizes = [2, 16, 128], strides = [1, 1, 1]} : vector<2x32x128xf32> to vector<2x16x128xf32>
    %243 = vector.extract_strided_slice %238 {offsets = [0, 10, 0], sizes = [2, 16, 128], strides = [1, 1, 1]} : vector<2x32x128xf32> to vector<2x16x128xf32>
    %244 = arith.addf %242, %243 : vector<2x16x128xf32>
    %cst_77 = arith.constant 0.00102838024 : f32
    %245 = vector.broadcast %cst_77 : f32 to vector<2x16x128xf32>
    %246 = arith.mulf %245, %244 : vector<2x16x128xf32>
    %247 = arith.addf %241, %246 : vector<2x16x128xf32>
    %248 = vector.extract_strided_slice %238 {offsets = [0, 1, 0], sizes = [2, 16, 128], strides = [1, 1, 1]} : vector<2x32x128xf32> to vector<2x16x128xf32>
    %249 = vector.extract_strided_slice %238 {offsets = [0, 9, 0], sizes = [2, 16, 128], strides = [1, 1, 1]} : vector<2x32x128xf32> to vector<2x16x128xf32>
    %250 = arith.addf %248, %249 : vector<2x16x128xf32>
    %cst_78 = arith.constant 0.00759875868 : f32
    %251 = vector.broadcast %cst_78 : f32 to vector<2x16x128xf32>
    %252 = arith.mulf %251, %250 : vector<2x16x128xf32>
    %253 = arith.addf %247, %252 : vector<2x16x128xf32>
    %254 = vector.extract_strided_slice %238 {offsets = [0, 2, 0], sizes = [2, 16, 128], strides = [1, 1, 1]} : vector<2x32x128xf32> to vector<2x16x128xf32>
    %255 = vector.extract_strided_slice %238 {offsets = [0, 8, 0], sizes = [2, 16, 128], strides = [1, 1, 1]} : vector<2x32x128xf32> to vector<2x16x128xf32>
    %256 = arith.addf %254, %255 : vector<2x16x128xf32>
    %cst_79 = arith.constant 0.0360007733 : f32
    %257 = vector.broadcast %cst_79 : f32 to vector<2x16x128xf32>
    %258 = arith.mulf %257, %256 : vector<2x16x128xf32>
    %259 = arith.addf %253, %258 : vector<2x16x128xf32>
    %260 = vector.extract_strided_slice %238 {offsets = [0, 3, 0], sizes = [2, 16, 128], strides = [1, 1, 1]} : vector<2x32x128xf32> to vector<2x16x128xf32>
    %261 = vector.extract_strided_slice %238 {offsets = [0, 7, 0], sizes = [2, 16, 128], strides = [1, 1, 1]} : vector<2x32x128xf32> to vector<2x16x128xf32>
    %262 = arith.addf %260, %261 : vector<2x16x128xf32>
    %cst_80 = arith.constant 0.109360695 : f32
    %263 = vector.broadcast %cst_80 : f32 to vector<2x16x128xf32>
    %264 = arith.mulf %263, %262 : vector<2x16x128xf32>
    %265 = arith.addf %259, %264 : vector<2x16x128xf32>
    %266 = vector.extract_strided_slice %238 {offsets = [0, 4, 0], sizes = [2, 16, 128], strides = [1, 1, 1]} : vector<2x32x128xf32> to vector<2x16x128xf32>
    %267 = vector.extract_strided_slice %238 {offsets = [0, 6, 0], sizes = [2, 16, 128], strides = [1, 1, 1]} : vector<2x32x128xf32> to vector<2x16x128xf32>
    %268 = arith.addf %266, %267 : vector<2x16x128xf32>
    %cst_81 = arith.constant 0.213005543 : f32
    %269 = vector.broadcast %cst_81 : f32 to vector<2x16x128xf32>
    %270 = arith.mulf %269, %268 : vector<2x16x128xf32>
    %271 = arith.addf %265, %270 : vector<2x16x128xf32>
    %272 = arith.mulf %0, %1 : vector<2x32x128xf32>
    %273 = vector.shape_cast %272 : vector<2x32x128xf32> to vector<64x128xf32>
    %cst_82 = arith.constant 0.266011745 : f32
    %274 = vector.broadcast %cst_82 : f32 to vector<64x128xf32>
    %275 = arith.mulf %274, %273 : vector<64x128xf32>
    %c5_i32_83 = arith.constant 5 : i32
    %276 = tpu.dynamic_rotate %273 by %c5_i32_83 dim 1 : vector<64x128xf32>, i32 -> vector<64x128xf32>
    %c123_i32_84 = arith.constant 123 : i32
    %277 = tpu.dynamic_rotate %273 by %c123_i32_84 dim 1 : vector<64x128xf32>, i32 -> vector<64x128xf32>
    %278 = arith.addf %276, %277 : vector<64x128xf32>
    %cst_85 = arith.constant 0.00102838024 : f32
    %279 = vector.broadcast %cst_85 : f32 to vector<64x128xf32>
    %280 = arith.mulf %279, %278 : vector<64x128xf32>
    %281 = arith.addf %275, %280 : vector<64x128xf32>
    %c4_i32_86 = arith.constant 4 : i32
    %282 = tpu.dynamic_rotate %273 by %c4_i32_86 dim 1 : vector<64x128xf32>, i32 -> vector<64x128xf32>
    %c124_i32_87 = arith.constant 124 : i32
    %283 = tpu.dynamic_rotate %273 by %c124_i32_87 dim 1 : vector<64x128xf32>, i32 -> vector<64x128xf32>
    %284 = arith.addf %282, %283 : vector<64x128xf32>
    %cst_88 = arith.constant 0.00759875868 : f32
    %285 = vector.broadcast %cst_88 : f32 to vector<64x128xf32>
    %286 = arith.mulf %285, %284 : vector<64x128xf32>
    %287 = arith.addf %281, %286 : vector<64x128xf32>
    %c3_i32_89 = arith.constant 3 : i32
    %288 = tpu.dynamic_rotate %273 by %c3_i32_89 dim 1 : vector<64x128xf32>, i32 -> vector<64x128xf32>
    %c125_i32_90 = arith.constant 125 : i32
    %289 = tpu.dynamic_rotate %273 by %c125_i32_90 dim 1 : vector<64x128xf32>, i32 -> vector<64x128xf32>
    %290 = arith.addf %288, %289 : vector<64x128xf32>
    %cst_91 = arith.constant 0.0360007733 : f32
    %291 = vector.broadcast %cst_91 : f32 to vector<64x128xf32>
    %292 = arith.mulf %291, %290 : vector<64x128xf32>
    %293 = arith.addf %287, %292 : vector<64x128xf32>
    %c2_i32_92 = arith.constant 2 : i32
    %294 = tpu.dynamic_rotate %273 by %c2_i32_92 dim 1 : vector<64x128xf32>, i32 -> vector<64x128xf32>
    %c126_i32_93 = arith.constant 126 : i32
    %295 = tpu.dynamic_rotate %273 by %c126_i32_93 dim 1 : vector<64x128xf32>, i32 -> vector<64x128xf32>
    %296 = arith.addf %294, %295 : vector<64x128xf32>
    %cst_94 = arith.constant 0.109360695 : f32
    %297 = vector.broadcast %cst_94 : f32 to vector<64x128xf32>
    %298 = arith.mulf %297, %296 : vector<64x128xf32>
    %299 = arith.addf %293, %298 : vector<64x128xf32>
    %c1_i32_95 = arith.constant 1 : i32
    %300 = tpu.dynamic_rotate %273 by %c1_i32_95 dim 1 : vector<64x128xf32>, i32 -> vector<64x128xf32>
    %c127_i32_96 = arith.constant 127 : i32
    %301 = tpu.dynamic_rotate %273 by %c127_i32_96 dim 1 : vector<64x128xf32>, i32 -> vector<64x128xf32>
    %302 = arith.addf %300, %301 : vector<64x128xf32>
    %cst_97 = arith.constant 0.213005543 : f32
    %303 = vector.broadcast %cst_97 : f32 to vector<64x128xf32>
    %304 = arith.mulf %303, %302 : vector<64x128xf32>
    %305 = arith.addf %299, %304 : vector<64x128xf32>
    %306 = vector.shape_cast %305 : vector<64x128xf32> to vector<2x32x128xf32>
    %307 = vector.extract_strided_slice %306 {offsets = [0, 5, 0], sizes = [2, 16, 128], strides = [1, 1, 1]} : vector<2x32x128xf32> to vector<2x16x128xf32>
    %cst_98 = arith.constant 0.266011745 : f32
    %308 = vector.broadcast %cst_98 : f32 to vector<2x16x128xf32>
    %309 = arith.mulf %308, %307 : vector<2x16x128xf32>
    %310 = vector.extract_strided_slice %306 {offsets = [0, 0, 0], sizes = [2, 16, 128], strides = [1, 1, 1]} : vector<2x32x128xf32> to vector<2x16x128xf32>
    %311 = vector.extract_strided_slice %306 {offsets = [0, 10, 0], sizes = [2, 16, 128], strides = [1, 1, 1]} : vector<2x32x128xf32> to vector<2x16x128xf32>
    %312 = arith.addf %310, %311 : vector<2x16x128xf32>
    %cst_99 = arith.constant 0.00102838024 : f32
    %313 = vector.broadcast %cst_99 : f32 to vector<2x16x128xf32>
    %314 = arith.mulf %313, %312 : vector<2x16x128xf32>
    %315 = arith.addf %309, %314 : vector<2x16x128xf32>
    %316 = vector.extract_strided_slice %306 {offsets = [0, 1, 0], sizes = [2, 16, 128], strides = [1, 1, 1]} : vector<2x32x128xf32> to vector<2x16x128xf32>
    %317 = vector.extract_strided_slice %306 {offsets = [0, 9, 0], sizes = [2, 16, 128], strides = [1, 1, 1]} : vector<2x32x128xf32> to vector<2x16x128xf32>
    %318 = arith.addf %316, %317 : vector<2x16x128xf32>
    %cst_100 = arith.constant 0.00759875868 : f32
    %319 = vector.broadcast %cst_100 : f32 to vector<2x16x128xf32>
    %320 = arith.mulf %319, %318 : vector<2x16x128xf32>
    %321 = arith.addf %315, %320 : vector<2x16x128xf32>
    %322 = vector.extract_strided_slice %306 {offsets = [0, 2, 0], sizes = [2, 16, 128], strides = [1, 1, 1]} : vector<2x32x128xf32> to vector<2x16x128xf32>
    %323 = vector.extract_strided_slice %306 {offsets = [0, 8, 0], sizes = [2, 16, 128], strides = [1, 1, 1]} : vector<2x32x128xf32> to vector<2x16x128xf32>
    %324 = arith.addf %322, %323 : vector<2x16x128xf32>
    %cst_101 = arith.constant 0.0360007733 : f32
    %325 = vector.broadcast %cst_101 : f32 to vector<2x16x128xf32>
    %326 = arith.mulf %325, %324 : vector<2x16x128xf32>
    %327 = arith.addf %321, %326 : vector<2x16x128xf32>
    %328 = vector.extract_strided_slice %306 {offsets = [0, 3, 0], sizes = [2, 16, 128], strides = [1, 1, 1]} : vector<2x32x128xf32> to vector<2x16x128xf32>
    %329 = vector.extract_strided_slice %306 {offsets = [0, 7, 0], sizes = [2, 16, 128], strides = [1, 1, 1]} : vector<2x32x128xf32> to vector<2x16x128xf32>
    %330 = arith.addf %328, %329 : vector<2x16x128xf32>
    %cst_102 = arith.constant 0.109360695 : f32
    %331 = vector.broadcast %cst_102 : f32 to vector<2x16x128xf32>
    %332 = arith.mulf %331, %330 : vector<2x16x128xf32>
    %333 = arith.addf %327, %332 : vector<2x16x128xf32>
    %334 = vector.extract_strided_slice %306 {offsets = [0, 4, 0], sizes = [2, 16, 128], strides = [1, 1, 1]} : vector<2x32x128xf32> to vector<2x16x128xf32>
    %335 = vector.extract_strided_slice %306 {offsets = [0, 6, 0], sizes = [2, 16, 128], strides = [1, 1, 1]} : vector<2x32x128xf32> to vector<2x16x128xf32>
    %336 = arith.addf %334, %335 : vector<2x16x128xf32>
    %cst_103 = arith.constant 0.213005543 : f32
    %337 = vector.broadcast %cst_103 : f32 to vector<2x16x128xf32>
    %338 = arith.mulf %337, %336 : vector<2x16x128xf32>
    %339 = arith.addf %333, %338 : vector<2x16x128xf32>
    %c0_104 = arith.constant 0 : index
    %340 = memref.load %arg1[%c0_104] : memref<2xf32, #tpu.memory_space<smem>>
    %c1 = arith.constant 1 : index
    %341 = memref.load %arg1[%c1] : memref<2xf32, #tpu.memory_space<smem>>
    %342 = arith.mulf %68, %68 : vector<2x16x128xf32>
    %343 = arith.mulf %135, %135 : vector<2x16x128xf32>
    %344 = arith.mulf %68, %135 : vector<2x16x128xf32>
    %345 = arith.subf %203, %342 : vector<2x16x128xf32>
    %346 = arith.subf %271, %343 : vector<2x16x128xf32>
    %347 = arith.subf %339, %344 : vector<2x16x128xf32>
    %cst_105 = arith.constant 2.000000e+00 : f32
    %348 = vector.broadcast %cst_105 : f32 to vector<2x16x128xf32>
    %349 = arith.mulf %348, %347 : vector<2x16x128xf32>
    %350 = vector.broadcast %341 : f32 to vector<2x16x128xf32>
    %351 = arith.addf %349, %350 : vector<2x16x128xf32>
    %352 = arith.addf %345, %346 : vector<2x16x128xf32>
    %353 = vector.broadcast %341 : f32 to vector<2x16x128xf32>
    %354 = arith.addf %352, %353 : vector<2x16x128xf32>
    %cst_106 = arith.constant 2.000000e+00 : f32
    %355 = vector.broadcast %cst_106 : f32 to vector<2x16x128xf32>
    %356 = arith.mulf %355, %344 : vector<2x16x128xf32>
    %357 = vector.broadcast %340 : f32 to vector<2x16x128xf32>
    %358 = arith.addf %356, %357 : vector<2x16x128xf32>
    %359 = arith.mulf %358, %351 : vector<2x16x128xf32>
    %360 = arith.addf %342, %343 : vector<2x16x128xf32>
    %361 = vector.broadcast %340 : f32 to vector<2x16x128xf32>
    %362 = arith.addf %360, %361 : vector<2x16x128xf32>
    %363 = arith.mulf %362, %354 : vector<2x16x128xf32>
    %364 = arith.divf %359, %363 : vector<2x16x128xf32>
    %365 = tpu.iota {dimensions = array<i32: 2>} : vector<2x16x128xi32>
    %c5_i32_107 = arith.constant 5 : i32
    %366 = vector.broadcast %c5_i32_107 : i32 to vector<2x16x128xi32>
    %367 = arith.cmpi sge, %365, %366 : vector<2x16x128xi32>
    %c21_i32 = arith.constant 21 : i32
    %368 = vector.broadcast %c21_i32 : i32 to vector<2x16x128xi32>
    %369 = arith.cmpi slt, %365, %368 : vector<2x16x128xi32>
    %370 = arith.andi %367, %369 : vector<2x16x128xi1>
    %c31_i32 = arith.constant 31 : i32
    %371 = vector.broadcast %c31_i32 : i32 to vector<2x16x128xi32>
    %372 = arith.cmpi sge, %365, %371 : vector<2x16x128xi32>
    %c47_i32 = arith.constant 47 : i32
    %373 = vector.broadcast %c47_i32 : i32 to vector<2x16x128xi32>
    %374 = arith.cmpi slt, %365, %373 : vector<2x16x128xi32>
    %375 = arith.andi %372, %374 : vector<2x16x128xi1>
    %376 = arith.ori %370, %375 : vector<2x16x128xi1>
    %c57_i32 = arith.constant 57 : i32
    %377 = vector.broadcast %c57_i32 : i32 to vector<2x16x128xi32>
    %378 = arith.cmpi sge, %365, %377 : vector<2x16x128xi32>
    %c73_i32 = arith.constant 73 : i32
    %379 = vector.broadcast %c73_i32 : i32 to vector<2x16x128xi32>
    %380 = arith.cmpi slt, %365, %379 : vector<2x16x128xi32>
    %381 = arith.andi %378, %380 : vector<2x16x128xi1>
    %382 = arith.ori %376, %381 : vector<2x16x128xi1>
    %c83_i32 = arith.constant 83 : i32
    %383 = vector.broadcast %c83_i32 : i32 to vector<2x16x128xi32>
    %384 = arith.cmpi sge, %365, %383 : vector<2x16x128xi32>
    %c99_i32 = arith.constant 99 : i32
    %385 = vector.broadcast %c99_i32 : i32 to vector<2x16x128xi32>
    %386 = arith.cmpi slt, %365, %385 : vector<2x16x128xi32>
    %387 = arith.andi %384, %386 : vector<2x16x128xi1>
    %388 = arith.ori %382, %387 : vector<2x16x128xi1>
    %cst_108 = arith.constant 0.000000e+00 : f32
    %389 = vector.broadcast %cst_108 : f32 to vector<2x16x128xf32>
    %390 = arith.select %388, %364, %389 : vector<2x16x128xi1>, vector<2x16x128xf32>
    %cst_109 = arith.constant dense<0.000000e+00> : vector<16x128xf32>
    %391 = vector.multi_reduction <add>, %390, %cst_109 [0] : vector<2x16x128xf32> to vector<16x128xf32>
    %cst_110 = arith.constant dense<0.000000e+00> : vector<128xf32>
    %392 = vector.multi_reduction <add>, %391, %cst_110 [0] : vector<16x128xf32> to vector<128xf32>
    %393 = tpu.iota {dimensions = array<i32: 0>} : vector<8x128xi32>
    %c0_i32 = arith.constant 0 : i32
    %394 = vector.broadcast %c0_i32 : i32 to vector<8x128xi32>
    %395 = arith.cmpi eq, %393, %394 : vector<8x128xi32>
    %396 = vector.shape_cast %392 : vector<128xf32> to vector<1x128xf32>
    %397 = vector.shape_cast %396 : vector<1x128xf32> to vector<1x128xf32>
    %398 = vector.broadcast %397 : vector<1x128xf32> to vector<8x128xf32>
    %cst_111 = arith.constant 0.000000e+00 : f32
    %399 = vector.broadcast %cst_111 : f32 to vector<8x128xf32>
    %400 = arith.select %395, %398, %399 : vector<8x128xi1>, vector<8x128xf32>
    %401 = vector.shape_cast %400 : vector<8x128xf32> to vector<1x8x128xf32>
    %c0_112 = arith.constant 0 : index
    %c0_113 = arith.constant 0 : index
    %c0_114 = arith.constant 0 : index
    %402 = vector.load %arg4[%c0_112, %c0_113, %c0_114] : memref<1x8x128xf32, #tpu.memory_space<vmem>>, vector<1x8x128xf32>
    tpu.vector_store %arg4[%c0_112, %c0_113, %c0_114], %401 {strides = array<i32>} : memref<1x8x128xf32, #tpu.memory_space<vmem>>, vector<1x8x128xf32>,
    return
  }
  func.func @transform_0(%arg0: i32) -> i32 {
    %c0_i32 = arith.constant 0 : i32
    %c0_i32_0 = arith.constant 0 : i32
    return %c0_i32 : i32
  }
  func.func @transform_1(%arg0: i32) -> (i32, i32, i32) {
    %c0_i32 = arith.constant 0 : i32
    %c0_i32_0 = arith.constant 0 : i32
    %c0_i32_1 = arith.constant 0 : i32
    return %arg0, %c0_i32, %c0_i32_0 : i32, i32, i32
  }
  func.func @transform_2(%arg0: i32) -> (i32, i32, i32) {
    %c0_i32 = arith.constant 0 : i32
    %c0_i32_0 = arith.constant 0 : i32
    %c0_i32_1 = arith.constant 0 : i32
    return %arg0, %c0_i32, %c0_i32_0 : i32, i32, i32
  }
  func.func @transform_3(%arg0: i32) -> (i32, i32, i32) {
    %c0_i32 = arith.constant 0 : i32
    %c0_i32_0 = arith.constant 0 : i32
    %c0_i32_1 = arith.constant 0 : i32
    return %arg0, %c0_i32, %c0_i32_0 : i32, i32, i32
  }
}

</mosaic_0001>

<llo_original>
// kernel: ssim_loss.1
$region0: #{ssim_loss.1}
  #allocation0 [shape = 'u32[]', space=smem, size = 0x4, offset = 0x4, fixed_abs, tag = 'smem constant byte address 0x4 - core index']
  #allocation1 [shape = 'u32[144,128]{1,0:T(1,128)}', space=vmem, size = 0x12000, scoped, tag = 'internal scratch']
  %s0 = inlined_call_operand.vmem [shape: f32[2], index: 0, kind: input, shape index: {}]
  %s1 = inlined_call_operand.vmem [shape: f32[2,32,128], index: 1, kind: input, shape index: {}]
  %s2 = inlined_call_operand.vmem [shape: f32[2,32,128], index: 2, kind: input, shape index: {}]
  %s3 = inlined_call_operand.vmem [shape: f32[1,8,128], index: 3, kind: output, shape index: {}]
  %s4 = sld [smem:[#allocation0]]
  $region26: #{ssim_loss.1} parent=0
    _
  %s6 = ssub.s32 1, %s4
  %s7 = scalar_select 0, %s6, %s4
  $region1: #{ssim_loss.1} parent=0
    #allocation2 [shape = 'u8[512]{0}', space=smem, size = 0x200, scoped, tag = 'input window, operand 0, single buffered']
    #allocation3 [shape = 's32[1]{0}', space=sflag, size = 0x4, scoped, tag = 'scoped memory for ssim_loss.1']
    %8 = vsyncpa [#allocation3], 0
    // Predicated region
    $region2: #{ssim_loss.1} parent=1 // pred_check
      _
    $region3: #{ssim_loss.1} parent=1 // pred_check_branch
      %10 = sbr.rel (0) target = $region5
    $region4: #{ssim_loss.1} parent=1 // pred_region
      %s12 = ssub.s32 16, 16
      %13 = vsyncadd [#allocation3], %s12
      %s15 = sshll.u32 %s0, 4
      %s16 = int_to_ptr.vmem [resolvable:$true] %s15
      %18 = dma.vmem_to_smem %s16, 16, [#allocation2], [#allocation3]
    $region5: #{ssim_loss.1} parent=1 // pred_fallthru
      _
    // Predicated region
    $region6: #{ssim_loss.1} parent=1 // pred_check
      _
    $region7: #{ssim_loss.1} parent=1 // pred_check_branch
      %20 = sbr.rel (0) target = $region9
    $region8: #{ssim_loss.1} parent=1 // pred_region
      _
    $region9: #{ssim_loss.1} parent=1 // pred_fallthru
      _
    // Predicated region
    $region10: #{ssim_loss.1} parent=1 // pred_check
      _
    $region11: #{ssim_loss.1} parent=1 // pred_check_branch
      %22 = sbr.rel (0) target = $region13
    $region12: #{ssim_loss.1} parent=1 // pred_region
      _
    $region13: #{ssim_loss.1} parent=1 // pred_fallthru
      _
    // Predicated region
    $region14: #{ssim_loss.1} parent=1 // pred_check
      _
    $region15: #{ssim_loss.1} parent=1 // pred_check_branch
      %24 = sbr.rel (0) target = $region17
    $region16: #{ssim_loss.1} parent=1 // pred_region
      %25 = dma.done [#allocation3], 16
    $region17: #{ssim_loss.1} parent=1 // pred_fallthru
      _
    %26 = sfence
    %v27 = vld [vmem:[%s1] sm:$0xff]
    %v28 = vld [vmem:[%s1 + $0x8] sm:$0xff]
    %v29 = vld [vmem:[%s1 + $0x10] sm:$0xff]
    %v30 = vld [vmem:[%s1 + $0x18] sm:$0xff]
    %v31 = vld [vmem:[%s1 + $0x20] sm:$0xff]
    %v32 = vld [vmem:[%s1 + $0x28] sm:$0xff]
    %v33 = vld [vmem:[%s1 + $0x30] sm:$0xff]
    %v34 = vld [vmem:[%s1 + $0x38] sm:$0xff]
    %v35 = vld [vmem:[%s2] sm:$0xff]
    %v36 = vld [vmem:[%s2 + $0x8] sm:$0xff]
    %v37 = vld [vmem:[%s2 + $0x10] sm:$0xff]
    %v38 = vld [vmem:[%s2 + $0x18] sm:$0xff]
    %v39 = vld [vmem:[%s2 + $0x20] sm:$0xff]
    %v40 = vld [vmem:[%s2 + $0x28] sm:$0xff]
    %v41 = vld [vmem:[%s2 + $0x30] sm:$0xff]
    %v42 = vld [vmem:[%s2 + $0x38] sm:$0xff]
    %v43 = vmul.f32 %v27, 0.26601174
    %v44 = vmul.f32 %v28, 0.26601174
    %v45 = vmul.f32 %v29, 0.26601174
    %v46 = vmul.f32 %v30, 0.26601174
    %v47 = vmul.f32 %v31, 0.26601174
    %v48 = vmul.f32 %v32, 0.26601174
    %v49 = vmul.f32 %v33, 0.26601174
    %v50 = vmul.f32 %v34, 0.26601174
    %51 = vrot.lane.b32.xlu0 %v27, 5
    %v52 = vpop.permute.xlu0 %51
    %53 = vrot.lane.b32.xlu0 %v28, 5
    %v54 = vpop.permute.xlu0 %53
    %55 = vrot.lane.b32.xlu0 %v29, 5
    %v56 = vpop.permute.xlu0 %55
    %57 = vrot.lane.b32.xlu0 %v30, 5
    %v58 = vpop.permute.xlu0 %57
    %59 = vrot.lane.b32.xlu0 %v31, 5
    %v60 = vpop.permute.xlu0 %59
    %61 = vrot.lane.b32.xlu0 %v32, 5
    %v62 = vpop.permute.xlu0 %61
    %63 = vrot.lane.b32.xlu0 %v33, 5
    %v64 = vpop.permute.xlu0 %63
    %65 = vrot.lane.b32.xlu0 %v34, 5
    %v66 = vpop.permute.xlu0 %65
    %67 = vrot.lane.b32.xlu0 %v27, 123
    %v68 = vpop.permute.xlu0 %67
    %69 = vrot.lane.b32.xlu0 %v28, 123
    %v70 = vpop.permute.xlu0 %69
    %71 = vrot.lane.b32.xlu0 %v29, 123
    %v72 = vpop.permute.xlu0 %71
    %73 = vrot.lane.b32.xlu0 %v30, 123
    %v74 = vpop.permute.xlu0 %73
    %75 = vrot.lane.b32.xlu0 %v31, 123
    %v76 = vpop.permute.xlu0 %75
    %77 = vrot.lane.b32.xlu0 %v32, 123
    %v78 = vpop.permute.xlu0 %77
    %79 = vrot.lane.b32.xlu0 %v33, 123
    %v80 = vpop.permute.xlu0 %79
    %81 = vrot.lane.b32.xlu0 %v34, 123
    %v82 = vpop.permute.xlu0 %81
    %v83 = vadd.f32 %v52, %v68
    %v84 = vadd.f32 %v54, %v70
    %v85 = vadd.f32 %v56, %v72
    %v86 = vadd.f32 %v58, %v74
    %v87 = vadd.f32 %v60, %v76
    %v88 = vadd.f32 %v62, %v78
    %v89 = vadd.f32 %v64, %v80
    %v90 = vadd.f32 %v66, %v82
    %v91 = vmul.f32 %v83, 0.0010283802
    %v92 = vmul.f32 %v84, 0.0010283802
    %v93 = vmul.f32 %v85, 0.0010283802
    %v94 = vmul.f32 %v86, 0.0010283802
    %v95 = vmul.f32 %v87, 0.0010283802
    %v96 = vmul.f32 %v88, 0.0010283802
    %v97 = vmul.f32 %v89, 0.0010283802
    %v98 = vmul.f32 %v90, 0.0010283802
    %v99 = vadd.f32 %v43, %v91
    %v100 = vadd.f32 %v44, %v92
    %v101 = vadd.f32 %v45, %v93
    %v102 = vadd.f32 %v46, %v94
    %v103 = vadd.f32 %v47, %v95
    %v104 = vadd.f32 %v48, %v96
    %v105 = vadd.f32 %v49, %v97
    %v106 = vadd.f32 %v50, %v98
    %107 = vrot.lane.b32.xlu0 %v27, 4
    %v108 = vpop.permute.xlu0 %107
    %109 = vrot.lane.b32.xlu0 %v28, 4
    %v110 = vpop.permute.xlu0 %109
    %111 = vrot.lane.b32.xlu0 %v29, 4
    %v112 = vpop.permute.xlu0 %111
    %113 = vrot.lane.b32.xlu0 %v30, 4
    %v114 = vpop.permute.xlu0 %113
    %115 = vrot.lane.b32.xlu0 %v31, 4
    %v116 = vpop.permute.xlu0 %115
    %117 = vrot.lane.b32.xlu0 %v32, 4
    %v118 = vpop.permute.xlu0 %117
    %119 = vrot.lane.b32.xlu0 %v33, 4
    %v120 = vpop.permute.xlu0 %119
    %121 = vrot.lane.b32.xlu0 %v34, 4
    %v122 = vpop.permute.xlu0 %121
    %123 = vrot.lane.b32.xlu0 %v27, 124
    %v124 = vpop.permute.xlu0 %123
    %125 = vrot.lane.b32.xlu0 %v28, 124
    %v126 = vpop.permute.xlu0 %125
    %127 = vrot.lane.b32.xlu0 %v29, 124
    %v128 = vpop.permute.xlu0 %127
    %129 = vrot.lane.b32.xlu0 %v30, 124
    %v130 = vpop.permute.xlu0 %129
    %131 = vrot.lane.b32.xlu0 %v31, 124
    %v132 = vpop.permute.xlu0 %131
    %133 = vrot.lane.b32.xlu0 %v32, 124
    %v134 = vpop.permute.xlu0 %133
    %135 = vrot.lane.b32.xlu0 %v33, 124
    %v136 = vpop.permute.xlu0 %135
    %137 = vrot.lane.b32.xlu0 %v34, 124
    %v138 = vpop.permute.xlu0 %137
    %v139 = vadd.f32 %v108, %v124
    %v140 = vadd.f32 %v110, %v126
    %v141 = vadd.f32 %v112, %v128
    %v142 = vadd.f32 %v114, %v130
    %v143 = vadd.f32 %v116, %v132
    %v144 = vadd.f32 %v118, %v134
    %v145 = vadd.f32 %v120, %v136
    %v146 = vadd.f32 %v122, %v138
    %v147 = vmul.f32 %v139, 0.0075987587
    %v148 = vmul.f32 %v140, 0.0075987587
    %v149 = vmul.f32 %v141, 0.0075987587
    %v150 = vmul.f32 %v142, 0.0075987587
    %v151 = vmul.f32 %v143, 0.0075987587
    %v152 = vmul.f32 %v144, 0.0075987587
    %v153 = vmul.f32 %v145, 0.0075987587
    %v154 = vmul.f32 %v146, 0.0075987587
    %v155 = vadd.f32 %v99, %v147
    %v156 = vadd.f32 %v100, %v148
    %v157 = vadd.f32 %v101, %v149
    %v158 = vadd.f32 %v102, %v150
    %v159 = vadd.f32 %v103, %v151
    %v160 = vadd.f32 %v104, %v152
    %v161 = vadd.f32 %v105, %v153
    %v162 = vadd.f32 %v106, %v154
    %163 = vrot.lane.b32.xlu0 %v27, 3
    %v164 = vpop.permute.xlu0 %163
    %165 = vrot.lane.b32.xlu0 %v28, 3
    %v166 = vpop.permute.xlu0 %165
    %167 = vrot.lane.b32.xlu0 %v29, 3
    %v168 = vpop.permute.xlu0 %167
    %169 = vrot.lane.b32.xlu0 %v30, 3
    %v170 = vpop.permute.xlu0 %169
    %171 = vrot.lane.b32.xlu0 %v31, 3
    %v172 = vpop.permute.xlu0 %171
    %173 = vrot.lane.b32.xlu0 %v32, 3
    %v174 = vpop.permute.xlu0 %173
    %175 = vrot.lane.b32.xlu0 %v33, 3
    %v176 = vpop.permute.xlu0 %175
    %177 = vrot.lane.b32.xlu0 %v34, 3
    %v178 = vpop.permute.xlu0 %177
    %179 = vrot.lane.b32.xlu0 %v27, 125
    %v180 = vpop.permute.xlu0 %179
    %181 = vrot.lane.b32.xlu0 %v28, 125
    %v182 = vpop.permute.xlu0 %181
    %183 = vrot.lane.b32.xlu0 %v29, 125
    %v184 = vpop.permute.xlu0 %183
    %185 = vrot.lane.b32.xlu0 %v30, 125
    %v186 = vpop.permute.xlu0 %185
    %187 = vrot.lane.b32.xlu0 %v31, 125
    %v188 = vpop.permute.xlu0 %187
    %189 = vrot.lane.b32.xlu0 %v32, 125
    %v190 = vpop.permute.xlu0 %189
    %191 = vrot.lane.b32.xlu0 %v33, 125
    %v192 = vpop.permute.xlu0 %191
    %193 = vrot.lane.b32.xlu0 %v34, 125
    %v194 = vpop.permute.xlu0 %193
    %v195 = vadd.f32 %v164, %v180
    %v196 = vadd.f32 %v166, %v182
    %v197 = vadd.f32 %v168, %v184
    %v198 = vadd.f32 %v170, %v186
    %v199 = vadd.f32 %v172, %v188
    %v200 = vadd.f32 %v174, %v190
    %v201 = vadd.f32 %v176, %v192
    %v202 = vadd.f32 %v178, %v194
    %v203 = vmul.f32 %v195, 0.036000773
    %v204 = vmul.f32 %v196, 0.036000773
    %v205 = vmul.f32 %v197, 0.036000773
    %v206 = vmul.f32 %v198, 0.036000773
    %v207 = vmul.f32 %v199, 0.036000773
    %v208 = vmul.f32 %v200, 0.036000773
    %v209 = vmul.f32 %v201, 0.036000773
    %v210 = vmul.f32 %v202, 0.036000773
    %v211 = vadd.f32 %v155, %v203
    %v212 = vadd.f32 %v156, %v204
    %v213 = vadd.f32 %v157, %v205
    %v214 = vadd.f32 %v158, %v206
    %v215 = vadd.f32 %v159, %v207
    %v216 = vadd.f32 %v160, %v208
    %v217 = vadd.f32 %v161, %v209
    %v218 = vadd.f32 %v162, %v210
    %219 = vrot.lane.b32.xlu0 %v27, 2
    %v220 = vpop.permute.xlu0 %219
    %221 = vrot.lane.b32.xlu0 %v28, 2
    %v222 = vpop.permute.xlu0 %221
    %223 = vrot.lane.b32.xlu0 %v29, 2
    %v224 = vpop.permute.xlu0 %223
    %225 = vrot.lane.b32.xlu0 %v30, 2
    %v226 = vpop.permute.xlu0 %225
    %227 = vrot.lane.b32.xlu0 %v31, 2
    %v228 = vpop.permute.xlu0 %227
    %229 = vrot.lane.b32.xlu0 %v32, 2
    %v230 = vpop.permute.xlu0 %229
    %231 = vrot.lane.b32.xlu0 %v33, 2
    %v232 = vpop.permute.xlu0 %231
    %233 = vrot.lane.b32.xlu0 %v34, 2
    %v234 = vpop.permute.xlu0 %233
    %235 = vrot.lane.b32.xlu0 %v27, 126
    %v236 = vpop.permute.xlu0 %235
    %237 = vrot.lane.b32.xlu0 %v28, 126
    %v238 = vpop.permute.xlu0 %237
    %239 = vrot.lane.b32.xlu0 %v29, 126
    %v240 = vpop.permute.xlu0 %239
    %241 = vrot.lane.b32.xlu0 %v30, 126
    %v242 = vpop.permute.xlu0 %241
    %243 = vrot.lane.b32.xlu0 %v31, 126
    %v244 = vpop.permute.xlu0 %243
    %245 = vrot.lane.b32.xlu0 %v32, 126
    %v246 = vpop.permute.xlu0 %245
    %247 = vrot.lane.b32.xlu0 %v33, 126
    %v248 = vpop.permute.xlu0 %247
    %249 = vrot.lane.b32.xlu0 %v34, 126
    %v250 = vpop.permute.xlu0 %249
    %v251 = vadd.f32 %v220, %v236
    %v252 = vadd.f32 %v222, %v238
    %v253 = vadd.f32 %v224, %v240
    %v254 = vadd.f32 %v226, %v242
    %v255 = vadd.f32 %v228, %v244
    %v256 = vadd.f32 %v230, %v246
    %v257 = vadd.f32 %v232, %v248
    %v258 = vadd.f32 %v234, %v250
    %v259 = vmul.f32 %v251, 0.109360695
    %v260 = vmul.f32 %v252, 0.109360695
    %v261 = vmul.f32 %v253, 0.109360695
    %v262 = vmul.f32 %v254, 0.109360695
    %v263 = vmul.f32 %v255, 0.109360695
    %v264 = vmul.f32 %v256, 0.109360695
    %v265 = vmul.f32 %v257, 0.109360695
    %v266 = vmul.f32 %v258, 0.109360695
    %v267 = vadd.f32 %v211, %v259
    %v268 = vadd.f32 %v212, %v260
    %v269 = vadd.f32 %v213, %v261
    %v270 = vadd.f32 %v214, %v262
    %v271 = vadd.f32 %v215, %v263
    %v272 = vadd.f32 %v216, %v264
    %v273 = vadd.f32 %v217, %v265
    %v274 = vadd.f32 %v218, %v266
    %275 = vrot.lane.b32.xlu0 %v27, 1
    %v276 = vpop.permute.xlu0 %275
    %277 = vrot.lane.b32.xlu0 %v28, 1
    %v278 = vpop.permute.xlu0 %277
    %279 = vrot.lane.b32.xlu0 %v29, 1
    %v280 = vpop.permute.xlu0 %279
    %281 = vrot.lane.b32.xlu0 %v30, 1
    %v282 = vpop.permute.xlu0 %281
    %283 = vrot.lane.b32.xlu0 %v31, 1
    %v284 = vpop.permute.xlu0 %283
    %285 = vrot.lane.b32.xlu0 %v32, 1
    %v286 = vpop.permute.xlu0 %285
    %287 = vrot.lane.b32.xlu0 %v33, 1
    %v288 = vpop.permute.xlu0 %287
    %289 = vrot.lane.b32.xlu0 %v34, 1
    %v290 = vpop.permute.xlu0 %289
    %291 = vrot.lane.b32.xlu0 %v27, 127
    %v292 = vpop.permute.xlu0 %291
    %293 = vrot.lane.b32.xlu0 %v28, 127
    %v294 = vpop.permute.xlu0 %293
    %295 = vrot.lane.b32.xlu0 %v29, 127
    %v296 = vpop.permute.xlu0 %295
    %297 = vrot.lane.b32.xlu0 %v30, 127
    %v298 = vpop.permute.xlu0 %297
    %299 = vrot.lane.b32.xlu0 %v31, 127
    %v300 = vpop.permute.xlu0 %299
    %301 = vrot.lane.b32.xlu0 %v32, 127
    %v302 = vpop.permute.xlu0 %301
    %303 = vrot.lane.b32.xlu0 %v33, 127
    %v304 = vpop.permute.xlu0 %303
    %305 = vrot.lane.b32.xlu0 %v34, 127
    %v306 = vpop.permute.xlu0 %305
    %v307 = vadd.f32 %v276, %v292
    %v308 = vadd.f32 %v278, %v294
    %v309 = vadd.f32 %v280, %v296
    %v310 = vadd.f32 %v282, %v298
    %v311 = vadd.f32 %v284, %v300
    %v312 = vadd.f32 %v286, %v302
    %v313 = vadd.f32 %v288, %v304
    %v314 = vadd.f32 %v290, %v306
    %v315 = vmul.f32 %v307, 0.21300554
    %v316 = vmul.f32 %v308, 0.21300554
    %v317 = vmul.f32 %v309, 0.21300554
    %v318 = vmul.f32 %v310, 0.21300554
    %v319 = vmul.f32 %v311, 0.21300554
    %v320 = vmul.f32 %v312, 0.21300554
    %v321 = vmul.f32 %v313, 0.21300554
    %v322 = vmul.f32 %v314, 0.21300554
    %v323 = vadd.f32 %v267, %v315
    %v324 = vadd.f32 %v268, %v316
    %v325 = vadd.f32 %v269, %v317
    %v326 = vadd.f32 %v270, %v318
    %v327 = vadd.f32 %v271, %v319
    %v328 = vadd.f32 %v272, %v320
    %v329 = vadd.f32 %v273, %v321
    %v330 = vadd.f32 %v274, %v322
    %v331 = vmul.f32 %v323, 0.26601174
    %v332 = vmul.f32 %v324, 0.26601174
    %v333 = vmul.f32 %v325, 0.26601174
    %v334 = vmul.f32 %v327, 0.26601174
    %v335 = vmul.f32 %v328, 0.26601174
    %v336 = vmul.f32 %v329, 0.26601174
    %vm343 = vcmask 1045504
    %v344 = vrot.slane %v324, 2
    %v345 = vrot.slane %v325, 2
    %v346 = vsel %vm343, %v344, %v345
    %v347 = vrot.slane %v326, 2
    %v348 = vsel %vm343, %v345, %v347
    %v349 = vrot.slane %v328, 2
    %v350 = vrot.slane %v329, 2
    %v351 = vsel %vm343, %v349, %v350
    %v352 = vrot.slane %v330, 2
    %v353 = vsel %vm343, %v350, %v352
    %v358 = vadd.f32 %v323, %v346
    %v359 = vadd.f32 %v324, %v348
    %v360 = vadd.f32 %v327, %v351
    %v361 = vadd.f32 %v328, %v353
    %v362 = vmul.f32 %v358, 0.0010283802
    %v363 = vmul.f32 %v359, 0.0010283802
    %v364 = vmul.f32 %v360, 0.0010283802
    %v365 = vmul.f32 %v361, 0.0010283802
    %vm370 = vcmask 1044480
    %v371 = vrot.slane %v362, 3
    %v372 = vrot.slane %v363, 3
    %v373 = vsel %vm370, %v371, %v372
    %v374 = vrot.slane %v364, 3
    %v375 = vrot.slane %v365, 3
    %v376 = vsel %vm370, %v374, %v375
    %v383 = vadd.f32 %v331, %v371
    %v384 = vadd.f32 %v332, %v373
    %v385 = vadd.f32 %v333, %v372
    %v386 = vadd.f32 %v334, %v374
    %v387 = vadd.f32 %v335, %v376
    %v388 = vadd.f32 %v336, %v375
    %v389 = vadd.f32 %v323, %v324
    %v390 = vadd.f32 %v324, %v325
    %v391 = vadd.f32 %v325, %v326
    %v392 = vadd.f32 %v327, %v328
    %v393 = vadd.f32 %v328, %v329
    %v394 = vadd.f32 %v329, %v330
    %v395 = vmul.f32 %v389, 0.0075987587
    %v396 = vmul.f32 %v390, 0.0075987587
    %v397 = vmul.f32 %v391, 0.0075987587
    %v398 = vmul.f32 %v392, 0.0075987587
    %v399 = vmul.f32 %v393, 0.0075987587
    %v400 = vmul.f32 %v394, 0.0075987587
    %vm407 = vcmask 1043456
    %v408 = vrot.slane %v395, 4
    %v409 = vrot.slane %v396, 4
    %v410 = vsel %vm407, %v408, %v409
    %v411 = vrot.slane %v397, 4
    %v412 = vsel %vm407, %v409, %v411
    %v413 = vrot.slane %v398, 4
    %v414 = vrot.slane %v399, 4
    %v415 = vsel %vm407, %v413, %v414
    %v416 = vrot.slane %v400, 4
    %v417 = vsel %vm407, %v414, %v416
    %v424 = vadd.f32 %v383, %v408
    %v425 = vadd.f32 %v384, %v410
    %v426 = vadd.f32 %v385, %v412
    %v427 = vadd.f32 %v386, %v413
    %v428 = vadd.f32 %v387, %v415
    %v429 = vadd.f32 %v388, %v417
    %vm430 = vcmask 1041408
    %v431 = vrot.slane %v324, 6
    %v432 = vrot.slane %v325, 6
    %v433 = vsel %vm430, %v431, %v432
    %v434 = vrot.slane %v328, 6
    %v435 = vrot.slane %v329, 6
    %v436 = vsel %vm430, %v434, %v435
    %v443 = vadd.f32 %v323, %v431
    %v444 = vadd.f32 %v324, %v433
    %v445 = vadd.f32 %v325, %v432
    %v446 = vadd.f32 %v327, %v434
    %v447 = vadd.f32 %v328, %v436
    %v448 = vadd.f32 %v329, %v435
    %v449 = vmul.f32 %v443, 0.036000773
    %v450 = vmul.f32 %v444, 0.036000773
    %v451 = vmul.f32 %v445, 0.036000773
    %v452 = vmul.f32 %v446, 0.036000773
    %v453 = vmul.f32 %v447, 0.036000773
    %v454 = vmul.f32 %v448, 0.036000773
    %vm461 = vcmask 1042432
    %v462 = vrot.slane %v449, 5
    %v463 = vrot.slane %v450, 5
    %v464 = vsel %vm461, %v462, %v463
    %v465 = vrot.slane %v451, 5
    %v466 = vsel %vm461, %v463, %v465
    %v467 = vrot.slane %v452, 5
    %v468 = vrot.slane %v453, 5
    %v469 = vsel %vm461, %v467, %v468
    %v470 = vrot.slane %v454, 5
    %v471 = vsel %vm461, %v468, %v470
    %v478 = vadd.f32 %v424, %v462
    %v479 = vadd.f32 %v425, %v464
    %v480 = vadd.f32 %v426, %v466
    %v481 = vadd.f32 %v427, %v467
    %v482 = vadd.f32 %v428, %v469
    %v483 = vadd.f32 %v429, %v471
    %v486 = vrot.slane %v323, 4
    %v487 = vrot.slane %v324, 4
    %v488 = vsel %vm407, %v486, %v487
    %v489 = vrot.slane %v325, 4
    %v490 = vsel %vm407, %v487, %v489
    %v491 = vrot.slane %v327, 4
    %v492 = vrot.slane %v328, 4
    %v493 = vsel %vm407, %v491, %v492
    %v494 = vrot.slane %v329, 4
    %v495 = vsel %vm407, %v492, %v494
    %v502 = vadd.f32 %v323, %v488
    %v503 = vadd.f32 %v324, %v490
    %v504 = vadd.f32 %v325, %v489
    %v505 = vadd.f32 %v327, %v493
    %v506 = vadd.f32 %v328, %v495
    %v507 = vadd.f32 %v329, %v494
    %v508 = vmul.f32 %v502, 0.109360695
    %v509 = vmul.f32 %v503, 0.109360695
    %v510 = vmul.f32 %v504, 0.109360695
    %v511 = vmul.f32 %v505, 0.109360695
    %v512 = vmul.f32 %v506, 0.109360695
    %v513 = vmul.f32 %v507, 0.109360695
    %v520 = vrot.slane %v508, 6
    %v521 = vrot.slane %v509, 6
    %v522 = vsel %vm430, %v520, %v521
    %v523 = vrot.slane %v510, 6
    %v524 = vsel %vm430, %v521, %v523
    %v525 = vrot.slane %v511, 6
    %v526 = vrot.slane %v512, 6
    %v527 = vsel %vm430, %v525, %v526
    %v528 = vrot.slane %v513, 6
    %v529 = vsel %vm430, %v526, %v528
    %v536 = vadd.f32 %v478, %v520
    %v537 = vadd.f32 %v479, %v522
    %v538 = vadd.f32 %v480, %v524
    %v539 = vadd.f32 %v481, %v525
    %v540 = vadd.f32 %v482, %v527
    %v541 = vadd.f32 %v483, %v529
    %v542 = vrot.slane %v323, 2
    %v543 = vsel %vm343, %v542, %v344
    %v544 = vrot.slane %v327, 2
    %v545 = vsel %vm343, %v544, %v349
    %v550 = vadd.f32 %v323, %v543
    %v551 = vadd.f32 %v324, %v346
    %v552 = vadd.f32 %v325, %v345
    %v553 = vadd.f32 %v327, %v545
    %v554 = vadd.f32 %v328, %v351
    %v555 = vadd.f32 %v329, %v350
    %v556 = vmul.f32 %v550, 0.21300554
    %v557 = vmul.f32 %v551, 0.21300554
    %v558 = vmul.f32 %v552, 0.21300554
    %v559 = vmul.f32 %v553, 0.21300554
    %v560 = vmul.f32 %v554, 0.21300554
    %v561 = vmul.f32 %v555, 0.21300554
    %vm568 = vcmask 1040384
    %v569 = vrot.slane %v556, 7
    %v570 = vrot.slane %v557, 7
    %v571 = vsel %vm568, %v569, %v570
    %v572 = vrot.slane %v558, 7
    %v573 = vsel %vm568, %v570, %v572
    %v574 = vrot.slane %v559, 7
    %v575 = vrot.slane %v560, 7
    %v576 = vsel %vm568, %v574, %v575
    %v577 = vrot.slane %v561, 7
    %v578 = vsel %vm568, %v575, %v577
    %v585 = vadd.f32 %v536, %v569
    %v586 = vadd.f32 %v537, %v571
    %v587 = vadd.f32 %v538, %v573
    %v588 = vadd.f32 %v539, %v574
    %v589 = vadd.f32 %v540, %v576
    %v590 = vadd.f32 %v541, %v578
    %v591 = vmul.f32 %v35, 0.26601174
    %v592 = vmul.f32 %v36, 0.26601174
    %v593 = vmul.f32 %v37, 0.26601174
    %v594 = vmul.f32 %v38, 0.26601174
    %v595 = vmul.f32 %v39, 0.26601174
    %v596 = vmul.f32 %v40, 0.26601174
    %v597 = vmul.f32 %v41, 0.26601174
    %v598 = vmul.f32 %v42, 0.26601174
    %599 = vrot.lane.b32.xlu0 %v35, 5
    %v600 = vpop.permute.xlu0 %599
    %601 = vrot.lane.b32.xlu0 %v36, 5
    %v602 = vpop.permute.xlu0 %601
    %603 = vrot.lane.b32.xlu0 %v37, 5
    %v604 = vpop.permute.xlu0 %603
    %605 = vrot.lane.b32.xlu0 %v38, 5
    %v606 = vpop.permute.xlu0 %605
    %607 = vrot.lane.b32.xlu0 %v39, 5
    %v608 = vpop.permute.xlu0 %607
    %609 = vrot.lane.b32.xlu0 %v40, 5
    %v610 = vpop.permute.xlu0 %609
    %611 = vrot.lane.b32.xlu0 %v41, 5
    %v612 = vpop.permute.xlu0 %611
    %613 = vrot.lane.b32.xlu0 %v42, 5
    %v614 = vpop.permute.xlu0 %613
    %615 = vrot.lane.b32.xlu0 %v35, 123
    %v616 = vpop.permute.xlu0 %615
    %617 = vrot.lane.b32.xlu0 %v36, 123
    %v618 = vpop.permute.xlu0 %617
    %619 = vrot.lane.b32.xlu0 %v37, 123
    %v620 = vpop.permute.xlu0 %619
    %621 = vrot.lane.b32.xlu0 %v38, 123
    %v622 = vpop.permute.xlu0 %621
    %623 = vrot.lane.b32.xlu0 %v39, 123
    %v624 = vpop.permute.xlu0 %623
    %625 = vrot.lane.b32.xlu0 %v40, 123
    %v626 = vpop.permute.xlu0 %625
    %627 = vrot.lane.b32.xlu0 %v41, 123
    %v628 = vpop.permute.xlu0 %627
    %629 = vrot.lane.b32.xlu0 %v42, 123
    %v630 = vpop.permute.xlu0 %629
    %v631 = vadd.f32 %v600, %v616
    %v632 = vadd.f32 %v602, %v618
    %v633 = vadd.f32 %v604, %v620
    %v634 = vadd.f32 %v606, %v622
    %v635 = vadd.f32 %v608, %v624
    %v636 = vadd.f32 %v610, %v626
    %v637 = vadd.f32 %v612, %v628
    %v638 = vadd.f32 %v614, %v630
    %v639 = vmul.f32 %v631, 0.0010283802
    %v640 = vmul.f32 %v632, 0.0010283802
    %v641 = vmul.f32 %v633, 0.0010283802
    %v642 = vmul.f32 %v634, 0.0010283802
    %v643 = vmul.f32 %v635, 0.0010283802
    %v644 = vmul.f32 %v636, 0.0010283802
    %v645 = vmul.f32 %v637, 0.0010283802
    %v646 = vmul.f32 %v638, 0.0010283802
    %v647 = vadd.f32 %v591, %v639
    %v648 = vadd.f32 %v592, %v640
    %v649 = vadd.f32 %v593, %v641
    %v650 = vadd.f32 %v594, %v642
    %v651 = vadd.f32 %v595, %v643
    %v652 = vadd.f32 %v596, %v644
    %v653 = vadd.f32 %v597, %v645
    %v654 = vadd.f32 %v598, %v646
    %655 = vrot.lane.b32.xlu0 %v35, 4
    %v656 = vpop.permute.xlu0 %655
    %657 = vrot.lane.b32.xlu0 %v36, 4
    %v658 = vpop.permute.xlu0 %657
    %659 = vrot.lane.b32.xlu0 %v37, 4
    %v660 = vpop.permute.xlu0 %659
    %661 = vrot.lane.b32.xlu0 %v38, 4
    %v662 = vpop.permute.xlu0 %661
    %663 = vrot.lane.b32.xlu0 %v39, 4
    %v664 = vpop.permute.xlu0 %663
    %665 = vrot.lane.b32.xlu0 %v40, 4
    %v666 = vpop.permute.xlu0 %665
    %667 = vrot.lane.b32.xlu0 %v41, 4
    %v668 = vpop.permute.xlu0 %667
    %669 = vrot.lane.b32.xlu0 %v42, 4
    %v670 = vpop.permute.xlu0 %669
    %671 = vrot.lane.b32.xlu0 %v35, 124
    %v672 = vpop.permute.xlu0 %671
    %673 = vrot.lane.b32.xlu0 %v36, 124
    %v674 = vpop.permute.xlu0 %673
    %675 = vrot.lane.b32.xlu0 %v37, 124
    %v676 = vpop.permute.xlu0 %675
    %677 = vrot.lane.b32.xlu0 %v38, 124
    %v678 = vpop.permute.xlu0 %677
    %679 = vrot.lane.b32.xlu0 %v39, 124
    %v680 = vpop.permute.xlu0 %679
    %681 = vrot.lane.b32.xlu0 %v40, 124
    %v682 = vpop.permute.xlu0 %681
    %683 = vrot.lane.b32.xlu0 %v41, 124
    %v684 = vpop.permute.xlu0 %683
    %685 = vrot.lane.b32.xlu0 %v42, 124
    %v686 = vpop.permute.xlu0 %685
    %v687 = vadd.f32 %v656, %v672
    %v688 = vadd.f32 %v658, %v674
    %v689 = vadd.f32 %v660, %v676
    %v690 = vadd.f32 %v662, %v678
    %v691 = vadd.f32 %v664, %v680
    %v692 = vadd.f32 %v666, %v682
    %v693 = vadd.f32 %v668, %v684
    %v694 = vadd.f32 %v670, %v686
    %v695 = vmul.f32 %v687, 0.0075987587
    %v696 = vmul.f32 %v688, 0.0075987587
    %v697 = vmul.f32 %v689, 0.0075987587
    %v698 = vmul.f32 %v690, 0.0075987587
    %v699 = vmul.f32 %v691, 0.0075987587
    %v700 = vmul.f32 %v692, 0.0075987587
    %v701 = vmul.f32 %v693, 0.0075987587
    %v702 = vmul.f32 %v694, 0.0075987587
    %v703 = vadd.f32 %v647, %v695
    %v704 = vadd.f32 %v648, %v696
    %v705 = vadd.f32 %v649, %v697
    %v706 = vadd.f32 %v650, %v698
    %v707 = vadd.f32 %v651, %v699
    %v708 = vadd.f32 %v652, %v700
    %v709 = vadd.f32 %v653, %v701
    %v710 = vadd.f32 %v654, %v702
    %711 = vrot.lane.b32.xlu0 %v35, 3
    %v712 = vpop.permute.xlu0 %711
    %713 = vrot.lane.b32.xlu0 %v36, 3
    %v714 = vpop.permute.xlu0 %713
    %715 = vrot.lane.b32.xlu0 %v37, 3
    %v716 = vpop.permute.xlu0 %715
    %717 = vrot.lane.b32.xlu0 %v38, 3
    %v718 = vpop.permute.xlu0 %717
    %719 = vrot.lane.b32.xlu0 %v39, 3
    %v720 = vpop.permute.xlu0 %719
    %721 = vrot.lane.b32.xlu0 %v40, 3
    %v722 = vpop.permute.xlu0 %721
    %723 = vrot.lane.b32.xlu0 %v41, 3
    %v724 = vpop.permute.xlu0 %723
    %725 = vrot.lane.b32.xlu0 %v42, 3
    %v726 = vpop.permute.xlu0 %725
    %727 = vrot.lane.b32.xlu0 %v35, 125
    %v728 = vpop.permute.xlu0 %727
    %729 = vrot.lane.b32.xlu0 %v36, 125
    %v730 = vpop.permute.xlu0 %729
    %731 = vrot.lane.b32.xlu0 %v37, 125
    %v732 = vpop.permute.xlu0 %731
    %733 = vrot.lane.b32.xlu0 %v38, 125
    %v734 = vpop.permute.xlu0 %733
    %735 = vrot.lane.b32.xlu0 %v39, 125
    %v736 = vpop.permute.xlu0 %735
    %737 = vrot.lane.b32.xlu0 %v40, 125
    %v738 = vpop.permute.xlu0 %737
    %739 = vrot.lane.b32.xlu0 %v41, 125
    %v740 = vpop.permute.xlu0 %739
    %741 = vrot.lane.b32.xlu0 %v42, 125
    %v742 = vpop.permute.xlu0 %741
    %v743 = vadd.f32 %v712, %v728
    %v744 = vadd.f32 %v714, %v730
    %v745 = vadd.f32 %v716, %v732
    %v746 = vadd.f32 %v718, %v734
    %v747 = vadd.f32 %v720, %v736
    %v748 = vadd.f32 %v722, %v738
    %v749 = vadd.f32 %v724, %v740
    %v750 = vadd.f32 %v726, %v742
    %v751 = vmul.f32 %v743, 0.036000773
    %v752 = vmul.f32 %v744, 0.036000773
    %v753 = vmul.f32 %v745, 0.036000773
    %v754 = vmul.f32 %v746, 0.036000773
    %v755 = vmul.f32 %v747, 0.036000773
    %v756 = vmul.f32 %v748, 0.036000773
    %v757 = vmul.f32 %v749, 0.036000773
    %v758 = vmul.f32 %v750, 0.036000773
    %v759 = vadd.f32 %v703, %v751
    %v760 = vadd.f32 %v704, %v752
    %v761 = vadd.f32 %v705, %v753
    %v762 = vadd.f32 %v706, %v754
    %v763 = vadd.f32 %v707, %v755
    %v764 = vadd.f32 %v708, %v756
    %v765 = vadd.f32 %v709, %v757
    %v766 = vadd.f32 %v710, %v758
    %767 = vrot.lane.b32.xlu0 %v35, 2
    %v768 = vpop.permute.xlu0 %767
    %769 = vrot.lane.b32.xlu0 %v36, 2
    %v770 = vpop.permute.xlu0 %769
    %771 = vrot.lane.b32.xlu0 %v37, 2
    %v772 = vpop.permute.xlu0 %771
    %773 = vrot.lane.b32.xlu0 %v38, 2
    %v774 = vpop.permute.xlu0 %773
    %775 = vrot.lane.b32.xlu0 %v39, 2
    %v776 = vpop.permute.xlu0 %775
    %777 = vrot.lane.b32.xlu0 %v40, 2
    %v778 = vpop.permute.xlu0 %777
    %779 = vrot.lane.b32.xlu0 %v41, 2
    %v780 = vpop.permute.xlu0 %779
    %781 = vrot.lane.b32.xlu0 %v42, 2
    %v782 = vpop.permute.xlu0 %781
    %783 = vrot.lane.b32.xlu0 %v35, 126
    %v784 = vpop.permute.xlu0 %783
    %785 = vrot.lane.b32.xlu0 %v36, 126
    %v786 = vpop.permute.xlu0 %785
    %787 = vrot.lane.b32.xlu0 %v37, 126
    %v788 = vpop.permute.xlu0 %787
    %789 = vrot.lane.b32.xlu0 %v38, 126
    %v790 = vpop.permute.xlu0 %789
    %791 = vrot.lane.b32.xlu0 %v39, 126
    %v792 = vpop.permute.xlu0 %791
    %793 = vrot.lane.b32.xlu0 %v40, 126
    %v794 = vpop.permute.xlu0 %793
    %795 = vrot.lane.b32.xlu0 %v41, 126
    %v796 = vpop.permute.xlu0 %795
    %797 = vrot.lane.b32.xlu0 %v42, 126
    %v798 = vpop.permute.xlu0 %797
    %v799 = vadd.f32 %v768, %v784
    %v800 = vadd.f32 %v770, %v786
    %v801 = vadd.f32 %v772, %v788
    %v802 = vadd.f32 %v774, %v790
    %v803 = vadd.f32 %v776, %v792
    %v804 = vadd.f32 %v778, %v794
    %v805 = vadd.f32 %v780, %v796
    %v806 = vadd.f32 %v782, %v798
    %v807 = vmul.f32 %v799, 0.109360695
    %v808 = vmul.f32 %v800, 0.109360695
    %v809 = vmul.f32 %v801, 0.109360695
    %v810 = vmul.f32 %v802, 0.109360695
    %v811 = vmul.f32 %v803, 0.109360695
    %v812 = vmul.f32 %v804, 0.109360695
    %v813 = vmul.f32 %v805, 0.109360695
    %v814 = vmul.f32 %v806, 0.109360695
    %v815 = vadd.f32 %v759, %v807
    %v816 = vadd.f32 %v760, %v808
    %v817 = vadd.f32 %v761, %v809
    %v818 = vadd.f32 %v762, %v810
    %v819 = vadd.f32 %v763, %v811
    %v820 = vadd.f32 %v764, %v812
    %v821 = vadd.f32 %v765, %v813
    %v822 = vadd.f32 %v766, %v814
    %823 = vrot.lane.b32.xlu0 %v35, 1
    %v824 = vpop.permute.xlu0 %823
    %825 = vrot.lane.b32.xlu0 %v36, 1
    %v826 = vpop.permute.xlu0 %825
    %827 = vrot.lane.b32.xlu0 %v37, 1
    %v828 = vpop.permute.xlu0 %827
    %829 = vrot.lane.b32.xlu0 %v38, 1
    %v830 = vpop.permute.xlu0 %829
    %831 = vrot.lane.b32.xlu0 %v39, 1
    %v832 = vpop.permute.xlu0 %831
    %833 = vrot.lane.b32.xlu0 %v40, 1
    %v834 = vpop.permute.xlu0 %833
    %835 = vrot.lane.b32.xlu0 %v41, 1
    %v836 = vpop.permute.xlu0 %835
    %837 = vrot.lane.b32.xlu0 %v42, 1
    %v838 = vpop.permute.xlu0 %837
    %839 = vrot.lane.b32.xlu0 %v35, 127
    %v840 = vpop.permute.xlu0 %839
    %841 = vrot.lane.b32.xlu0 %v36, 127
    %v842 = vpop.permute.xlu0 %841
    %843 = vrot.lane.b32.xlu0 %v37, 127
    %v844 = vpop.permute.xlu0 %843
    %845 = vrot.lane.b32.xlu0 %v38, 127
    %v846 = vpop.permute.xlu0 %845
    %847 = vrot.lane.b32.xlu0 %v39, 127
    %v848 = vpop.permute.xlu0 %847
    %849 = vrot.lane.b32.xlu0 %v40, 127
    %v850 = vpop.permute.xlu0 %849
    %851 = vrot.lane.b32.xlu0 %v41, 127
    %v852 = vpop.permute.xlu0 %851
    %853 = vrot.lane.b32.xlu0 %v42, 127
    %v854 = vpop.permute.xlu0 %853
    %v855 = vadd.f32 %v824, %v840
    %v856 = vadd.f32 %v826, %v842
    %v857 = vadd.f32 %v828, %v844
    %v858 = vadd.f32 %v830, %v846
    %v859 = vadd.f32 %v832, %v848
    %v860 = vadd.f32 %v834, %v850
    %v861 = vadd.f32 %v836, %v852
    %v862 = vadd.f32 %v838, %v854
    %v863 = vmul.f32 %v855, 0.21300554
    %v864 = vmul.f32 %v856, 0.21300554
    %v865 = vmul.f32 %v857, 0.21300554
    %v866 = vmul.f32 %v858, 0.21300554
    %v867 = vmul.f32 %v859, 0.21300554
    %v868 = vmul.f32 %v860, 0.21300554
    %v869 = vmul.f32 %v861, 0.21300554
    %v870 = vmul.f32 %v862, 0.21300554
    %v871 = vadd.f32 %v815, %v863
    %v872 = vadd.f32 %v816, %v864
    %v873 = vadd.f32 %v817, %v865
    %v874 = vadd.f32 %v818, %v866
    %v875 = vadd.f32 %v819, %v867
    %v876 = vadd.f32 %v820, %v868
    %v877 = vadd.f32 %v821, %v869
    %v878 = vadd.f32 %v822, %v870
    %v879 = vmul.f32 %v871, 0.26601174
    %v880 = vmul.f32 %v872, 0.26601174
    %v881 = vmul.f32 %v873, 0.26601174
    %v882 = vmul.f32 %v875, 0.26601174
    %v883 = vmul.f32 %v876, 0.26601174
    %v884 = vmul.f32 %v877, 0.26601174
    %v891 = vrot.slane %v872, 2
    %v892 = vrot.slane %v873, 2
    %v893 = vsel %vm343, %v891, %v892
    %v894 = vrot.slane %v874, 2
    %v895 = vsel %vm343, %v892, %v894
    %v896 = vrot.slane %v876, 2
    %v897 = vrot.slane %v877, 2
    %v898 = vsel %vm343, %v896, %v897
    %v899 = vrot.slane %v878, 2
    %v900 = vsel %vm343, %v897, %v899
    %v905 = vadd.f32 %v871, %v893
    %v906 = vadd.f32 %v872, %v895
    %v907 = vadd.f32 %v875, %v898
    %v908 = vadd.f32 %v876, %v900
    %v909 = vmul.f32 %v905, 0.0010283802
    %v910 = vmul.f32 %v906, 0.0010283802
    %v911 = vmul.f32 %v907, 0.0010283802
    %v912 = vmul.f32 %v908, 0.0010283802
    %v917 = vrot.slane %v909, 3
    %v918 = vrot.slane %v910, 3
    %v919 = vsel %vm370, %v917, %v918
    %v920 = vrot.slane %v911, 3
    %v921 = vrot.slane %v912, 3
    %v922 = vsel %vm370, %v920, %v921
    %v929 = vadd.f32 %v879, %v917
    %v930 = vadd.f32 %v880, %v919
    %v931 = vadd.f32 %v881, %v918
    %v932 = vadd.f32 %v882, %v920
    %v933 = vadd.f32 %v883, %v922
    %v934 = vadd.f32 %v884, %v921
    %v935 = vadd.f32 %v871, %v872
    %v936 = vadd.f32 %v872, %v873
    %v937 = vadd.f32 %v873, %v874
    %v938 = vadd.f32 %v875, %v876
    %v939 = vadd.f32 %v876, %v877
    %v940 = vadd.f32 %v877, %v878
    %v941 = vmul.f32 %v935, 0.0075987587
    %v942 = vmul.f32 %v936, 0.0075987587
    %v943 = vmul.f32 %v937, 0.0075987587
    %v944 = vmul.f32 %v938, 0.0075987587
    %v945 = vmul.f32 %v939, 0.0075987587
    %v946 = vmul.f32 %v940, 0.0075987587
    %v953 = vrot.slane %v941, 4
    %v954 = vrot.slane %v942, 4
    %v955 = vsel %vm407, %v953, %v954
    %v956 = vrot.slane %v943, 4
    %v957 = vsel %vm407, %v954, %v956
    %v958 = vrot.slane %v944, 4
    %v959 = vrot.slane %v945, 4
    %v960 = vsel %vm407, %v958, %v959
    %v961 = vrot.slane %v946, 4
    %v962 = vsel %vm407, %v959, %v961
    %v969 = vadd.f32 %v929, %v953
    %v970 = vadd.f32 %v930, %v955
    %v971 = vadd.f32 %v931, %v957
    %v972 = vadd.f32 %v932, %v958
    %v973 = vadd.f32 %v933, %v960
    %v974 = vadd.f32 %v934, %v962
    %v975 = vrot.slane %v872, 6
    %v976 = vrot.slane %v873, 6
    %v977 = vsel %vm430, %v975, %v976
    %v978 = vrot.slane %v876, 6
    %v979 = vrot.slane %v877, 6
    %v980 = vsel %vm430, %v978, %v979
    %v987 = vadd.f32 %v871, %v975
    %v988 = vadd.f32 %v872, %v977
    %v989 = vadd.f32 %v873, %v976
    %v990 = vadd.f32 %v875, %v978
    %v991 = vadd.f32 %v876, %v980
    %v992 = vadd.f32 %v877, %v979
    %v993 = vmul.f32 %v987, 0.036000773
    %v994 = vmul.f32 %v988, 0.036000773
    %v995 = vmul.f32 %v989, 0.036000773
    %v996 = vmul.f32 %v990, 0.036000773
    %v997 = vmul.f32 %v991, 0.036000773
    %v998 = vmul.f32 %v992, 0.036000773
    %v1005 = vrot.slane %v993, 5
    %v1006 = vrot.slane %v994, 5
    %v1007 = vsel %vm461, %v1005, %v1006
    %v1008 = vrot.slane %v995, 5
    %v1009 = vsel %vm461, %v1006, %v1008
    %v1010 = vrot.slane %v996, 5
    %v1011 = vrot.slane %v997, 5
    %v1012 = vsel %vm461, %v1010, %v1011
    %v1013 = vrot.slane %v998, 5
    %v1014 = vsel %vm461, %v1011, %v1013
    %v1021 = vadd.f32 %v969, %v1005
    %v1022 = vadd.f32 %v970, %v1007
    %v1023 = vadd.f32 %v971, %v1009
    %v1024 = vadd.f32 %v972, %v1010
    %v1025 = vadd.f32 %v973, %v1012
    %v1026 = vadd.f32 %v974, %v1014
    %v1029 = vrot.slane %v871, 4
    %v1030 = vrot.slane %v872, 4
    %v1031 = vsel %vm407, %v1029, %v1030
    %v1032 = vrot.slane %v873, 4
    %v1033 = vsel %vm407, %v1030, %v1032
    %v1034 = vrot.slane %v875, 4
    %v1035 = vrot.slane %v876, 4
    %v1036 = vsel %vm407, %v1034, %v1035
    %v1037 = vrot.slane %v877, 4
    %v1038 = vsel %vm407, %v1035, %v1037
    %v1045 = vadd.f32 %v871, %v1031
    %v1046 = vadd.f32 %v872, %v1033
    %v1047 = vadd.f32 %v873, %v1032
    %v1048 = vadd.f32 %v875, %v1036
    %v1049 = vadd.f32 %v876, %v1038
    %v1050 = vadd.f32 %v877, %v1037
    %v1051 = vmul.f32 %v1045, 0.109360695
    %v1052 = vmul.f32 %v1046, 0.109360695
    %v1053 = vmul.f32 %v1047, 0.109360695
    %v1054 = vmul.f32 %v1048, 0.109360695
    %v1055 = vmul.f32 %v1049, 0.109360695
    %v1056 = vmul.f32 %v1050, 0.109360695
    %v1063 = vrot.slane %v1051, 6
    %v1064 = vrot.slane %v1052, 6
    %v1065 = vsel %vm430, %v1063, %v1064
    %v1066 = vrot.slane %v1053, 6
    %v1067 = vsel %vm430, %v1064, %v1066
    %v1068 = vrot.slane %v1054, 6
    %v1069 = vrot.slane %v1055, 6
    %v1070 = vsel %vm430, %v1068, %v1069
    %v1071 = vrot.slane %v1056, 6
    %v1072 = vsel %vm430, %v1069, %v1071
    %v1079 = vadd.f32 %v1021, %v1063
    %v1080 = vadd.f32 %v1022, %v1065
    %v1081 = vadd.f32 %v1023, %v1067
    %v1082 = vadd.f32 %v1024, %v1068
    %v1083 = vadd.f32 %v1025, %v1070
    %v1084 = vadd.f32 %v1026, %v1072
    %v1085 = vrot.slane %v871, 2
    %v1086 = vsel %vm343, %v1085, %v891
    %v1087 = vrot.slane %v875, 2
    %v1088 = vsel %vm343, %v1087, %v896
    %v1093 = vadd.f32 %v871, %v1086
    %v1094 = vadd.f32 %v872, %v893
    %v1095 = vadd.f32 %v873, %v892
    %v1096 = vadd.f32 %v875, %v1088
    %v1097 = vadd.f32 %v876, %v898
    %v1098 = vadd.f32 %v877, %v897
    %v1099 = vmul.f32 %v1093, 0.21300554
    %v1100 = vmul.f32 %v1094, 0.21300554
    %v1101 = vmul.f32 %v1095, 0.21300554
    %v1102 = vmul.f32 %v1096, 0.21300554
    %v1103 = vmul.f32 %v1097, 0.21300554
    %v1104 = vmul.f32 %v1098, 0.21300554
    %v1111 = vrot.slane %v1099, 7
    %v1112 = vrot.slane %v1100, 7
    %v1113 = vsel %vm568, %v1111, %v1112
    %v1114 = vrot.slane %v1101, 7
    %v1115 = vsel %vm568, %v1112, %v1114
    %v1116 = vrot.slane %v1102, 7
    %v1117 = vrot.slane %v1103, 7
    %v1118 = vsel %vm568, %v1116, %v1117
    %v1119 = vrot.slane %v1104, 7
    %v1120 = vsel %vm568, %v1117, %v1119
    %v1127 = vadd.f32 %v1079, %v1111
    %v1128 = vadd.f32 %v1080, %v1113
    %v1129 = vadd.f32 %v1081, %v1115
    %v1130 = vadd.f32 %v1082, %v1116
    %v1131 = vadd.f32 %v1083, %v1118
    %v1132 = vadd.f32 %v1084, %v1120
    %v1133 = vmul.f32 %v27, %v27
    %v1134 = vmul.f32 %v28, %v28
    %v1135 = vmul.f32 %v29, %v29
    %v1136 = vmul.f32 %v30, %v30
    %v1137 = vmul.f32 %v31, %v31
    %v1138 = vmul.f32 %v32, %v32
    %v1139 = vmul.f32 %v33, %v33
    %v1140 = vmul.f32 %v34, %v34
    %v1141 = vmul.f32 %v1133, 0.26601174
    %v1142 = vmul.f32 %v1134, 0.26601174
    %v1143 = vmul.f32 %v1135, 0.26601174
    %v1144 = vmul.f32 %v1136, 0.26601174
    %v1145 = vmul.f32 %v1137, 0.26601174
    %v1146 = vmul.f32 %v1138, 0.26601174
    %v1147 = vmul.f32 %v1139, 0.26601174
    %v1148 = vmul.f32 %v1140, 0.26601174
    %1149 = vrot.lane.b32.xlu0 %v1133, 5
    %v1150 = vpop.permute.xlu0 %1149
    %1151 = vrot.lane.b32.xlu0 %v1134, 5
    %v1152 = vpop.permute.xlu0 %1151
    %1153 = vrot.lane.b32.xlu0 %v1135, 5
    %v1154 = vpop.permute.xlu0 %1153
    %1155 = vrot.lane.b32.xlu0 %v1136, 5
    %v1156 = vpop.permute.xlu0 %1155
    %1157 = vrot.lane.b32.xlu0 %v1137, 5
    %v1158 = vpop.permute.xlu0 %1157
    %1159 = vrot.lane.b32.xlu0 %v1138, 5
    %v1160 = vpop.permute.xlu0 %1159
    %1161 = vrot.lane.b32.xlu0 %v1139, 5
    %v1162 = vpop.permute.xlu0 %1161
    %1163 = vrot.lane.b32.xlu0 %v1140, 5
    %v1164 = vpop.permute.xlu0 %1163
    %1165 = vrot.lane.b32.xlu0 %v1133, 123
    %v1166 = vpop.permute.xlu0 %1165
    %1167 = vrot.lane.b32.xlu0 %v1134, 123
    %v1168 = vpop.permute.xlu0 %1167
    %1169 = vrot.lane.b32.xlu0 %v1135, 123
    %v1170 = vpop.permute.xlu0 %1169
    %1171 = vrot.lane.b32.xlu0 %v1136, 123
    %v1172 = vpop.permute.xlu0 %1171
    %1173 = vrot.lane.b32.xlu0 %v1137, 123
    %v1174 = vpop.permute.xlu0 %1173
    %1175 = vrot.lane.b32.xlu0 %v1138, 123
    %v1176 = vpop.permute.xlu0 %1175
    %1177 = vrot.lane.b32.xlu0 %v1139, 123
    %v1178 = vpop.permute.xlu0 %1177
    %1179 = vrot.lane.b32.xlu0 %v1140, 123
    %v1180 = vpop.permute.xlu0 %1179
    %v1181 = vadd.f32 %v1150, %v1166
    %v1182 = vadd.f32 %v1152, %v1168
    %v1183 = vadd.f32 %v1154, %v1170
    %v1184 = vadd.f32 %v1156, %v1172
    %v1185 = vadd.f32 %v1158, %v1174
    %v1186 = vadd.f32 %v1160, %v1176
    %v1187 = vadd.f32 %v1162, %v1178
    %v1188 = vadd.f32 %v1164, %v1180
    %v1189 = vmul.f32 %v1181, 0.0010283802
    %v1190 = vmul.f32 %v1182, 0.0010283802
    %v1191 = vmul.f32 %v1183, 0.0010283802
    %v1192 = vmul.f32 %v1184, 0.0010283802
    %v1193 = vmul.f32 %v1185, 0.0010283802
    %v1194 = vmul.f32 %v1186, 0.0010283802
    %v1195 = vmul.f32 %v1187, 0.0010283802
    %v1196 = vmul.f32 %v1188, 0.0010283802
    %v1197 = vadd.f32 %v1141, %v1189
    %v1198 = vadd.f32 %v1142, %v1190
    %v1199 = vadd.f32 %v1143, %v1191
    %v1200 = vadd.f32 %v1144, %v1192
    %v1201 = vadd.f32 %v1145, %v1193
    %v1202 = vadd.f32 %v1146, %v1194
    %v1203 = vadd.f32 %v1147, %v1195
    %v1204 = vadd.f32 %v1148, %v1196
    %1205 = vrot.lane.b32.xlu0 %v1133, 4
    %v1206 = vpop.permute.xlu0 %1205
    %1207 = vrot.lane.b32.xlu0 %v1134, 4
    %v1208 = vpop.permute.xlu0 %1207
    %1209 = vrot.lane.b32.xlu0 %v1135, 4
    %v1210 = vpop.permute.xlu0 %1209
    %1211 = vrot.lane.b32.xlu0 %v1136, 4
    %v1212 = vpop.permute.xlu0 %1211
    %1213 = vrot.lane.b32.xlu0 %v1137, 4
    %v1214 = vpop.permute.xlu0 %1213
    %1215 = vrot.lane.b32.xlu0 %v1138, 4
    %v1216 = vpop.permute.xlu0 %1215
    %1217 = vrot.lane.b32.xlu0 %v1139, 4
    %v1218 = vpop.permute.xlu0 %1217
    %1219 = vrot.lane.b32.xlu0 %v1140, 4
    %v1220 = vpop.permute.xlu0 %1219
    %1221 = vrot.lane.b32.xlu0 %v1133, 124
    %v1222 = vpop.permute.xlu0 %1221
    %1223 = vrot.lane.b32.xlu0 %v1134, 124
    %v1224 = vpop.permute.xlu0 %1223
    %1225 = vrot.lane.b32.xlu0 %v1135, 124
    %v1226 = vpop.permute.xlu0 %1225
    %1227 = vrot.lane.b32.xlu0 %v1136, 124
    %v1228 = vpop.permute.xlu0 %1227
    %1229 = vrot.lane.b32.xlu0 %v1137, 124
    %v1230 = vpop.permute.xlu0 %1229
    %1231 = vrot.lane.b32.xlu0 %v1138, 124
    %v1232 = vpop.permute.xlu0 %1231
    %1233 = vrot.lane.b32.xlu0 %v1139, 124
    %v1234 = vpop.permute.xlu0 %1233
    %1235 = vrot.lane.b32.xlu0 %v1140, 124
    %v1236 = vpop.permute.xlu0 %1235
    %v1237 = vadd.f32 %v1206, %v1222
    %v1238 = vadd.f32 %v1208, %v1224
    %v1239 = vadd.f32 %v1210, %v1226
    %v1240 = vadd.f32 %v1212, %v1228
    %v1241 = vadd.f32 %v1214, %v1230
    %v1242 = vadd.f32 %v1216, %v1232
    %v1243 = vadd.f32 %v1218, %v1234
    %v1244 = vadd.f32 %v1220, %v1236
    %v1245 = vmul.f32 %v1237, 0.0075987587
    %v1246 = vmul.f32 %v1238, 0.0075987587
    %v1247 = vmul.f32 %v1239, 0.0075987587
    %v1248 = vmul.f32 %v1240, 0.0075987587
    %v1249 = vmul.f32 %v1241, 0.0075987587
    %v1250 = vmul.f32 %v1242, 0.0075987587
    %v1251 = vmul.f32 %v1243, 0.0075987587
    %v1252 = vmul.f32 %v1244, 0.0075987587
    %v1253 = vadd.f32 %v1197, %v1245
    %v1254 = vadd.f32 %v1198, %v1246
    %v1255 = vadd.f32 %v1199, %v1247
    %v1256 = vadd.f32 %v1200, %v1248
    %v1257 = vadd.f32 %v1201, %v1249
    %v1258 = vadd.f32 %v1202, %v1250
    %v1259 = vadd.f32 %v1203, %v1251
    %v1260 = vadd.f32 %v1204, %v1252
    %1261 = vrot.lane.b32.xlu0 %v1133, 3
    %v1262 = vpop.permute.xlu0 %1261
    %1263 = vrot.lane.b32.xlu0 %v1134, 3
    %v1264 = vpop.permute.xlu0 %1263
    %1265 = vrot.lane.b32.xlu0 %v1135, 3
    %v1266 = vpop.permute.xlu0 %1265
    %1267 = vrot.lane.b32.xlu0 %v1136, 3
    %v1268 = vpop.permute.xlu0 %1267
    %1269 = vrot.lane.b32.xlu0 %v1137, 3
    %v1270 = vpop.permute.xlu0 %1269
    %1271 = vrot.lane.b32.xlu0 %v1138, 3
    %v1272 = vpop.permute.xlu0 %1271
    %1273 = vrot.lane.b32.xlu0 %v1139, 3
    %v1274 = vpop.permute.xlu0 %1273
    %1275 = vrot.lane.b32.xlu0 %v1140, 3
    %v1276 = vpop.permute.xlu0 %1275
    %1277 = vrot.lane.b32.xlu0 %v1133, 125
    %v1278 = vpop.permute.xlu0 %1277
    %1279 = vrot.lane.b32.xlu0 %v1134, 125
    %v1280 = vpop.permute.xlu0 %1279
    %1281 = vrot.lane.b32.xlu0 %v1135, 125
    %v1282 = vpop.permute.xlu0 %1281
    %1283 = vrot.lane.b32.xlu0 %v1136, 125
    %v1284 = vpop.permute.xlu0 %1283
    %1285 = vrot.lane.b32.xlu0 %v1137, 125
    %v1286 = vpop.permute.xlu0 %1285
    %1287 = vrot.lane.b32.xlu0 %v1138, 125
    %v1288 = vpop.permute.xlu0 %1287
    %1289 = vrot.lane.b32.xlu0 %v1139, 125
    %v1290 = vpop.permute.xlu0 %1289
    %1291 = vrot.lane.b32.xlu0 %v1140, 125
    %v1292 = vpop.permute.xlu0 %1291
    %v1293 = vadd.f32 %v1262, %v1278
    %v1294 = vadd.f32 %v1264, %v1280
    %v1295 = vadd.f32 %v1266, %v1282
    %v1296 = vadd.f32 %v1268, %v1284
    %v1297 = vadd.f32 %v1270, %v1286
    %v1298 = vadd.f32 %v1272, %v1288
    %v1299 = vadd.f32 %v1274, %v1290
    %v1300 = vadd.f32 %v1276, %v1292
    %v1301 = vmul.f32 %v1293, 0.036000773
    %v1302 = vmul.f32 %v1294, 0.036000773
    %v1303 = vmul.f32 %v1295, 0.036000773
    %v1304 = vmul.f32 %v1296, 0.036000773
    %v1305 = vmul.f32 %v1297, 0.036000773
    %v1306 = vmul.f32 %v1298, 0.036000773
    %v1307 = vmul.f32 %v1299, 0.036000773
    %v1308 = vmul.f32 %v1300, 0.036000773
    %v1309 = vadd.f32 %v1253, %v1301
    %v1310 = vadd.f32 %v1254, %v1302
    %v1311 = vadd.f32 %v1255, %v1303
    %v1312 = vadd.f32 %v1256, %v1304
    %v1313 = vadd.f32 %v1257, %v1305
    %v1314 = vadd.f32 %v1258, %v1306
    %v1315 = vadd.f32 %v1259, %v1307
    %v1316 = vadd.f32 %v1260, %v1308
    %1317 = vrot.lane.b32.xlu0 %v1133, 2
    %v1318 = vpop.permute.xlu0 %1317
    %1319 = vrot.lane.b32.xlu0 %v1134, 2
    %v1320 = vpop.permute.xlu0 %1319
    %1321 = vrot.lane.b32.xlu0 %v1135, 2
    %v1322 = vpop.permute.xlu0 %1321
    %1323 = vrot.lane.b32.xlu0 %v1136, 2
    %v1324 = vpop.permute.xlu0 %1323
    %1325 = vrot.lane.b32.xlu0 %v1137, 2
    %v1326 = vpop.permute.xlu0 %1325
    %1327 = vrot.lane.b32.xlu0 %v1138, 2
    %v1328 = vpop.permute.xlu0 %1327
    %1329 = vrot.lane.b32.xlu0 %v1139, 2
    %v1330 = vpop.permute.xlu0 %1329
    %1331 = vrot.lane.b32.xlu0 %v1140, 2
    %v1332 = vpop.permute.xlu0 %1331
    %1333 = vrot.lane.b32.xlu0 %v1133, 126
    %v1334 = vpop.permute.xlu0 %1333
    %1335 = vrot.lane.b32.xlu0 %v1134, 126
    %v1336 = vpop.permute.xlu0 %1335
    %1337 = vrot.lane.b32.xlu0 %v1135, 126
    %v1338 = vpop.permute.xlu0 %1337
    %1339 = vrot.lane.b32.xlu0 %v1136, 126
    %v1340 = vpop.permute.xlu0 %1339
    %1341 = vrot.lane.b32.xlu0 %v1137, 126
    %v1342 = vpop.permute.xlu0 %1341
    %1343 = vrot.lane.b32.xlu0 %v1138, 126
    %v1344 = vpop.permute.xlu0 %1343
    %1345 = vrot.lane.b32.xlu0 %v1139, 126
    %v1346 = vpop.permute.xlu0 %1345
    %1347 = vrot.lane.b32.xlu0 %v1140, 126
    %v1348 = vpop.permute.xlu0 %1347
    %v1349 = vadd.f32 %v1318, %v1334
    %v1350 = vadd.f32 %v1320, %v1336
    %v1351 = vadd.f32 %v1322, %v1338
    %v1352 = vadd.f32 %v1324, %v1340
    %v1353 = vadd.f32 %v1326, %v1342
    %v1354 = vadd.f32 %v1328, %v1344
    %v1355 = vadd.f32 %v1330, %v1346
    %v1356 = vadd.f32 %v1332, %v1348
    %v1357 = vmul.f32 %v1349, 0.109360695
    %v1358 = vmul.f32 %v1350, 0.109360695
    %v1359 = vmul.f32 %v1351, 0.109360695
    %v1360 = vmul.f32 %v1352, 0.109360695
    %v1361 = vmul.f32 %v1353, 0.109360695
    %v1362 = vmul.f32 %v1354, 0.109360695
    %v1363 = vmul.f32 %v1355, 0.109360695
    %v1364 = vmul.f32 %v1356, 0.109360695
    %v1365 = vadd.f32 %v1309, %v1357
    %v1366 = vadd.f32 %v1310, %v1358
    %v1367 = vadd.f32 %v1311, %v1359
    %v1368 = vadd.f32 %v1312, %v1360
    %v1369 = vadd.f32 %v1313, %v1361
    %v1370 = vadd.f32 %v1314, %v1362
    %v1371 = vadd.f32 %v1315, %v1363
    %v1372 = vadd.f32 %v1316, %v1364
    %1373 = vrot.lane.b32.xlu0 %v1133, 1
    %v1374 = vpop.permute.xlu0 %1373
    %1375 = vrot.lane.b32.xlu0 %v1134, 1
    %v1376 = vpop.permute.xlu0 %1375
    %1377 = vrot.lane.b32.xlu0 %v1135, 1
    %v1378 = vpop.permute.xlu0 %1377
    %1379 = vrot.lane.b32.xlu0 %v1136, 1
    %v1380 = vpop.permute.xlu0 %1379
    %1381 = vrot.lane.b32.xlu0 %v1137, 1
    %v1382 = vpop.permute.xlu0 %1381
    %1383 = vrot.lane.b32.xlu0 %v1138, 1
    %v1384 = vpop.permute.xlu0 %1383
    %1385 = vrot.lane.b32.xlu0 %v1139, 1
    %v1386 = vpop.permute.xlu0 %1385
    %1387 = vrot.lane.b32.xlu0 %v1140, 1
    %v1388 = vpop.permute.xlu0 %1387
    %1389 = vrot.lane.b32.xlu0 %v1133, 127
    %v1390 = vpop.permute.xlu0 %1389
    %1391 = vrot.lane.b32.xlu0 %v1134, 127
    %v1392 = vpop.permute.xlu0 %1391
    %1393 = vrot.lane.b32.xlu0 %v1135, 127
    %v1394 = vpop.permute.xlu0 %1393
    %1395 = vrot.lane.b32.xlu0 %v1136, 127
    %v1396 = vpop.permute.xlu0 %1395
    %1397 = vrot.lane.b32.xlu0 %v1137, 127
    %v1398 = vpop.permute.xlu0 %1397
    %1399 = vrot.lane.b32.xlu0 %v1138, 127
    %v1400 = vpop.permute.xlu0 %1399
    %1401 = vrot.lane.b32.xlu0 %v1139, 127
    %v1402 = vpop.permute.xlu0 %1401
    %1403 = vrot.lane.b32.xlu0 %v1140, 127
    %v1404 = vpop.permute.xlu0 %1403
    %v1405 = vadd.f32 %v1374, %v1390
    %v1406 = vadd.f32 %v1376, %v1392
    %v1407 = vadd.f32 %v1378, %v1394
    %v1408 = vadd.f32 %v1380, %v1396
    %v1409 = vadd.f32 %v1382, %v1398
    %v1410 = vadd.f32 %v1384, %v1400
    %v1411 = vadd.f32 %v1386, %v1402
    %v1412 = vadd.f32 %v1388, %v1404
    %v1413 = vmul.f32 %v1405, 0.21300554
    %v1414 = vmul.f32 %v1406, 0.21300554
    %v1415 = vmul.f32 %v1407, 0.21300554
    %v1416 = vmul.f32 %v1408, 0.21300554
    %v1417 = vmul.f32 %v1409, 0.21300554
    %v1418 = vmul.f32 %v1410, 0.21300554
    %v1419 = vmul.f32 %v1411, 0.21300554
    %v1420 = vmul.f32 %v1412, 0.21300554
    %v1421 = vadd.f32 %v1365, %v1413
    %v1422 = vadd.f32 %v1366, %v1414
    %v1423 = vadd.f32 %v1367, %v1415
    %v1424 = vadd.f32 %v1368, %v1416
    %v1425 = vadd.f32 %v1369, %v1417
    %v1426 = vadd.f32 %v1370, %v1418
    %v1427 = vadd.f32 %v1371, %v1419
    %v1428 = vadd.f32 %v1372, %v1420
    %v1429 = vmul.f32 %v1421, 0.26601174
    %v1430 = vmul.f32 %v1422, 0.26601174
    %v1431 = vmul.f32 %v1423, 0.26601174
    %v1432 = vmul.f32 %v1425, 0.26601174
    %v1433 = vmul.f32 %v1426, 0.26601174
    %v1434 = vmul.f32 %v1427, 0.26601174
    %v1441 = vrot.slane %v1422, 2
    %v1442 = vrot.slane %v1423, 2
    %v1443 = vsel %vm343, %v1441, %v1442
    %v1444 = vrot.slane %v1424, 2
    %v1445 = vsel %vm343, %v1442, %v1444
    %v1446 = vrot.slane %v1426, 2
    %v1447 = vrot.slane %v1427, 2
    %v1448 = vsel %vm343, %v1446, %v1447
    %v1449 = vrot.slane %v1428, 2
    %v1450 = vsel %vm343, %v1447, %v1449
    %v1455 = vadd.f32 %v1421, %v1443
    %v1456 = vadd.f32 %v1422, %v1445
    %v1457 = vadd.f32 %v1425, %v1448
    %v1458 = vadd.f32 %v1426, %v1450
    %v1459 = vmul.f32 %v1455, 0.0010283802
    %v1460 = vmul.f32 %v1456, 0.0010283802
    %v1461 = vmul.f32 %v1457, 0.0010283802
    %v1462 = vmul.f32 %v1458, 0.0010283802
    %v1467 = vrot.slane %v1459, 3
    %v1468 = vrot.slane %v1460, 3
    %v1469 = vsel %vm370, %v1467, %v1468
    %v1470 = vrot.slane %v1461, 3
    %v1471 = vrot.slane %v1462, 3
    %v1472 = vsel %vm370, %v1470, %v1471
    %v1479 = vadd.f32 %v1429, %v1467
    %v1480 = vadd.f32 %v1430, %v1469
    %v1481 = vadd.f32 %v1431, %v1468
    %v1482 = vadd.f32 %v1432, %v1470
    %v1483 = vadd.f32 %v1433, %v1472
    %v1484 = vadd.f32 %v1434, %v1471
    %v1485 = vadd.f32 %v1421, %v1422
    %v1486 = vadd.f32 %v1422, %v1423
    %v1487 = vadd.f32 %v1423, %v1424
    %v1488 = vadd.f32 %v1425, %v1426
    %v1489 = vadd.f32 %v1426, %v1427
    %v1490 = vadd.f32 %v1427, %v1428
    %v1491 = vmul.f32 %v1485, 0.0075987587
    %v1492 = vmul.f32 %v1486, 0.0075987587
    %v1493 = vmul.f32 %v1487, 0.0075987587
    %v1494 = vmul.f32 %v1488, 0.0075987587
    %v1495 = vmul.f32 %v1489, 0.0075987587
    %v1496 = vmul.f32 %v1490, 0.0075987587
    %v1503 = vrot.slane %v1491, 4
    %v1504 = vrot.slane %v1492, 4
    %v1505 = vsel %vm407, %v1503, %v1504
    %v1506 = vrot.slane %v1493, 4
    %v1507 = vsel %vm407, %v1504, %v1506
    %v1508 = vrot.slane %v1494, 4
    %v1509 = vrot.slane %v1495, 4
    %v1510 = vsel %vm407, %v1508, %v1509
    %v1511 = vrot.slane %v1496, 4
    %v1512 = vsel %vm407, %v1509, %v1511
    %v1519 = vadd.f32 %v1479, %v1503
    %v1520 = vadd.f32 %v1480, %v1505
    %v1521 = vadd.f32 %v1481, %v1507
    %v1522 = vadd.f32 %v1482, %v1508
    %v1523 = vadd.f32 %v1483, %v1510
    %v1524 = vadd.f32 %v1484, %v1512
    %v1525 = vrot.slane %v1422, 6
    %v1526 = vrot.slane %v1423, 6
    %v1527 = vsel %vm430, %v1525, %v1526
    %v1528 = vrot.slane %v1426, 6
    %v1529 = vrot.slane %v1427, 6
    %v1530 = vsel %vm430, %v1528, %v1529
    %v1537 = vadd.f32 %v1421, %v1525
    %v1538 = vadd.f32 %v1422, %v1527
    %v1539 = vadd.f32 %v1423, %v1526
    %v1540 = vadd.f32 %v1425, %v1528
    %v1541 = vadd.f32 %v1426, %v1530
    %v1542 = vadd.f32 %v1427, %v1529
    %v1543 = vmul.f32 %v1537, 0.036000773
    %v1544 = vmul.f32 %v1538, 0.036000773
    %v1545 = vmul.f32 %v1539, 0.036000773
    %v1546 = vmul.f32 %v1540, 0.036000773
    %v1547 = vmul.f32 %v1541, 0.036000773
    %v1548 = vmul.f32 %v1542, 0.036000773
    %v1555 = vrot.slane %v1543, 5
    %v1556 = vrot.slane %v1544, 5
    %v1557 = vsel %vm461, %v1555, %v1556
    %v1558 = vrot.slane %v1545, 5
    %v1559 = vsel %vm461, %v1556, %v1558
    %v1560 = vrot.slane %v1546, 5
    %v1561 = vrot.slane %v1547, 5
    %v1562 = vsel %vm461, %v1560, %v1561
    %v1563 = vrot.slane %v1548, 5
    %v1564 = vsel %vm461, %v1561, %v1563
    %v1571 = vadd.f32 %v1519, %v1555
    %v1572 = vadd.f32 %v1520, %v1557
    %v1573 = vadd.f32 %v1521, %v1559
    %v1574 = vadd.f32 %v1522, %v1560
    %v1575 = vadd.f32 %v1523, %v1562
    %v1576 = vadd.f32 %v1524, %v1564
    %v1579 = vrot.slane %v1421, 4
    %v1580 = vrot.slane %v1422, 4
    %v1581 = vsel %vm407, %v1579, %v1580
    %v1582 = vrot.slane %v1423, 4
    %v1583 = vsel %vm407, %v1580, %v1582
    %v1584 = vrot.slane %v1425, 4
    %v1585 = vrot.slane %v1426, 4
    %v1586 = vsel %vm407, %v1584, %v1585
    %v1587 = vrot.slane %v1427, 4
    %v1588 = vsel %vm407, %v1585, %v1587
    %v1595 = vadd.f32 %v1421, %v1581
    %v1596 = vadd.f32 %v1422, %v1583
    %v1597 = vadd.f32 %v1423, %v1582
    %v1598 = vadd.f32 %v1425, %v1586
    %v1599 = vadd.f32 %v1426, %v1588
    %v1600 = vadd.f32 %v1427, %v1587
    %v1601 = vmul.f32 %v1595, 0.109360695
    %v1602 = vmul.f32 %v1596, 0.109360695
    %v1603 = vmul.f32 %v1597, 0.109360695
    %v1604 = vmul.f32 %v1598, 0.109360695
    %v1605 = vmul.f32 %v1599, 0.109360695
    %v1606 = vmul.f32 %v1600, 0.109360695
    %v1613 = vrot.slane %v1601, 6
    %v1614 = vrot.slane %v1602, 6
    %v1615 = vsel %vm430, %v1613, %v1614
    %v1616 = vrot.slane %v1603, 6
    %v1617 = vsel %vm430, %v1614, %v1616
    %v1618 = vrot.slane %v1604, 6
    %v1619 = vrot.slane %v1605, 6
    %v1620 = vsel %vm430, %v1618, %v1619
    %v1621 = vrot.slane %v1606, 6
    %v1622 = vsel %vm430, %v1619, %v1621
    %v1629 = vadd.f32 %v1571, %v1613
    %v1630 = vadd.f32 %v1572, %v1615
    %v1631 = vadd.f32 %v1573, %v1617
    %v1632 = vadd.f32 %v1574, %v1618
    %v1633 = vadd.f32 %v1575, %v1620
    %v1634 = vadd.f32 %v1576, %v1622
    %v1635 = vrot.slane %v1421, 2
    %v1636 = vsel %vm343, %v1635, %v1441
    %v1637 = vrot.slane %v1425, 2
    %v1638 = vsel %vm343, %v1637, %v1446
    %v1643 = vadd.f32 %v1421, %v1636
    %v1644 = vadd.f32 %v1422, %v1443
    %v1645 = vadd.f32 %v1423, %v1442
    %v1646 = vadd.f32 %v1425, %v1638
    %v1647 = vadd.f32 %v1426, %v1448
    %v1648 = vadd.f32 %v1427, %v1447
    %v1649 = vmul.f32 %v1643, 0.21300554
    %v1650 = vmul.f32 %v1644, 0.21300554
    %v1651 = vmul.f32 %v1645, 0.21300554
    %v1652 = vmul.f32 %v1646, 0.21300554
    %v1653 = vmul.f32 %v1647, 0.21300554
    %v1654 = vmul.f32 %v1648, 0.21300554
    %v1661 = vrot.slane %v1649, 7
    %v1662 = vrot.slane %v1650, 7
    %v1663 = vsel %vm568, %v1661, %v1662
    %v1664 = vrot.slane %v1651, 7
    %v1665 = vsel %vm568, %v1662, %v1664
    %v1666 = vrot.slane %v1652, 7
    %v1667 = vrot.slane %v1653, 7
    %v1668 = vsel %vm568, %v1666, %v1667
    %v1669 = vrot.slane %v1654, 7
    %v1670 = vsel %vm568, %v1667, %v1669
    %v1677 = vadd.f32 %v1629, %v1661
    %v1678 = vadd.f32 %v1630, %v1663
    %v1679 = vadd.f32 %v1631, %v1665
    %v1680 = vadd.f32 %v1632, %v1666
    %v1681 = vadd.f32 %v1633, %v1668
    %v1682 = vadd.f32 %v1634, %v1670
    %v1683 = vmul.f32 %v35, %v35
    %v1684 = vmul.f32 %v36, %v36
    %v1685 = vmul.f32 %v37, %v37
    %v1686 = vmul.f32 %v38, %v38
    %v1687 = vmul.f32 %v39, %v39
    %v1688 = vmul.f32 %v40, %v40
    %v1689 = vmul.f32 %v41, %v41
    %v1690 = vmul.f32 %v42, %v42
    %v1691 = vmul.f32 %v1683, 0.26601174
    %v1692 = vmul.f32 %v1684, 0.26601174
    %v1693 = vmul.f32 %v1685, 0.26601174
    %v1694 = vmul.f32 %v1686, 0.26601174
    %v1695 = vmul.f32 %v1687, 0.26601174
    %v1696 = vmul.f32 %v1688, 0.26601174
    %v1697 = vmul.f32 %v1689, 0.26601174
    %v1698 = vmul.f32 %v1690, 0.26601174
    %1699 = vrot.lane.b32.xlu0 %v1683, 5
    %v1700 = vpop.permute.xlu0 %1699
    %1701 = vrot.lane.b32.xlu0 %v1684, 5
    %v1702 = vpop.permute.xlu0 %1701
    %1703 = vrot.lane.b32.xlu0 %v1685, 5
    %v1704 = vpop.permute.xlu0 %1703
    %1705 = vrot.lane.b32.xlu0 %v1686, 5
    %v1706 = vpop.permute.xlu0 %1705
    %1707 = vrot.lane.b32.xlu0 %v1687, 5
    %v1708 = vpop.permute.xlu0 %1707
    %1709 = vrot.lane.b32.xlu0 %v1688, 5
    %v1710 = vpop.permute.xlu0 %1709
    %1711 = vrot.lane.b32.xlu0 %v1689, 5
    %v1712 = vpop.permute.xlu0 %1711
    %1713 = vrot.lane.b32.xlu0 %v1690, 5
    %v1714 = vpop.permute.xlu0 %1713
    %1715 = vrot.lane.b32.xlu0 %v1683, 123
    %v1716 = vpop.permute.xlu0 %1715
    %1717 = vrot.lane.b32.xlu0 %v1684, 123
    %v1718 = vpop.permute.xlu0 %1717
    %1719 = vrot.lane.b32.xlu0 %v1685, 123
    %v1720 = vpop.permute.xlu0 %1719
    %1721 = vrot.lane.b32.xlu0 %v1686, 123
    %v1722 = vpop.permute.xlu0 %1721
    %1723 = vrot.lane.b32.xlu0 %v1687, 123
    %v1724 = vpop.permute.xlu0 %1723
    %1725 = vrot.lane.b32.xlu0 %v1688, 123
    %v1726 = vpop.permute.xlu0 %1725
    %1727 = vrot.lane.b32.xlu0 %v1689, 123
    %v1728 = vpop.permute.xlu0 %1727
    %1729 = vrot.lane.b32.xlu0 %v1690, 123
    %v1730 = vpop.permute.xlu0 %1729
    %v1731 = vadd.f32 %v1700, %v1716
    %v1732 = vadd.f32 %v1702, %v1718
    %v1733 = vadd.f32 %v1704, %v1720
    %v1734 = vadd.f32 %v1706, %v1722
    %v1735 = vadd.f32 %v1708, %v1724
    %v1736 = vadd.f32 %v1710, %v1726
    %v1737 = vadd.f32 %v1712, %v1728
    %v1738 = vadd.f32 %v1714, %v1730
    %v1739 = vmul.f32 %v1731, 0.0010283802
    %v1740 = vmul.f32 %v1732, 0.0010283802
    %v1741 = vmul.f32 %v1733, 0.0010283802
    %v1742 = vmul.f32 %v1734, 0.0010283802
    %v1743 = vmul.f32 %v1735, 0.0010283802
    %v1744 = vmul.f32 %v1736, 0.0010283802
    %v1745 = vmul.f32 %v1737, 0.0010283802
    %v1746 = vmul.f32 %v1738, 0.0010283802
    %v1747 = vadd.f32 %v1691, %v1739
    %v1748 = vadd.f32 %v1692, %v1740
    %v1749 = vadd.f32 %v1693, %v1741
    %v1750 = vadd.f32 %v1694, %v1742
    %v1751 = vadd.f32 %v1695, %v1743
    %v1752 = vadd.f32 %v1696, %v1744
    %v1753 = vadd.f32 %v1697, %v1745
    %v1754 = vadd.f32 %v1698, %v1746
    %1755 = vrot.lane.b32.xlu0 %v1683, 4
    %v1756 = vpop.permute.xlu0 %1755
    %1757 = vrot.lane.b32.xlu0 %v1684, 4
    %v1758 = vpop.permute.xlu0 %1757
    %1759 = vrot.lane.b32.xlu0 %v1685, 4
    %v1760 = vpop.permute.xlu0 %1759
    %1761 = vrot.lane.b32.xlu0 %v1686, 4
    %v1762 = vpop.permute.xlu0 %1761
    %1763 = vrot.lane.b32.xlu0 %v1687, 4
    %v1764 = vpop.permute.xlu0 %1763
    %1765 = vrot.lane.b32.xlu0 %v1688, 4
    %v1766 = vpop.permute.xlu0 %1765
    %1767 = vrot.lane.b32.xlu0 %v1689, 4
    %v1768 = vpop.permute.xlu0 %1767
    %1769 = vrot.lane.b32.xlu0 %v1690, 4
    %v1770 = vpop.permute.xlu0 %1769
    %1771 = vrot.lane.b32.xlu0 %v1683, 124
    %v1772 = vpop.permute.xlu0 %1771
    %1773 = vrot.lane.b32.xlu0 %v1684, 124
    %v1774 = vpop.permute.xlu0 %1773
    %1775 = vrot.lane.b32.xlu0 %v1685, 124
    %v1776 = vpop.permute.xlu0 %1775
    %1777 = vrot.lane.b32.xlu0 %v1686, 124
    %v1778 = vpop.permute.xlu0 %1777
    %1779 = vrot.lane.b32.xlu0 %v1687, 124
    %v1780 = vpop.permute.xlu0 %1779
    %1781 = vrot.lane.b32.xlu0 %v1688, 124
    %v1782 = vpop.permute.xlu0 %1781
    %1783 = vrot.lane.b32.xlu0 %v1689, 124
    %v1784 = vpop.permute.xlu0 %1783
    %1785 = vrot.lane.b32.xlu0 %v1690, 124
    %v1786 = vpop.permute.xlu0 %1785
    %v1787 = vadd.f32 %v1756, %v1772
    %v1788 = vadd.f32 %v1758, %v1774
    %v1789 = vadd.f32 %v1760, %v1776
    %v1790 = vadd.f32 %v1762, %v1778
    %v1791 = vadd.f32 %v1764, %v1780
    %v1792 = vadd.f32 %v1766, %v1782
    %v1793 = vadd.f32 %v1768, %v1784
    %v1794 = vadd.f32 %v1770, %v1786
    %v1795 = vmul.f32 %v1787, 0.0075987587
    %v1796 = vmul.f32 %v1788, 0.0075987587
    %v1797 = vmul.f32 %v1789, 0.0075987587
    %v1798 = vmul.f32 %v1790, 0.0075987587
    %v1799 = vmul.f32 %v1791, 0.0075987587
    %v1800 = vmul.f32 %v1792, 0.0075987587
    %v1801 = vmul.f32 %v1793, 0.0075987587
    %v1802 = vmul.f32 %v1794, 0.0075987587
    %v1803 = vadd.f32 %v1747, %v1795
    %v1804 = vadd.f32 %v1748, %v1796
    %v1805 = vadd.f32 %v1749, %v1797
    %v1806 = vadd.f32 %v1750, %v1798
    %v1807 = vadd.f32 %v1751, %v1799
    %v1808 = vadd.f32 %v1752, %v1800
    %v1809 = vadd.f32 %v1753, %v1801
    %v1810 = vadd.f32 %v1754, %v1802
    %1811 = vrot.lane.b32.xlu0 %v1683, 3
    %v1812 = vpop.permute.xlu0 %1811
    %1813 = vrot.lane.b32.xlu0 %v1684, 3
    %v1814 = vpop.permute.xlu0 %1813
    %1815 = vrot.lane.b32.xlu0 %v1685, 3
    %v1816 = vpop.permute.xlu0 %1815
    %1817 = vrot.lane.b32.xlu0 %v1686, 3
    %v1818 = vpop.permute.xlu0 %1817
    %1819 = vrot.lane.b32.xlu0 %v1687, 3
    %v1820 = vpop.permute.xlu0 %1819
    %1821 = vrot.lane.b32.xlu0 %v1688, 3
    %v1822 = vpop.permute.xlu0 %1821
    %1823 = vrot.lane.b32.xlu0 %v1689, 3
    %v1824 = vpop.permute.xlu0 %1823
    %1825 = vrot.lane.b32.xlu0 %v1690, 3
    %v1826 = vpop.permute.xlu0 %1825
    %1827 = vrot.lane.b32.xlu0 %v1683, 125
    %v1828 = vpop.permute.xlu0 %1827
    %1829 = vrot.lane.b32.xlu0 %v1684, 125
    %v1830 = vpop.permute.xlu0 %1829
    %1831 = vrot.lane.b32.xlu0 %v1685, 125
    %v1832 = vpop.permute.xlu0 %1831
    %1833 = vrot.lane.b32.xlu0 %v1686, 125
    %v1834 = vpop.permute.xlu0 %1833
    %1835 = vrot.lane.b32.xlu0 %v1687, 125
    %v1836 = vpop.permute.xlu0 %1835
    %1837 = vrot.lane.b32.xlu0 %v1688, 125
    %v1838 = vpop.permute.xlu0 %1837
    %1839 = vrot.lane.b32.xlu0 %v1689, 125
    %v1840 = vpop.permute.xlu0 %1839
    %1841 = vrot.lane.b32.xlu0 %v1690, 125
    %v1842 = vpop.permute.xlu0 %1841
    %v1843 = vadd.f32 %v1812, %v1828
    %v1844 = vadd.f32 %v1814, %v1830
    %v1845 = vadd.f32 %v1816, %v1832
    %v1846 = vadd.f32 %v1818, %v1834
    %v1847 = vadd.f32 %v1820, %v1836
    %v1848 = vadd.f32 %v1822, %v1838
    %v1849 = vadd.f32 %v1824, %v1840
    %v1850 = vadd.f32 %v1826, %v1842
    %v1851 = vmul.f32 %v1843, 0.036000773
    %v1852 = vmul.f32 %v1844, 0.036000773
    %v1853 = vmul.f32 %v1845, 0.036000773
    %v1854 = vmul.f32 %v1846, 0.036000773
    %v1855 = vmul.f32 %v1847, 0.036000773
    %v1856 = vmul.f32 %v1848, 0.036000773
    %v1857 = vmul.f32 %v1849, 0.036000773
    %v1858 = vmul.f32 %v1850, 0.036000773
    %v1859 = vadd.f32 %v1803, %v1851
    %v1860 = vadd.f32 %v1804, %v1852
    %v1861 = vadd.f32 %v1805, %v1853
    %v1862 = vadd.f32 %v1806, %v1854
    %v1863 = vadd.f32 %v1807, %v1855
    %v1864 = vadd.f32 %v1808, %v1856
    %v1865 = vadd.f32 %v1809, %v1857
    %v1866 = vadd.f32 %v1810, %v1858
    %1867 = vrot.lane.b32.xlu0 %v1683, 2
    %v1868 = vpop.permute.xlu0 %1867
    %1869 = vrot.lane.b32.xlu0 %v1684, 2
    %v1870 = vpop.permute.xlu0 %1869
    %1871 = vrot.lane.b32.xlu0 %v1685, 2
    %v1872 = vpop.permute.xlu0 %1871
    %1873 = vrot.lane.b32.xlu0 %v1686, 2
    %v1874 = vpop.permute.xlu0 %1873
    %1875 = vrot.lane.b32.xlu0 %v1687, 2
    %v1876 = vpop.permute.xlu0 %1875
    %1877 = vrot.lane.b32.xlu0 %v1688, 2
    %v1878 = vpop.permute.xlu0 %1877
    %1879 = vrot.lane.b32.xlu0 %v1689, 2
    %v1880 = vpop.permute.xlu0 %1879
    %1881 = vrot.lane.b32.xlu0 %v1690, 2
    %v1882 = vpop.permute.xlu0 %1881
    %1883 = vrot.lane.b32.xlu0 %v1683, 126
    %v1884 = vpop.permute.xlu0 %1883
    %1885 = vrot.lane.b32.xlu0 %v1684, 126
    %v1886 = vpop.permute.xlu0 %1885
    %1887 = vrot.lane.b32.xlu0 %v1685, 126
    %v1888 = vpop.permute.xlu0 %1887
    %1889 = vrot.lane.b32.xlu0 %v1686, 126
    %v1890 = vpop.permute.xlu0 %1889
    %1891 = vrot.lane.b32.xlu0 %v1687, 126
    %v1892 = vpop.permute.xlu0 %1891
    %1893 = vrot.lane.b32.xlu0 %v1688, 126
    %v1894 = vpop.permute.xlu0 %1893
    %1895 = vrot.lane.b32.xlu0 %v1689, 126
    %v1896 = vpop.permute.xlu0 %1895
    %1897 = vrot.lane.b32.xlu0 %v1690, 126
    %v1898 = vpop.permute.xlu0 %1897
    %v1899 = vadd.f32 %v1868, %v1884
    %v1900 = vadd.f32 %v1870, %v1886
    %v1901 = vadd.f32 %v1872, %v1888
    %v1902 = vadd.f32 %v1874, %v1890
    %v1903 = vadd.f32 %v1876, %v1892
    %v1904 = vadd.f32 %v1878, %v1894
    %v1905 = vadd.f32 %v1880, %v1896
    %v1906 = vadd.f32 %v1882, %v1898
    %v1907 = vmul.f32 %v1899, 0.109360695
    %v1908 = vmul.f32 %v1900, 0.109360695
    %v1909 = vmul.f32 %v1901, 0.109360695
    %v1910 = vmul.f32 %v1902, 0.109360695
    %v1911 = vmul.f32 %v1903, 0.109360695
    %v1912 = vmul.f32 %v1904, 0.109360695
    %v1913 = vmul.f32 %v1905, 0.109360695
    %v1914 = vmul.f32 %v1906, 0.109360695
    %v1915 = vadd.f32 %v1859, %v1907
    %v1916 = vadd.f32 %v1860, %v1908
    %v1917 = vadd.f32 %v1861, %v1909
    %v1918 = vadd.f32 %v1862, %v1910
    %v1919 = vadd.f32 %v1863, %v1911
    %v1920 = vadd.f32 %v1864, %v1912
    %v1921 = vadd.f32 %v1865, %v1913
    %v1922 = vadd.f32 %v1866, %v1914
    %1923 = vrot.lane.b32.xlu0 %v1683, 1
    %v1924 = vpop.permute.xlu0 %1923
    %1925 = vrot.lane.b32.xlu0 %v1684, 1
    %v1926 = vpop.permute.xlu0 %1925
    %1927 = vrot.lane.b32.xlu0 %v1685, 1
    %v1928 = vpop.permute.xlu0 %1927
    %1929 = vrot.lane.b32.xlu0 %v1686, 1
    %v1930 = vpop.permute.xlu0 %1929
    %1931 = vrot.lane.b32.xlu0 %v1687, 1
    %v1932 = vpop.permute.xlu0 %1931
    %1933 = vrot.lane.b32.xlu0 %v1688, 1
    %v1934 = vpop.permute.xlu0 %1933
    %1935 = vrot.lane.b32.xlu0 %v1689, 1
    %v1936 = vpop.permute.xlu0 %1935
    %1937 = vrot.lane.b32.xlu0 %v1690, 1
    %v1938 = vpop.permute.xlu0 %1937
    %1939 = vrot.lane.b32.xlu0 %v1683, 127
    %v1940 = vpop.permute.xlu0 %1939
    %1941 = vrot.lane.b32.xlu0 %v1684, 127
    %v1942 = vpop.permute.xlu0 %1941
    %1943 = vrot.lane.b32.xlu0 %v1685, 127
    %v1944 = vpop.permute.xlu0 %1943
    %1945 = vrot.lane.b32.xlu0 %v1686, 127
    %v1946 = vpop.permute.xlu0 %1945
    %1947 = vrot.lane.b32.xlu0 %v1687, 127
    %v1948 = vpop.permute.xlu0 %1947
    %1949 = vrot.lane.b32.xlu0 %v1688, 127
    %v1950 = vpop.permute.xlu0 %1949
    %1951 = vrot.lane.b32.xlu0 %v1689, 127
    %v1952 = vpop.permute.xlu0 %1951
    %1953 = vrot.lane.b32.xlu0 %v1690, 127
    %v1954 = vpop.permute.xlu0 %1953
    %v1955 = vadd.f32 %v1924, %v1940
    %v1956 = vadd.f32 %v1926, %v1942
    %v1957 = vadd.f32 %v1928, %v1944
    %v1958 = vadd.f32 %v1930, %v1946
    %v1959 = vadd.f32 %v1932, %v1948
    %v1960 = vadd.f32 %v1934, %v1950
    %v1961 = vadd.f32 %v1936, %v1952
    %v1962 = vadd.f32 %v1938, %v1954
    %v1963 = vmul.f32 %v1955, 0.21300554
    %v1964 = vmul.f32 %v1956, 0.21300554
    %v1965 = vmul.f32 %v1957, 0.21300554
    %v1966 = vmul.f32 %v1958, 0.21300554
    %v1967 = vmul.f32 %v1959, 0.21300554
    %v1968 = vmul.f32 %v1960, 0.21300554
    %v1969 = vmul.f32 %v1961, 0.21300554
    %v1970 = vmul.f32 %v1962, 0.21300554
    %v1971 = vadd.f32 %v1915, %v1963
    %v1972 = vadd.f32 %v1916, %v1964
    %v1973 = vadd.f32 %v1917, %v1965
    %v1974 = vadd.f32 %v1918, %v1966
    %v1975 = vadd.f32 %v1919, %v1967
    %v1976 = vadd.f32 %v1920, %v1968
    %v1977 = vadd.f32 %v1921, %v1969
    %v1978 = vadd.f32 %v1922, %v1970
    %v1979 = vmul.f32 %v1971, 0.26601174
    %v1980 = vmul.f32 %v1972, 0.26601174
    %v1981 = vmul.f32 %v1973, 0.26601174
    %v1982 = vmul.f32 %v1975, 0.26601174
    %v1983 = vmul.f32 %v1976, 0.26601174
    %v1984 = vmul.f32 %v1977, 0.26601174
    %v1991 = vrot.slane %v1972, 2
    %v1992 = vrot.slane %v1973, 2
    %v1993 = vsel %vm343, %v1991, %v1992
    %v1994 = vrot.slane %v1974, 2
    %v1995 = vsel %vm343, %v1992, %v1994
    %v1996 = vrot.slane %v1976, 2
    %v1997 = vrot.slane %v1977, 2
    %v1998 = vsel %vm343, %v1996, %v1997
    %v1999 = vrot.slane %v1978, 2
    %v2000 = vsel %vm343, %v1997, %v1999
    %v2005 = vadd.f32 %v1971, %v1993
    %v2006 = vadd.f32 %v1972, %v1995
    %v2007 = vadd.f32 %v1975, %v1998
    %v2008 = vadd.f32 %v1976, %v2000
    %v2009 = vmul.f32 %v2005, 0.0010283802
    %v2010 = vmul.f32 %v2006, 0.0010283802
    %v2011 = vmul.f32 %v2007, 0.0010283802
    %v2012 = vmul.f32 %v2008, 0.0010283802
    %v2017 = vrot.slane %v2009, 3
    %v2018 = vrot.slane %v2010, 3
    %v2019 = vsel %vm370, %v2017, %v2018
    %v2020 = vrot.slane %v2011, 3
    %v2021 = vrot.slane %v2012, 3
    %v2022 = vsel %vm370, %v2020, %v2021
    %v2029 = vadd.f32 %v1979, %v2017
    %v2030 = vadd.f32 %v1980, %v2019
    %v2031 = vadd.f32 %v1981, %v2018
    %v2032 = vadd.f32 %v1982, %v2020
    %v2033 = vadd.f32 %v1983, %v2022
    %v2034 = vadd.f32 %v1984, %v2021
    %v2035 = vadd.f32 %v1971, %v1972
    %v2036 = vadd.f32 %v1972, %v1973
    %v2037 = vadd.f32 %v1973, %v1974
    %v2038 = vadd.f32 %v1975, %v1976
    %v2039 = vadd.f32 %v1976, %v1977
    %v2040 = vadd.f32 %v1977, %v1978
    %v2041 = vmul.f32 %v2035, 0.0075987587
    %v2042 = vmul.f32 %v2036, 0.0075987587
    %v2043 = vmul.f32 %v2037, 0.0075987587
    %v2044 = vmul.f32 %v2038, 0.0075987587
    %v2045 = vmul.f32 %v2039, 0.0075987587
    %v2046 = vmul.f32 %v2040, 0.0075987587
    %v2053 = vrot.slane %v2041, 4
    %v2054 = vrot.slane %v2042, 4
    %v2055 = vsel %vm407, %v2053, %v2054
    %v2056 = vrot.slane %v2043, 4
    %v2057 = vsel %vm407, %v2054, %v2056
    %v2058 = vrot.slane %v2044, 4
    %v2059 = vrot.slane %v2045, 4
    %v2060 = vsel %vm407, %v2058, %v2059
    %v2061 = vrot.slane %v2046, 4
    %v2062 = vsel %vm407, %v2059, %v2061
    %v2069 = vadd.f32 %v2029, %v2053
    %v2070 = vadd.f32 %v2030, %v2055
    %v2071 = vadd.f32 %v2031, %v2057
    %v2072 = vadd.f32 %v2032, %v2058
    %v2073 = vadd.f32 %v2033, %v2060
    %v2074 = vadd.f32 %v2034, %v2062
    %v2075 = vrot.slane %v1972, 6
    %v2076 = vrot.slane %v1973, 6
    %v2077 = vsel %vm430, %v2075, %v2076
    %v2078 = vrot.slane %v1976, 6
    %v2079 = vrot.slane %v1977, 6
    %v2080 = vsel %vm430, %v2078, %v2079
    %v2087 = vadd.f32 %v1971, %v2075
    %v2088 = vadd.f32 %v1972, %v2077
    %v2089 = vadd.f32 %v1973, %v2076
    %v2090 = vadd.f32 %v1975, %v2078
    %v2091 = vadd.f32 %v1976, %v2080
    %v2092 = vadd.f32 %v1977, %v2079
    %v2093 = vmul.f32 %v2087, 0.036000773
    %v2094 = vmul.f32 %v2088, 0.036000773
    %v2095 = vmul.f32 %v2089, 0.036000773
    %v2096 = vmul.f32 %v2090, 0.036000773
    %v2097 = vmul.f32 %v2091, 0.036000773
    %v2098 = vmul.f32 %v2092, 0.036000773
    %v2105 = vrot.slane %v2093, 5
    %v2106 = vrot.slane %v2094, 5
    %v2107 = vsel %vm461, %v2105, %v2106
    %v2108 = vrot.slane %v2095, 5
    %v2109 = vsel %vm461, %v2106, %v2108
    %v2110 = vrot.slane %v2096, 5
    %v2111 = vrot.slane %v2097, 5
    %v2112 = vsel %vm461, %v2110, %v2111
    %v2113 = vrot.slane %v2098, 5
    %v2114 = vsel %vm461, %v2111, %v2113
    %v2121 = vadd.f32 %v2069, %v2105
    %v2122 = vadd.f32 %v2070, %v2107
    %v2123 = vadd.f32 %v2071, %v2109
    %v2124 = vadd.f32 %v2072, %v2110
    %v2125 = vadd.f32 %v2073, %v2112
    %v2126 = vadd.f32 %v2074, %v2114
    %v2129 = vrot.slane %v1971, 4
    %v2130 = vrot.slane %v1972, 4
    %v2131 = vsel %vm407, %v2129, %v2130
    %v2132 = vrot.slane %v1973, 4
    %v2133 = vsel %vm407, %v2130, %v2132
    %v2134 = vrot.slane %v1975, 4
    %v2135 = vrot.slane %v1976, 4
    %v2136 = vsel %vm407, %v2134, %v2135
    %v2137 = vrot.slane %v1977, 4
    %v2138 = vsel %vm407, %v2135, %v2137
    %v2145 = vadd.f32 %v1971, %v2131
    %v2146 = vadd.f32 %v1972, %v2133
    %v2147 = vadd.f32 %v1973, %v2132
    %v2148 = vadd.f32 %v1975, %v2136
    %v2149 = vadd.f32 %v1976, %v2138
    %v2150 = vadd.f32 %v1977, %v2137
    %v2151 = vmul.f32 %v2145, 0.109360695
    %v2152 = vmul.f32 %v2146, 0.109360695
    %v2153 = vmul.f32 %v2147, 0.109360695
    %v2154 = vmul.f32 %v2148, 0.109360695
    %v2155 = vmul.f32 %v2149, 0.109360695
    %v2156 = vmul.f32 %v2150, 0.109360695
    %v2163 = vrot.slane %v2151, 6
    %v2164 = vrot.slane %v2152, 6
    %v2165 = vsel %vm430, %v2163, %v2164
    %v2166 = vrot.slane %v2153, 6
    %v2167 = vsel %vm430, %v2164, %v2166
    %v2168 = vrot.slane %v2154, 6
    %v2169 = vrot.slane %v2155, 6
    %v2170 = vsel %vm430, %v2168, %v2169
    %v2171 = vrot.slane %v2156, 6
    %v2172 = vsel %vm430, %v2169, %v2171
    %v2179 = vadd.f32 %v2121, %v2163
    %v2180 = vadd.f32 %v2122, %v2165
    %v2181 = vadd.f32 %v2123, %v2167
    %v2182 = vadd.f32 %v2124, %v2168
    %v2183 = vadd.f32 %v2125, %v2170
    %v2184 = vadd.f32 %v2126, %v2172
    %v2185 = vrot.slane %v1971, 2
    %v2186 = vsel %vm343, %v2185, %v1991
    %v2187 = vrot.slane %v1975, 2
    %v2188 = vsel %vm343, %v2187, %v1996
    %v2193 = vadd.f32 %v1971, %v2186
    %v2194 = vadd.f32 %v1972, %v1993
    %v2195 = vadd.f32 %v1973, %v1992
    %v2196 = vadd.f32 %v1975, %v2188
    %v2197 = vadd.f32 %v1976, %v1998
    %v2198 = vadd.f32 %v1977, %v1997
    %v2199 = vmul.f32 %v2193, 0.21300554
    %v2200 = vmul.f32 %v2194, 0.21300554
    %v2201 = vmul.f32 %v2195, 0.21300554
    %v2202 = vmul.f32 %v2196, 0.21300554
    %v2203 = vmul.f32 %v2197, 0.21300554
    %v2204 = vmul.f32 %v2198, 0.21300554
    %v2211 = vrot.slane %v2199, 7
    %v2212 = vrot.slane %v2200, 7
    %v2213 = vsel %vm568, %v2211, %v2212
    %v2214 = vrot.slane %v2201, 7
    %v2215 = vsel %vm568, %v2212, %v2214
    %v2216 = vrot.slane %v2202, 7
    %v2217 = vrot.slane %v2203, 7
    %v2218 = vsel %vm568, %v2216, %v2217
    %v2219 = vrot.slane %v2204, 7
    %v2220 = vsel %vm568, %v2217, %v2219
    %v2227 = vadd.f32 %v2179, %v2211
    %v2228 = vadd.f32 %v2180, %v2213
    %v2229 = vadd.f32 %v2181, %v2215
    %v2230 = vadd.f32 %v2182, %v2216
    %v2231 = vadd.f32 %v2183, %v2218
    %v2232 = vadd.f32 %v2184, %v2220
    %v2233 = vmul.f32 %v27, %v35
    %v2234 = vmul.f32 %v28, %v36
    %v2235 = vmul.f32 %v29, %v37
    %v2236 = vmul.f32 %v30, %v38
    %v2237 = vmul.f32 %v31, %v39
    %v2238 = vmul.f32 %v32, %v40
    %v2239 = vmul.f32 %v33, %v41
    %v2240 = vmul.f32 %v34, %v42
    %v2241 = vmul.f32 %v2233, 0.26601174
    %v2242 = vmul.f32 %v2234, 0.26601174
    %v2243 = vmul.f32 %v2235, 0.26601174
    %v2244 = vmul.f32 %v2236, 0.26601174
    %v2245 = vmul.f32 %v2237, 0.26601174
    %v2246 = vmul.f32 %v2238, 0.26601174
    %v2247 = vmul.f32 %v2239, 0.26601174
    %v2248 = vmul.f32 %v2240, 0.26601174
    %2249 = vrot.lane.b32.xlu0 %v2233, 5
    %v2250 = vpop.permute.xlu0 %2249
    %2251 = vrot.lane.b32.xlu0 %v2234, 5
    %v2252 = vpop.permute.xlu0 %2251
    %2253 = vrot.lane.b32.xlu0 %v2235, 5
    %v2254 = vpop.permute.xlu0 %2253
    %2255 = vrot.lane.b32.xlu0 %v2236, 5
    %v2256 = vpop.permute.xlu0 %2255
    %2257 = vrot.lane.b32.xlu0 %v2237, 5
    %v2258 = vpop.permute.xlu0 %2257
    %2259 = vrot.lane.b32.xlu0 %v2238, 5
    %v2260 = vpop.permute.xlu0 %2259
    %2261 = vrot.lane.b32.xlu0 %v2239, 5
    %v2262 = vpop.permute.xlu0 %2261
    %2263 = vrot.lane.b32.xlu0 %v2240, 5
    %v2264 = vpop.permute.xlu0 %2263
    %2265 = vrot.lane.b32.xlu0 %v2233, 123
    %v2266 = vpop.permute.xlu0 %2265
    %2267 = vrot.lane.b32.xlu0 %v2234, 123
    %v2268 = vpop.permute.xlu0 %2267
    %2269 = vrot.lane.b32.xlu0 %v2235, 123
    %v2270 = vpop.permute.xlu0 %2269
    %2271 = vrot.lane.b32.xlu0 %v2236, 123
    %v2272 = vpop.permute.xlu0 %2271
    %2273 = vrot.lane.b32.xlu0 %v2237, 123
    %v2274 = vpop.permute.xlu0 %2273
    %2275 = vrot.lane.b32.xlu0 %v2238, 123
    %v2276 = vpop.permute.xlu0 %2275
    %2277 = vrot.lane.b32.xlu0 %v2239, 123
    %v2278 = vpop.permute.xlu0 %2277
    %2279 = vrot.lane.b32.xlu0 %v2240, 123
    %v2280 = vpop.permute.xlu0 %2279
    %v2281 = vadd.f32 %v2250, %v2266
    %v2282 = vadd.f32 %v2252, %v2268
    %v2283 = vadd.f32 %v2254, %v2270
    %v2284 = vadd.f32 %v2256, %v2272
    %v2285 = vadd.f32 %v2258, %v2274
    %v2286 = vadd.f32 %v2260, %v2276
    %v2287 = vadd.f32 %v2262, %v2278
    %v2288 = vadd.f32 %v2264, %v2280
    %v2289 = vmul.f32 %v2281, 0.0010283802
    %v2290 = vmul.f32 %v2282, 0.0010283802
    %v2291 = vmul.f32 %v2283, 0.0010283802
    %v2292 = vmul.f32 %v2284, 0.0010283802
    %v2293 = vmul.f32 %v2285, 0.0010283802
    %v2294 = vmul.f32 %v2286, 0.0010283802
    %v2295 = vmul.f32 %v2287, 0.0010283802
    %v2296 = vmul.f32 %v2288, 0.0010283802
    %v2297 = vadd.f32 %v2241, %v2289
    %v2298 = vadd.f32 %v2242, %v2290
    %v2299 = vadd.f32 %v2243, %v2291
    %v2300 = vadd.f32 %v2244, %v2292
    %v2301 = vadd.f32 %v2245, %v2293
    %v2302 = vadd.f32 %v2246, %v2294
    %v2303 = vadd.f32 %v2247, %v2295
    %v2304 = vadd.f32 %v2248, %v2296
    %2305 = vrot.lane.b32.xlu0 %v2233, 4
    %v2306 = vpop.permute.xlu0 %2305
    %2307 = vrot.lane.b32.xlu0 %v2234, 4
    %v2308 = vpop.permute.xlu0 %2307
    %2309 = vrot.lane.b32.xlu0 %v2235, 4
    %v2310 = vpop.permute.xlu0 %2309
    %2311 = vrot.lane.b32.xlu0 %v2236, 4
    %v2312 = vpop.permute.xlu0 %2311
    %2313 = vrot.lane.b32.xlu0 %v2237, 4
    %v2314 = vpop.permute.xlu0 %2313
    %2315 = vrot.lane.b32.xlu0 %v2238, 4
    %v2316 = vpop.permute.xlu0 %2315
    %2317 = vrot.lane.b32.xlu0 %v2239, 4
    %v2318 = vpop.permute.xlu0 %2317
    %2319 = vrot.lane.b32.xlu0 %v2240, 4
    %v2320 = vpop.permute.xlu0 %2319
    %2321 = vrot.lane.b32.xlu0 %v2233, 124
    %v2322 = vpop.permute.xlu0 %2321
    %2323 = vrot.lane.b32.xlu0 %v2234, 124
    %v2324 = vpop.permute.xlu0 %2323
    %2325 = vrot.lane.b32.xlu0 %v2235, 124
    %v2326 = vpop.permute.xlu0 %2325
    %2327 = vrot.lane.b32.xlu0 %v2236, 124
    %v2328 = vpop.permute.xlu0 %2327
    %2329 = vrot.lane.b32.xlu0 %v2237, 124
    %v2330 = vpop.permute.xlu0 %2329
    %2331 = vrot.lane.b32.xlu0 %v2238, 124
    %v2332 = vpop.permute.xlu0 %2331
    %2333 = vrot.lane.b32.xlu0 %v2239, 124
    %v2334 = vpop.permute.xlu0 %2333
    %2335 = vrot.lane.b32.xlu0 %v2240, 124
    %v2336 = vpop.permute.xlu0 %2335
    %v2337 = vadd.f32 %v2306, %v2322
    %v2338 = vadd.f32 %v2308, %v2324
    %v2339 = vadd.f32 %v2310, %v2326
    %v2340 = vadd.f32 %v2312, %v2328
    %v2341 = vadd.f32 %v2314, %v2330
    %v2342 = vadd.f32 %v2316, %v2332
    %v2343 = vadd.f32 %v2318, %v2334
    %v2344 = vadd.f32 %v2320, %v2336
    %v2345 = vmul.f32 %v2337, 0.0075987587
    %v2346 = vmul.f32 %v2338, 0.0075987587
    %v2347 = vmul.f32 %v2339, 0.0075987587
    %v2348 = vmul.f32 %v2340, 0.0075987587
    %v2349 = vmul.f32 %v2341, 0.0075987587
    %v2350 = vmul.f32 %v2342, 0.0075987587
    %v2351 = vmul.f32 %v2343, 0.0075987587
    %v2352 = vmul.f32 %v2344, 0.0075987587
    %v2353 = vadd.f32 %v2297, %v2345
    %v2354 = vadd.f32 %v2298, %v2346
    %v2355 = vadd.f32 %v2299, %v2347
    %v2356 = vadd.f32 %v2300, %v2348
    %v2357 = vadd.f32 %v2301, %v2349
    %v2358 = vadd.f32 %v2302, %v2350
    %v2359 = vadd.f32 %v2303, %v2351
    %v2360 = vadd.f32 %v2304, %v2352
    %2361 = vrot.lane.b32.xlu0 %v2233, 3
    %v2362 = vpop.permute.xlu0 %2361
    %2363 = vrot.lane.b32.xlu0 %v2234, 3
    %v2364 = vpop.permute.xlu0 %2363
    %2365 = vrot.lane.b32.xlu0 %v2235, 3
    %v2366 = vpop.permute.xlu0 %2365
    %2367 = vrot.lane.b32.xlu0 %v2236, 3
    %v2368 = vpop.permute.xlu0 %2367
    %2369 = vrot.lane.b32.xlu0 %v2237, 3
    %v2370 = vpop.permute.xlu0 %2369
    %2371 = vrot.lane.b32.xlu0 %v2238, 3
    %v2372 = vpop.permute.xlu0 %2371
    %2373 = vrot.lane.b32.xlu0 %v2239, 3
    %v2374 = vpop.permute.xlu0 %2373
    %2375 = vrot.lane.b32.xlu0 %v2240, 3
    %v2376 = vpop.permute.xlu0 %2375
    %2377 = vrot.lane.b32.xlu0 %v2233, 125
    %v2378 = vpop.permute.xlu0 %2377
    %2379 = vrot.lane.b32.xlu0 %v2234, 125
    %v2380 = vpop.permute.xlu0 %2379
    %2381 = vrot.lane.b32.xlu0 %v2235, 125
    %v2382 = vpop.permute.xlu0 %2381
    %2383 = vrot.lane.b32.xlu0 %v2236, 125
    %v2384 = vpop.permute.xlu0 %2383
    %2385 = vrot.lane.b32.xlu0 %v2237, 125
    %v2386 = vpop.permute.xlu0 %2385
    %2387 = vrot.lane.b32.xlu0 %v2238, 125
    %v2388 = vpop.permute.xlu0 %2387
    %2389 = vrot.lane.b32.xlu0 %v2239, 125
    %v2390 = vpop.permute.xlu0 %2389
    %2391 = vrot.lane.b32.xlu0 %v2240, 125
    %v2392 = vpop.permute.xlu0 %2391
    %v2393 = vadd.f32 %v2362, %v2378
    %v2394 = vadd.f32 %v2364, %v2380
    %v2395 = vadd.f32 %v2366, %v2382
    %v2396 = vadd.f32 %v2368, %v2384
    %v2397 = vadd.f32 %v2370, %v2386
    %v2398 = vadd.f32 %v2372, %v2388
    %v2399 = vadd.f32 %v2374, %v2390
    %v2400 = vadd.f32 %v2376, %v2392
    %v2401 = vmul.f32 %v2393, 0.036000773
    %v2402 = vmul.f32 %v2394, 0.036000773
    %v2403 = vmul.f32 %v2395, 0.036000773
    %v2404 = vmul.f32 %v2396, 0.036000773
    %v2405 = vmul.f32 %v2397, 0.036000773
    %v2406 = vmul.f32 %v2398, 0.036000773
    %v2407 = vmul.f32 %v2399, 0.036000773
    %v2408 = vmul.f32 %v2400, 0.036000773
    %v2409 = vadd.f32 %v2353, %v2401
    %v2410 = vadd.f32 %v2354, %v2402
    %v2411 = vadd.f32 %v2355, %v2403
    %v2412 = vadd.f32 %v2356, %v2404
    %v2413 = vadd.f32 %v2357, %v2405
    %v2414 = vadd.f32 %v2358, %v2406
    %v2415 = vadd.f32 %v2359, %v2407
    %v2416 = vadd.f32 %v2360, %v2408
    %2417 = vrot.lane.b32.xlu0 %v2233, 2
    %v2418 = vpop.permute.xlu0 %2417
    %2419 = vrot.lane.b32.xlu0 %v2234, 2
    %v2420 = vpop.permute.xlu0 %2419
    %2421 = vrot.lane.b32.xlu0 %v2235, 2
    %v2422 = vpop.permute.xlu0 %2421
    %2423 = vrot.lane.b32.xlu0 %v2236, 2
    %v2424 = vpop.permute.xlu0 %2423
    %2425 = vrot.lane.b32.xlu0 %v2237, 2
    %v2426 = vpop.permute.xlu0 %2425
    %2427 = vrot.lane.b32.xlu0 %v2238, 2
    %v2428 = vpop.permute.xlu0 %2427
    %2429 = vrot.lane.b32.xlu0 %v2239, 2
    %v2430 = vpop.permute.xlu0 %2429
    %2431 = vrot.lane.b32.xlu0 %v2240, 2
    %v2432 = vpop.permute.xlu0 %2431
    %2433 = vrot.lane.b32.xlu0 %v2233, 126
    %v2434 = vpop.permute.xlu0 %2433
    %2435 = vrot.lane.b32.xlu0 %v2234, 126
    %v2436 = vpop.permute.xlu0 %2435
    %2437 = vrot.lane.b32.xlu0 %v2235, 126
    %v2438 = vpop.permute.xlu0 %2437
    %2439 = vrot.lane.b32.xlu0 %v2236, 126
    %v2440 = vpop.permute.xlu0 %2439
    %2441 = vrot.lane.b32.xlu0 %v2237, 126
    %v2442 = vpop.permute.xlu0 %2441
    %2443 = vrot.lane.b32.xlu0 %v2238, 126
    %v2444 = vpop.permute.xlu0 %2443
    %2445 = vrot.lane.b32.xlu0 %v2239, 126
    %v2446 = vpop.permute.xlu0 %2445
    %2447 = vrot.lane.b32.xlu0 %v2240, 126
    %v2448 = vpop.permute.xlu0 %2447
    %v2449 = vadd.f32 %v2418, %v2434
    %v2450 = vadd.f32 %v2420, %v2436
    %v2451 = vadd.f32 %v2422, %v2438
    %v2452 = vadd.f32 %v2424, %v2440
    %v2453 = vadd.f32 %v2426, %v2442
    %v2454 = vadd.f32 %v2428, %v2444
    %v2455 = vadd.f32 %v2430, %v2446
    %v2456 = vadd.f32 %v2432, %v2448
    %v2457 = vmul.f32 %v2449, 0.109360695
    %v2458 = vmul.f32 %v2450, 0.109360695
    %v2459 = vmul.f32 %v2451, 0.109360695
    %v2460 = vmul.f32 %v2452, 0.109360695
    %v2461 = vmul.f32 %v2453, 0.109360695
    %v2462 = vmul.f32 %v2454, 0.109360695
    %v2463 = vmul.f32 %v2455, 0.109360695
    %v2464 = vmul.f32 %v2456, 0.109360695
    %v2465 = vadd.f32 %v2409, %v2457
    %v2466 = vadd.f32 %v2410, %v2458
    %v2467 = vadd.f32 %v2411, %v2459
    %v2468 = vadd.f32 %v2412, %v2460
    %v2469 = vadd.f32 %v2413, %v2461
    %v2470 = vadd.f32 %v2414, %v2462
    %v2471 = vadd.f32 %v2415, %v2463
    %v2472 = vadd.f32 %v2416, %v2464
    %2473 = vrot.lane.b32.xlu0 %v2233, 1
    %v2474 = vpop.permute.xlu0 %2473
    %2475 = vrot.lane.b32.xlu0 %v2234, 1
    %v2476 = vpop.permute.xlu0 %2475
    %2477 = vrot.lane.b32.xlu0 %v2235, 1
    %v2478 = vpop.permute.xlu0 %2477
    %2479 = vrot.lane.b32.xlu0 %v2236, 1
    %v2480 = vpop.permute.xlu0 %2479
    %2481 = vrot.lane.b32.xlu0 %v2237, 1
    %v2482 = vpop.permute.xlu0 %2481
    %2483 = vrot.lane.b32.xlu0 %v2238, 1
    %v2484 = vpop.permute.xlu0 %2483
    %2485 = vrot.lane.b32.xlu0 %v2239, 1
    %v2486 = vpop.permute.xlu0 %2485
    %2487 = vrot.lane.b32.xlu0 %v2240, 1
    %v2488 = vpop.permute.xlu0 %2487
    %2489 = vrot.lane.b32.xlu0 %v2233, 127
    %v2490 = vpop.permute.xlu0 %2489
    %2491 = vrot.lane.b32.xlu0 %v2234, 127
    %v2492 = vpop.permute.xlu0 %2491
    %2493 = vrot.lane.b32.xlu0 %v2235, 127
    %v2494 = vpop.permute.xlu0 %2493
    %2495 = vrot.lane.b32.xlu0 %v2236, 127
    %v2496 = vpop.permute.xlu0 %2495
    %2497 = vrot.lane.b32.xlu0 %v2237, 127
    %v2498 = vpop.permute.xlu0 %2497
    %2499 = vrot.lane.b32.xlu0 %v2238, 127
    %v2500 = vpop.permute.xlu0 %2499
    %2501 = vrot.lane.b32.xlu0 %v2239, 127
    %v2502 = vpop.permute.xlu0 %2501
    %2503 = vrot.lane.b32.xlu0 %v2240, 127
    %v2504 = vpop.permute.xlu0 %2503
    %v2505 = vadd.f32 %v2474, %v2490
    %v2506 = vadd.f32 %v2476, %v2492
    %v2507 = vadd.f32 %v2478, %v2494
    %v2508 = vadd.f32 %v2480, %v2496
    %v2509 = vadd.f32 %v2482, %v2498
    %v2510 = vadd.f32 %v2484, %v2500
    %v2511 = vadd.f32 %v2486, %v2502
    %v2512 = vadd.f32 %v2488, %v2504
    %v2513 = vmul.f32 %v2505, 0.21300554
    %v2514 = vmul.f32 %v2506, 0.21300554
    %v2515 = vmul.f32 %v2507, 0.21300554
    %v2516 = vmul.f32 %v2508, 0.21300554
    %v2517 = vmul.f32 %v2509, 0.21300554
    %v2518 = vmul.f32 %v2510, 0.21300554
    %v2519 = vmul.f32 %v2511, 0.21300554
    %v2520 = vmul.f32 %v2512, 0.21300554
    %v2521 = vadd.f32 %v2465, %v2513
    %v2522 = vadd.f32 %v2466, %v2514
    %v2523 = vadd.f32 %v2467, %v2515
    %v2524 = vadd.f32 %v2468, %v2516
    %v2525 = vadd.f32 %v2469, %v2517
    %v2526 = vadd.f32 %v2470, %v2518
    %v2527 = vadd.f32 %v2471, %v2519
    %v2528 = vadd.f32 %v2472, %v2520
    %v2529 = vmul.f32 %v2521, 0.26601174
    %v2530 = vmul.f32 %v2522, 0.26601174
    %v2531 = vmul.f32 %v2523, 0.26601174
    %v2532 = vmul.f32 %v2525, 0.26601174
    %v2533 = vmul.f32 %v2526, 0.26601174
    %v2534 = vmul.f32 %v2527, 0.26601174
    %v2541 = vrot.slane %v2522, 2
    %v2542 = vrot.slane %v2523, 2
    %v2543 = vsel %vm343, %v2541, %v2542
    %v2544 = vrot.slane %v2524, 2
    %v2545 = vsel %vm343, %v2542, %v2544
    %v2546 = vrot.slane %v2526, 2
    %v2547 = vrot.slane %v2527, 2
    %v2548 = vsel %vm343, %v2546, %v2547
    %v2549 = vrot.slane %v2528, 2
    %v2550 = vsel %vm343, %v2547, %v2549
    %v2555 = vadd.f32 %v2521, %v2543
    %v2556 = vadd.f32 %v2522, %v2545
    %v2557 = vadd.f32 %v2525, %v2548
    %v2558 = vadd.f32 %v2526, %v2550
    %v2559 = vmul.f32 %v2555, 0.0010283802
    %v2560 = vmul.f32 %v2556, 0.0010283802
    %v2561 = vmul.f32 %v2557, 0.0010283802
    %v2562 = vmul.f32 %v2558, 0.0010283802
    %v2567 = vrot.slane %v2559, 3
    %v2568 = vrot.slane %v2560, 3
    %v2569 = vsel %vm370, %v2567, %v2568
    %v2570 = vrot.slane %v2561, 3
    %v2571 = vrot.slane %v2562, 3
    %v2572 = vsel %vm370, %v2570, %v2571
    %v2579 = vadd.f32 %v2529, %v2567
    %v2580 = vadd.f32 %v2530, %v2569
    %v2581 = vadd.f32 %v2531, %v2568
    %v2582 = vadd.f32 %v2532, %v2570
    %v2583 = vadd.f32 %v2533, %v2572
    %v2584 = vadd.f32 %v2534, %v2571
    %v2585 = vadd.f32 %v2521, %v2522
    %v2586 = vadd.f32 %v2522, %v2523
    %v2587 = vadd.f32 %v2523, %v2524
    %v2588 = vadd.f32 %v2525, %v2526
    %v2589 = vadd.f32 %v2526, %v2527
    %v2590 = vadd.f32 %v2527, %v2528
    %v2591 = vmul.f32 %v2585, 0.0075987587
    %v2592 = vmul.f32 %v2586, 0.0075987587
    %v2593 = vmul.f32 %v2587, 0.0075987587
    %v2594 = vmul.f32 %v2588, 0.0075987587
    %v2595 = vmul.f32 %v2589, 0.0075987587
    %v2596 = vmul.f32 %v2590, 0.0075987587
    %v2603 = vrot.slane %v2591, 4
    %v2604 = vrot.slane %v2592, 4
    %v2605 = vsel %vm407, %v2603, %v2604
    %v2606 = vrot.slane %v2593, 4
    %v2607 = vsel %vm407, %v2604, %v2606
    %v2608 = vrot.slane %v2594, 4
    %v2609 = vrot.slane %v2595, 4
    %v2610 = vsel %vm407, %v2608, %v2609
    %v2611 = vrot.slane %v2596, 4
    %v2612 = vsel %vm407, %v2609, %v2611
    %v2619 = vadd.f32 %v2579, %v2603
    %v2620 = vadd.f32 %v2580, %v2605
    %v2621 = vadd.f32 %v2581, %v2607
    %v2622 = vadd.f32 %v2582, %v2608
    %v2623 = vadd.f32 %v2583, %v2610
    %v2624 = vadd.f32 %v2584, %v2612
    %v2625 = vrot.slane %v2522, 6
    %v2626 = vrot.slane %v2523, 6
    %v2627 = vsel %vm430, %v2625, %v2626
    %v2628 = vrot.slane %v2526, 6
    %v2629 = vrot.slane %v2527, 6
    %v2630 = vsel %vm430, %v2628, %v2629
    %v2637 = vadd.f32 %v2521, %v2625
    %v2638 = vadd.f32 %v2522, %v2627
    %v2639 = vadd.f32 %v2523, %v2626
    %v2640 = vadd.f32 %v2525, %v2628
    %v2641 = vadd.f32 %v2526, %v2630
    %v2642 = vadd.f32 %v2527, %v2629
    %v2643 = vmul.f32 %v2637, 0.036000773
    %v2644 = vmul.f32 %v2638, 0.036000773
    %v2645 = vmul.f32 %v2639, 0.036000773
    %v2646 = vmul.f32 %v2640, 0.036000773
    %v2647 = vmul.f32 %v2641, 0.036000773
    %v2648 = vmul.f32 %v2642, 0.036000773
    %v2655 = vrot.slane %v2643, 5
    %v2656 = vrot.slane %v2644, 5
    %v2657 = vsel %vm461, %v2655, %v2656
    %v2658 = vrot.slane %v2645, 5
    %v2659 = vsel %vm461, %v2656, %v2658
    %v2660 = vrot.slane %v2646, 5
    %v2661 = vrot.slane %v2647, 5
    %v2662 = vsel %vm461, %v2660, %v2661
    %v2663 = vrot.slane %v2648, 5
    %v2664 = vsel %vm461, %v2661, %v2663
    %v2671 = vadd.f32 %v2619, %v2655
    %v2672 = vadd.f32 %v2620, %v2657
    %v2673 = vadd.f32 %v2621, %v2659
    %v2674 = vadd.f32 %v2622, %v2660
    %v2675 = vadd.f32 %v2623, %v2662
    %v2676 = vadd.f32 %v2624, %v2664
    %v2679 = vrot.slane %v2521, 4
    %v2680 = vrot.slane %v2522, 4
    %v2681 = vsel %vm407, %v2679, %v2680
    %v2682 = vrot.slane %v2523, 4
    %v2683 = vsel %vm407, %v2680, %v2682
    %v2684 = vrot.slane %v2525, 4
    %v2685 = vrot.slane %v2526, 4
    %v2686 = vsel %vm407, %v2684, %v2685
    %v2687 = vrot.slane %v2527, 4
    %v2688 = vsel %vm407, %v2685, %v2687
    %v2695 = vadd.f32 %v2521, %v2681
    %v2696 = vadd.f32 %v2522, %v2683
    %v2697 = vadd.f32 %v2523, %v2682
    %v2698 = vadd.f32 %v2525, %v2686
    %v2699 = vadd.f32 %v2526, %v2688
    %v2700 = vadd.f32 %v2527, %v2687
    %v2701 = vmul.f32 %v2695, 0.109360695
    %v2702 = vmul.f32 %v2696, 0.109360695
    %v2703 = vmul.f32 %v2697, 0.109360695
    %v2704 = vmul.f32 %v2698, 0.109360695
    %v2705 = vmul.f32 %v2699, 0.109360695
    %v2706 = vmul.f32 %v2700, 0.109360695
    %v2713 = vrot.slane %v2701, 6
    %v2714 = vrot.slane %v2702, 6
    %v2715 = vsel %vm430, %v2713, %v2714
    %v2716 = vrot.slane %v2703, 6
    %v2717 = vsel %vm430, %v2714, %v2716
    %v2718 = vrot.slane %v2704, 6
    %v2719 = vrot.slane %v2705, 6
    %v2720 = vsel %vm430, %v2718, %v2719
    %v2721 = vrot.slane %v2706, 6
    %v2722 = vsel %vm430, %v2719, %v2721
    %v2729 = vadd.f32 %v2671, %v2713
    %v2730 = vadd.f32 %v2672, %v2715
    %v2731 = vadd.f32 %v2673, %v2717
    %v2732 = vadd.f32 %v2674, %v2718
    %v2733 = vadd.f32 %v2675, %v2720
    %v2734 = vadd.f32 %v2676, %v2722
    %v2735 = vrot.slane %v2521, 2
    %v2736 = vsel %vm343, %v2735, %v2541
    %v2737 = vrot.slane %v2525, 2
    %v2738 = vsel %vm343, %v2737, %v2546
    %v2743 = vadd.f32 %v2521, %v2736
    %v2744 = vadd.f32 %v2522, %v2543
    %v2745 = vadd.f32 %v2523, %v2542
    %v2746 = vadd.f32 %v2525, %v2738
    %v2747 = vadd.f32 %v2526, %v2548
    %v2748 = vadd.f32 %v2527, %v2547
    %v2749 = vmul.f32 %v2743, 0.21300554
    %v2750 = vmul.f32 %v2744, 0.21300554
    %v2751 = vmul.f32 %v2745, 0.21300554
    %v2752 = vmul.f32 %v2746, 0.21300554
    %v2753 = vmul.f32 %v2747, 0.21300554
    %v2754 = vmul.f32 %v2748, 0.21300554
    %v2761 = vrot.slane %v2749, 7
    %v2762 = vrot.slane %v2750, 7
    %v2763 = vsel %vm568, %v2761, %v2762
    %v2764 = vrot.slane %v2751, 7
    %v2765 = vsel %vm568, %v2762, %v2764
    %v2766 = vrot.slane %v2752, 7
    %v2767 = vrot.slane %v2753, 7
    %v2768 = vsel %vm568, %v2766, %v2767
    %v2769 = vrot.slane %v2754, 7
    %v2770 = vsel %vm568, %v2767, %v2769
    %v2777 = vadd.f32 %v2729, %v2761
    %v2778 = vadd.f32 %v2730, %v2763
    %v2779 = vadd.f32 %v2731, %v2765
    %v2780 = vadd.f32 %v2732, %v2766
    %v2781 = vadd.f32 %v2733, %v2768
    %v2782 = vadd.f32 %v2734, %v2770
    %s2783 = sld [smem:[#allocation2]]
    %s2784 = sld [smem:[#allocation2 + $0x1]]
    %v2785 = vmul.f32 %v585, %v585
    %v2786 = vmul.f32 %v586, %v586
    %v2787 = vmul.f32 %v587, %v587
    %v2788 = vmul.f32 %v588, %v588
    %v2789 = vmul.f32 %v589, %v589
    %v2790 = vmul.f32 %v590, %v590
    %v2791 = vmul.f32 %v1127, %v1127
    %v2792 = vmul.f32 %v1128, %v1128
    %v2793 = vmul.f32 %v1129, %v1129
    %v2794 = vmul.f32 %v1130, %v1130
    %v2795 = vmul.f32 %v1131, %v1131
    %v2796 = vmul.f32 %v1132, %v1132
    %v2797 = vmul.f32 %v585, %v1127
    %v2798 = vmul.f32 %v586, %v1128
    %v2799 = vmul.f32 %v587, %v1129
    %v2800 = vmul.f32 %v588, %v1130
    %v2801 = vmul.f32 %v589, %v1131
    %v2802 = vmul.f32 %v590, %v1132
    %v2803 = vsub.f32 %v1677, %v2785
    %v2804 = vsub.f32 %v1678, %v2786
    %v2805 = vsub.f32 %v1679, %v2787
    %v2806 = vsub.f32 %v1680, %v2788
    %v2807 = vsub.f32 %v1681, %v2789
    %v2808 = vsub.f32 %v1682, %v2790
    %v2809 = vsub.f32 %v2227, %v2791
    %v2810 = vsub.f32 %v2228, %v2792
    %v2811 = vsub.f32 %v2229, %v2793
    %v2812 = vsub.f32 %v2230, %v2794
    %v2813 = vsub.f32 %v2231, %v2795
    %v2814 = vsub.f32 %v2232, %v2796
    %v2815 = vsub.f32 %v2777, %v2797
    %v2816 = vsub.f32 %v2778, %v2798
    %v2817 = vsub.f32 %v2779, %v2799
    %v2818 = vsub.f32 %v2780, %v2800
    %v2819 = vsub.f32 %v2781, %v2801
    %v2820 = vsub.f32 %v2782, %v2802
    %v2821 = vmul.f32 %v2815, 2.0
    %v2822 = vmul.f32 %v2816, 2.0
    %v2823 = vmul.f32 %v2817, 2.0
    %v2824 = vmul.f32 %v2818, 2.0
    %v2825 = vmul.f32 %v2819, 2.0
    %v2826 = vmul.f32 %v2820, 2.0
    %v2827 = vstv %s2784
    %v2828 = vadd.f32 %v2821, %v2827
    %v2829 = vadd.f32 %v2822, %v2827
    %v2830 = vadd.f32 %v2823, %v2827
    %v2831 = vadd.f32 %v2824, %v2827
    %v2832 = vadd.f32 %v2825, %v2827
    %v2833 = vadd.f32 %v2826, %v2827
    %v2834 = vadd.f32 %v2803, %v2809
    %v2835 = vadd.f32 %v2804, %v2810
    %v2836 = vadd.f32 %v2805, %v2811
    %v2837 = vadd.f32 %v2806, %v2812
    %v2838 = vadd.f32 %v2807, %v2813
    %v2839 = vadd.f32 %v2808, %v2814
    %v2840 = vadd.f32 %v2834, %v2827
    %v2841 = vadd.f32 %v2835, %v2827
    %v2842 = vadd.f32 %v2836, %v2827
    %v2843 = vadd.f32 %v2837, %v2827
    %v2844 = vadd.f32 %v2838, %v2827
    %v2845 = vadd.f32 %v2839, %v2827
    %v2846 = vmul.f32 %v2797, 2.0
    %v2847 = vmul.f32 %v2798, 2.0
    %v2848 = vmul.f32 %v2799, 2.0
    %v2849 = vmul.f32 %v2800, 2.0
    %v2850 = vmul.f32 %v2801, 2.0
    %v2851 = vmul.f32 %v2802, 2.0
    %v2852 = vstv %s2783
    %v2853 = vadd.f32 %v2846, %v2852
    %v2854 = vadd.f32 %v2847, %v2852
    %v2855 = vadd.f32 %v2848, %v2852
    %v2856 = vadd.f32 %v2849, %v2852
    %v2857 = vadd.f32 %v2850, %v2852
    %v2858 = vadd.f32 %v2851, %v2852
    %v2859 = vmul.f32 %v2853, %v2828
    %v2860 = vmul.f32 %v2854, %v2829
    %v2861 = vmul.f32 %v2855, %v2830
    %v2862 = vmul.f32 %v2856, %v2831
    %v2863 = vmul.f32 %v2857, %v2832
    %v2864 = vmul.f32 %v2858, %v2833
    %v2865 = vadd.f32 %v2785, %v2791
    %v2866 = vadd.f32 %v2786, %v2792
    %v2867 = vadd.f32 %v2787, %v2793
    %v2868 = vadd.f32 %v2788, %v2794
    %v2869 = vadd.f32 %v2789, %v2795
    %v2870 = vadd.f32 %v2790, %v2796
    %v2871 = vadd.f32 %v2865, %v2852
    %v2872 = vadd.f32 %v2866, %v2852
    %v2873 = vadd.f32 %v2867, %v2852
    %v2874 = vadd.f32 %v2868, %v2852
    %v2875 = vadd.f32 %v2869, %v2852
    %v2876 = vadd.f32 %v2870, %v2852
    %v2877 = vmul.f32 %v2871, %v2840
    %v2878 = vmul.f32 %v2872, %v2841
    %v2879 = vmul.f32 %v2873, %v2842
    %v2880 = vmul.f32 %v2874, %v2843
    %v2881 = vmul.f32 %v2875, %v2844
    %v2882 = vmul.f32 %v2876, %v2845
    %v2883 = vrcp.pop %v2877
    %v2884 = vmul.f32 %v2859, %v2883
    %v2885 = vrcp.pop %v2878
    %v2886 = vmul.f32 %v2860, %v2885
    %v2887 = vrcp.pop %v2879
    %v2888 = vmul.f32 %v2861, %v2887
    %v2889 = vrcp.pop %v2880
    %v2890 = vmul.f32 %v2862, %v2889
    %v2891 = vrcp.pop %v2881
    %v2892 = vmul.f32 %v2863, %v2891
    %v2893 = vrcp.pop %v2882
    %v2894 = vmul.f32 %v2864, %v2893
    %v2895 = vlaneseq
    %v2896 = vand.u32 %v2895, 127
    %vm2897 = vcmp.ge.s32.totalorder %v2896, 5
    %vm2898 = vcmp.lt.s32.totalorder %v2896, 21
    %vm2899 = vmand %vm2897, %vm2898
    %vm2900 = vcmp.ge.s32.totalorder %v2896, 31
    %vm2901 = vcmp.lt.s32.totalorder %v2896, 47
    %vm2902 = vmand %vm2900, %vm2901
    %vm2903 = vmor %vm2899, %vm2902
    %vm2904 = vcmp.ge.s32.totalorder %v2896, 57
    %vm2905 = vcmp.lt.s32.totalorder %v2896, 73
    %vm2906 = vmand %vm2904, %vm2905
    %vm2907 = vmor %vm2903, %vm2906
    %vm2908 = vcmp.ge.s32.totalorder %v2896, 83
    %vm2909 = vcmp.lt.s32.totalorder %v2896, 99
    %vm2910 = vmand %vm2908, %vm2909
    %vm2911 = vmor %vm2907, %vm2910
    %v2912 = vsel %vm2911, %v2884, 0.0
    %v2913 = vsel %vm2911, %v2886, 0.0
    %v2914 = vsel %vm2911, %v2888, 0.0
    %v2915 = vsel %vm2911, %v2890, 0.0
    %v2916 = vsel %vm2911, %v2892, 0.0
    %v2917 = vsel %vm2911, %v2894, 0.0
    %vm2918 = vcmask 1047557
    %v2919 = vsel %vm2918, %v2912, 0.0
    %v2920 = vsel %vm2918, %v2915, 0.0
    %v2921 = vadd.f32 %v2919, %v2920
    %v2922 = vadd.f32 %v2913, %v2916
    %v2923 = vsel %vm370, %v2914, 0.0
    %v2924 = vsel %vm370, %v2917, 0.0
    %v2925 = vadd.f32 %v2923, %v2924
    %v2929 = vrot.slane %v2921, 5
    %v2930 = vrot.slane %v2922, 5
    %v2931 = vsel %vm461, %v2929, %v2930
    %v2932 = vrot.slane %v2925, 5
    %v2933 = vsel %vm461, %v2930, %v2932
    %v2936 = vadd.f32 %v2931, %v2933
    %v2937 = vrot.slane %v2936, 4
    %v2938 = vadd.f32 %v2936, %v2937
    %v2939 = vrot.slane %v2938, 2
    %v2940 = vadd.f32 %v2938, %v2939
    %v2941 = vrot.slane %v2940, 1
    %v2942 = vadd.f32 %v2940, %v2941
    %v2943 = vlaneseq
    %v2944 = vshrl.u32 %v2943, 7
    %vm2945 = vcmp.eq.s32.totalorder %v2944, 0
    %v2946 = vsel %vm2945, %v2942, 0.0
    %2947 = vst [vmem:[%s3] sm:$0xff] %v2946
    // Predicated region
    $region18: #{ssim_loss.1} parent=1 // pred_check
      _
    $region19: #{ssim_loss.1} parent=1 // pred_check_branch
      %2949 = sbr.rel (0) target = $region21
    $region20: #{ssim_loss.1} parent=1 // pred_region
      _
    $region21: #{ssim_loss.1} parent=1 // pred_fallthru
      _
    // Predicated region
    $region22: #{ssim_loss.1} parent=1 // pred_check
      _
    $region23: #{ssim_loss.1} parent=1 // pred_check_branch
      %2951 = sbr.rel (0) target = $region25
    $region24: #{ssim_loss.1} parent=1 // pred_region
      _
    $region25: #{ssim_loss.1} parent=1 // pred_fallthru
      _
    %2952 = vsyncpa [#allocation3], 1

</llo_original>
